<compile_context>
chip_gen: v6e
topology: v6e:2x2x1
jax: 0.10.0
libtpu: 0.0.40
codegen_flags: <defaults>
</compile_context>

<pallas_src>
import math
import functools

import jax
import jax.numpy as jnp
from jax.experimental import pallas as pl
from jax.experimental.pallas import tpu as pltpu


# ----------------------------- Pallas kernel ------------------------------ #

def _ipa_attn_kernel(qc_ref, kc_ref, vc_ref, bias_ref, z_ref, mrow_ref, mcol_ref,
                     oov_ref, opair_ref, *, inf):
    qc = qc_ref[0]        # [H, tq, Kd]   f32  augmented query features
    kc = kc_ref[0]        # [H, Kd, N]    f32  augmented keys (pre-transposed, N lane-major)
    vc = vc_ref[0]        # [H, N, C+3Pv] bf16 values ++ global value points
    bias = bias_ref[0]    # [H, tq, N]    bf16 pair bias (pre-scaled by sqrt(1/3))
    zt = z_ref[0]         # [tq, N, c_z]  bf16
    m_k = mrow_ref[0]     # [1, N]        f32  key mask
    m_q = mcol_ref[0]     # [tq, 1]       f32  query mask

    H, tq, _ = qc.shape
    d1 = vc.shape[-1]
    c_z = zt.shape[-1]

    # Fused scalar-QK + point-distance logits: one canonical MXU matmul / head.
    # TODO(synk): on v6e/v7x a bf16 logits matmul (with per-tile point
    # re-centering to keep the squared-norm columns small) would roughly halve
    # MXU time; kept f32 because the distance term is a large-norm cancellation.
    logits = jnp.einsum('hqd,hdk->hqk', qc, kc,
                        preferred_element_type=jnp.float32)      # [H, tq, N]
    logits = logits + bias.astype(jnp.float32)
    logits = logits + ((m_q * m_k - 1.0) * inf)[None, :, :]      # mask bias

    # Softmax over keys (f32); normalization on the EUP.
    # TODO(synk): bf16 exp on v6e/v7x if the EUP slot saturates (not on v5e).
    mx = jnp.max(logits, axis=-1, keepdims=True)
    e = jnp.exp(logits - mx)
    denom = jnp.sum(e, axis=-1, keepdims=True)
    probs = e * pl.reciprocal(denom, approx=True)                # [H, tq, N] f32

    # o / o_pt: batched over heads on the MXU -> packed lane-dense store.
    o_all = jnp.einsum('hqk,hkd->hqd', probs.astype(jnp.bfloat16), vc,
                       preferred_element_type=jnp.float32)       # [H, tq, C+3Pv]
    oov_ref[0] = jnp.transpose(o_all, (1, 0, 2)).reshape(tq, H * d1)

    # o_pair: batched over the query index on the MXU (no [N,N,c_z] temp).
    # Relayout on the f32 tensor, then cast (avoids packed-bf16 XLU shuffles).
    probs_t = jnp.transpose(probs, (1, 0, 2)).astype(jnp.bfloat16)   # [tq, H, N]
    # TODO(synk): o_pair is M=H-skinny on the 256-deep MXU (v6e/v7x); if bundle
    # dumps show it weight-push bound, try the transposed per-q form
    # z[q]^T [c_z x N] . probs[q]^T [N x H].
    o_pair = jnp.einsum('qhk,qkc->qhc', probs_t, zt,
                        preferred_element_type=jnp.float32)      # [tq, H, c_z]
    opair_ref[0] = o_pair.reshape(tq, H * c_z).astype(opair_ref.dtype)


# ----------------------- tiling / VMEM sizing helpers ---------------------- #

def _round_up(x, m):
    return (x + m - 1) // m * m


def _blk_bytes(shape, itemsize):
    # Rough VMEM footprint of one block with (sublane, 128-lane) padding.
    s = list(shape)
    s[-1] = _round_up(s[-1], 128)
    if len(s) >= 2:
        s[-2] = _round_up(s[-2], 8 if itemsize == 4 else 16)
    n = 1
    for d in s:
        n *= d
    return n * itemsize


def _vmem_capacity_bytes():
    try:
        cap = getattr(pltpu.get_tpu_info(), "vmem_capacity_bytes", None)
        if cap:
            return int(cap)
    except Exception:
        pass
    return 64 * 2 ** 20   # conservative default: v7x per-TensorCore VMEM


def _footprint_bytes(tq, n, h, kd, d1, c_z, single_buffer=True):
    kb = 1 if single_buffer else 2
    f = 0
    f += 2 * _blk_bytes((h, tq, kd), 4)            # q_cat (double-buffered, per-step)
    f += kb * _blk_bytes((h, kd, n), 4)            # k_cat^T (batch-resident)
    f += kb * _blk_bytes((h, n, d1), 2)            # v_cat (batch-resident, bf16)
    f += 2 * _blk_bytes((h, tq, n), 2)             # pair bias (bf16)
    f += 2 * _blk_bytes((tq, n, c_z), 2)           # z tile (bf16)
    f += kb * _blk_bytes((1, n), 4) + 2 * _blk_bytes((tq, 1), 4)     # masks
    f += 2 * _blk_bytes((tq, h * d1), 4)           # o ++ o_pt packed output
    f += 2 * _blk_bytes((tq, h * c_z), 2)          # o_pair packed output (bf16)
    # live f32 softmax temporaries / relayouts / matmul results
    f += 6 * _blk_bytes((h, tq, n), 4)
    f += _blk_bytes((h, tq, d1), 4) + _blk_bytes((tq, h * c_z), 4)
    return f


def _select_tiling(n, h, kd, d1, c_z, vmem_cap):
    budget = int(vmem_cap * 0.70)   # headroom for compiler scratch / spills
    # Small sequences: a single un-padded tile (block dims equal full dims).
    if n <= 256 and _footprint_bytes(n, n, h, kd, d1, c_z) <= budget:
        return n, n
    n_pad = _round_up(n, 128)
    for tq in (256, 128, 64, 32):   # v5e/v6e reach 256; v7x budget forces 64/32
        if n_pad % tq == 0 and _footprint_bytes(tq, n_pad, h, kd, d1, c_z) <= budget:
            return tq, n_pad
    # TODO(synk): flash-style key-axis grid dimension (online softmax) for very
    # long sequences that do not fit even at tq=32 on v7x.
    return 32, n_pad


def _build_ipa_call(B, H, n, tq, Kd, D1, c_z, inf, vmem_cap, single_buffer):
    nq = n // tq

    def resident(shape, imap):
        # Block index constant over the inner q axis -> never re-DMA'd; a
        # single buffer frees several MiB of VMEM (most valuable on v7x).
        if single_buffer:
            return pl.BlockSpec(shape, imap, pipeline_mode=pl.Buffered(1))
        return pl.BlockSpec(shape, imap)

    fp = _footprint_bytes(tq, n, H, Kd, D1, c_z, single_buffer=single_buffer)
    vmem_limit = int(min(max(int(fp * 1.3) + (8 << 20), 32 << 20),
                         int(vmem_cap * 0.85)))

    # Advisory cost estimate so XLA overlaps surrounding ops with kernel DMA.
    flops = int(B * nq * (2 * H * tq * n * (Kd + D1) + 2 * tq * H * n * c_z))
    transc = int(B * nq * H * tq * n)
    bytes_accessed = int(B * (H * n * Kd * 4 + H * Kd * n * 4 + H * n * D1 * 2
                              + H * n * n * 2 + n * n * c_z * 2
                              + n * (H * D1 * 4 + H * c_z * 2)))

    kernel = functools.partial(_ipa_attn_kernel, inf=float(inf))
    return pl.pallas_call(
        kernel,
        out_shape=(
            jax.ShapeDtypeStruct((B, n, H * D1), jnp.float32),
            jax.ShapeDtypeStruct((B, n, H * c_z), jnp.bfloat16),
        ),
        grid=(B, nq),
        in_specs=[
            pl.BlockSpec((1, H, tq, Kd), lambda b, q: (b, 0, q, 0)),    # q_cat (f32)
            resident((1, H, Kd, n), lambda b, q: (b, 0, 0, 0)),         # k_cat^T (f32)
            resident((1, H, n, D1), lambda b, q: (b, 0, 0, 0)),         # v_cat (bf16)
            pl.BlockSpec((1, H, tq, n), lambda b, q: (b, 0, q, 0)),     # pair bias (bf16)
            pl.BlockSpec((1, tq, n, c_z), lambda b, q: (b, q, 0, 0)),   # z (bf16)
            resident((1, 1, n), lambda b, q: (b, 0, 0)),                # key mask
            pl.BlockSpec((1, tq, 1), lambda b, q: (b, q, 0)),           # query mask
        ],
        out_specs=(
            pl.BlockSpec((1, tq, H * D1), lambda b, q: (b, q, 0)),      # o ++ o_pt (global)
            pl.BlockSpec((1, tq, H * c_z), lambda b, q: (b, q, 0)),     # o_pair (bf16)
        ),
        compiler_params=pltpu.CompilerParams(
            dimension_semantics=("parallel", "parallel"),
            vmem_limit_bytes=vmem_limit),
        cost_estimate=pl.CostEstimate(flops=flops, transcendentals=transc,
                                      bytes_accessed=bytes_accessed),
    )


def ipa_attention_pallas(q_cat, k_cat_t, v_cat, bias_h, z_b, mask, inf):
    B, H, N, Kd = q_cat.shape          # k_cat_t: [B, H, Kd, N]
    D1 = v_cat.shape[-1]
    c_z = z_b.shape[-1]

    vmem_cap = _vmem_capacity_bytes()
    tq, n_pad = _select_tiling(N, H, Kd, D1, c_z, vmem_cap)

    if n_pad != N:
        p = n_pad - N
        q_cat = jnp.pad(q_cat, ((0, 0), (0, 0), (0, p), (0, 0)))
        k_cat_t = jnp.pad(k_cat_t, ((0, 0), (0, 0), (0, 0), (0, p)))
        v_cat = jnp.pad(v_cat, ((0, 0), (0, 0), (0, p), (0, 0)))
        bias_h = jnp.pad(bias_h, ((0, 0), (0, 0), (0, p), (0, p)))
        z_b = jnp.pad(z_b, ((0, 0), (0, p), (0, p), (0, 0)))
        mask = jnp.pad(mask, ((0, 0), (0, p)))   # padded keys masked out in-kernel

    mask_row = mask.reshape(B, 1, n_pad).astype(jnp.float32)
    mask_col = mask.reshape(B, n_pad, 1).astype(jnp.float32)
    args = (q_cat, k_cat_t, v_cat, bias_h, z_b, mask_row, mask_col)

    try:
        o_ov, o_pair = _build_ipa_call(B, H, n_pad, tq, Kd, D1, c_z, inf,
                                       vmem_cap, single_buffer=True)(*args)
    except Exception:
        # TODO(synk): pl.Buffered(1) unsupported on this jax build; fall back
        # to default double-buffering of the batch-resident operands.
        o_ov, o_pair = _build_ipa_call(B, H, n_pad, tq, Kd, D1, c_z, inf,
                                       vmem_cap, single_buffer=False)(*args)

    if n_pad != N:
        o_ov = o_ov[:, :N]
        o_pair = o_pair[:, :N]
    return o_ov, o_pair


# Pure-JAX f32 reference of the same fused attention block (for checking).
def ipa_attention_ref(hw, qh, kh, vh, bias_h, qp_h, kp_h, vp_h, z, mask, c_hidden, inf):
    B, H, N, C = qh.shape
    Pv3 = vp_h.shape[-1]
    a = jnp.einsum('bhic,bhjc->bhij', qh, kh) * math.sqrt(1.0 / (3.0 * c_hidden))
    a = a + bias_h                                          # bias_h pre-scaled by sqrt(1/3)
    diff = qp_h[:, :, :, None, :] - kp_h[:, :, None, :, :]
    ptsum = jnp.sum(diff * diff, axis=-1)
    a = a - 0.5 * hw[None, :, None, None] * ptsum
    mask_bias = (mask[:, :, None] * mask[:, None, :] - 1.0) * inf
    a = a + mask_bias[:, None, :, :]
    a = jax.nn.softmax(a, axis=-1)
    o = jnp.einsum('bhij,bhjc->bhic', a, vh)
    o_pt = jnp.einsum('bhij,bhjd->bhid', a, vp_h)
    o_pair = jnp.einsum('bhij,bijc->bhic', a, z)
    o = jnp.transpose(o, (0, 2, 1, 3)).reshape(B, N, H * C)
    o_pt_g = jnp.transpose(o_pt, (0, 2, 1, 3)).reshape(B, N, H, Pv3 // 3, 3)
    o_pair = jnp.transpose(o_pair, (0, 2, 1, 3)).reshape(B, N, H * z.shape[-1])
    return o, o_pt_g, o_pair


# ------------------------------- glue ------------------------------------- #

def quat_to_rotmat(q):
    w, x, y, z = q[..., 0], q[..., 1], q[..., 2], q[..., 3]
    r0 = jnp.stack([1 - 2 * (y * y + z * z), 2 * (x * y - w * z), 2 * (x * z + w * y)], -1)
    r1 = jnp.stack([2 * (x * y + w * z), 1 - 2 * (x * x + z * z), 2 * (y * z - w * x)], -1)
    r2 = jnp.stack([2 * (x * z - w * y), 2 * (y * z + w * x), 1 - 2 * (x * x + y * y)], -1)
    return jnp.stack([r0, r1, r2], axis=-2)   # [..., 3, 3]


def init_ipa_params(key, c_s, c_z, c_hidden, num_heads, num_qk_points, num_v_points):
    # Deterministic synthetic parameters (shapes match the PyTorch module,
    # separate_kv=False).  init='final' (zeros) for linear_out is replaced by
    # small random values so the test output is non-trivial.
    hc = c_hidden * num_heads
    hpq = num_heads * num_qk_points * 3
    hpkv = num_heads * (num_qk_points + num_v_points) * 3
    concat_out_dim = num_heads * (c_z + c_hidden + num_v_points * 4)
    keys = jax.random.split(key, 6)

    def lin(k, out_dim, in_dim, scale=0.05):
        kw, kb = jax.random.split(k)
        w = scale * jax.random.normal(kw, (out_dim, in_dim), jnp.float32)
        b = scale * jax.random.normal(kb, (out_dim,), jnp.float32)
        return w, b

    p = {}
    p["w_q"], p["b_q"] = lin(keys[0], hc, c_s)
    p["w_kv"], p["b_kv"] = lin(keys[1], 2 * hc, c_s)
    p["w_q_pts"], p["b_q_pts"] = lin(keys[2], hpq, c_s)
    p["w_kv_pts"], p["b_kv_pts"] = lin(keys[3], hpkv, c_s)
    p["w_b"], p["b_b"] = lin(keys[4], num_heads, c_z)
    p["head_weights"] = jnp.full((num_heads,), 0.541324854612918, jnp.float32)
    p["w_out"], p["b_out"] = lin(keys[5], c_s, concat_out_dim)
    return p


def ipa_forward(params, s, z, rot, trans, mask, *,
                c_hidden, num_heads, num_qk_points, num_v_points, inf, eps,
                use_pallas=True):
    B, N, _ = s.shape
    H, C, Pq, Pv = num_heads, c_hidden, num_qk_points, num_v_points

    linear = lambda x, w, b: jnp.dot(x, w.T) + b

    # projections
    q = linear(s, params["w_q"], params["b_q"]).reshape(B, N, H, C)
    bias = linear(z, params["w_b"], params["b_b"])                       # [B,N,N,H]
    kv = linear(s, params["w_kv"], params["b_kv"]).reshape(B, N, H, 2 * C)
    k, v = kv[..., :C], kv[..., C:]

    def to_points(raw, npts):
        # raw: [B,N, H*npts*3] laid out as (x-block, y-block, z-block)
        xyz = jnp.stack(jnp.split(raw, 3, axis=-1), axis=-1)             # [B,N,H*npts,3]
        glob = jnp.einsum('bnij,bnpj->bnpi', rot, xyz) + trans[:, :, None, :]
        return glob.reshape(B, N, H, npts, 3)

    q_pts = to_points(linear(s, params["w_q_pts"], params["b_q_pts"]), Pq)
    kv_pts = to_points(linear(s, params["w_kv_pts"], params["b_kv_pts"]), Pq + Pv)
    k_pts, v_pts = kv_pts[..., :Pq, :], kv_pts[..., Pq:, :]

    # head-major layouts
    qh = jnp.transpose(q, (0, 2, 1, 3))                                  # [B,H,N,C]
    kh = jnp.transpose(k, (0, 2, 1, 3))
    vh = jnp.transpose(v, (0, 2, 1, 3))
    bias_h = math.sqrt(1.0 / 3.0) * jnp.transpose(bias, (0, 3, 1, 2))    # pre-scaled
    qp_h = jnp.transpose(q_pts, (0, 2, 1, 3, 4)).reshape(B, H, N, Pq * 3)
    kp_h = jnp.transpose(k_pts, (0, 2, 1, 3, 4)).reshape(B, H, N, Pq * 3)
    vp_h = jnp.transpose(v_pts, (0, 2, 1, 3, 4)).reshape(B, H, N, Pv * 3)
    hw = jax.nn.softplus(params["head_weights"]) * math.sqrt(
        1.0 / (3.0 * (Pq * 9.0 / 2.0)))                                  # [H]

    if use_pallas:
        # Augmented features fold scalar scale + point-distance into one matmul.
        sw = jnp.sqrt(hw)[None, :, None, None]
        qps = qp_h * sw                                                  # sqrt(w)*q_pts
        kps = kp_h * sw
        qn = -0.5 * jnp.sum(qps * qps, axis=-1, keepdims=True)
        kn = -0.5 * jnp.sum(kps * kps, axis=-1, keepdims=True)
        ones = jnp.ones_like(qn)
        q_cat = jnp.concatenate(
            [qh * math.sqrt(1.0 / (3.0 * C)), qps, qn, ones], axis=-1)   # [B,H,N,C+3Pq+2]
        k_cat = jnp.concatenate([kh, kps, ones, kn], axis=-1)
        # Keys pre-transposed to [B,H,Kd,N]: long N dim goes to the lane
        # position -> no in-kernel key transpose, ~4x smaller k_cat block.
        k_cat_t = jnp.swapaxes(k_cat, -1, -2)
        # TODO(synk): q_cat could also be fed transposed ([B,H,Kd,tq]) to drop
        # its lane padding; kept row-major to preserve the canonical MXU form.
        v_cat = jnp.concatenate([vh, vp_h], axis=-1).astype(jnp.bfloat16)  # [B,H,N,C+3Pv]

        o_ov, o_pair = ipa_attention_pallas(
            q_cat, k_cat_t, v_cat, bias_h.astype(jnp.bfloat16),
            z.astype(jnp.bfloat16), mask, inf)
        o_ov = o_ov.reshape(B, N, H, C + 3 * Pv)
        o = o_ov[..., :C].reshape(B, N, H * C)
        o_pt_g = o_ov[..., C:].reshape(B, N, H, Pv, 3)
        o_pair = o_pair.astype(jnp.float32)
    else:
        o, o_pt_g, o_pair = ipa_attention_ref(
            hw, qh, kh, vh, bias_h, qp_h, kp_h, vp_h, z, mask, C, inf)

    # o_pt (global frame) -> inverse rigid -> local frame
    o_pt = jnp.einsum('bnji,bnhpj->bnhpi', rot,
                      o_pt_g - trans[:, :, None, None, :])
    o_pt_norm = jnp.sqrt(jnp.sum(o_pt ** 2, axis=-1) + eps).reshape(B, N, H * Pv)
    o_pt_flat = o_pt.reshape(B, N, H * Pv, 3)

    o_cat = jnp.concatenate(
        [o, o_pt_flat[..., 0], o_pt_flat[..., 1], o_pt_flat[..., 2],
         o_pt_norm, o_pair], axis=-1)
    s_update = jnp.dot(o_cat, params["w_out"].T) + params["b_out"]
    return s_update


# ------------------------------- main -------------------------------------- #

if __name__ == "__main__":
    B, N = 2, 8
    c_s, c_z, c_hidden = 32, 8, 16
    H, Pq, Pv = 4, 4, 8
    inf, eps = 1e5, 1e-8

    key = jax.random.PRNGKey(0)
    k_s, k_z, k_q, k_t, k_p = jax.random.split(key, 5)
    s = jax.random.normal(k_s, (B, N, c_s), jnp.float32)
    z = jax.random.normal(k_z, (B, N, N, c_z), jnp.float32)
    quat = jax.random.normal(k_q, (B, N, 4), jnp.float32)
    quat = quat / jnp.linalg.norm(quat, axis=-1, keepdims=True)
    rot = quat_to_rotmat(quat)                                   # [B,N,3,3]
    trans = jax.random.normal(k_t, (B, N, 3), jnp.float32)       # [B,N,3]
    mask = jnp.ones((B, N), jnp.float32).at[1, -2:].set(0.0)

    params = init_ipa_params(k_p, c_s, c_z, c_hidden, H, Pq, Pv)

    cfg = dict(c_hidden=c_hidden, num_heads=H, num_qk_points=Pq,
               num_v_points=Pv, inf=inf, eps=eps)

    out = ipa_forward(params, s, z, rot, trans, mask, use_pallas=True, **cfg)
    out = jax.block_until_ready(out)

    ref = ipa_forward(params, s, z, rot, trans, mask, use_pallas=False, **cfg)
    ref = jax.block_until_ready(ref)

    assert out.shape == (B, N, c_s)
    assert bool(jnp.all(jnp.isfinite(out)))
    # The Pallas path uses bf16 MXU operands (probs / values / value-points /
    # pair bias / z, plus a bf16 o_pair output) with f32 accumulation and an
    # approximate-reciprocal softmax normalisation, while the reference is
    # full f32 — hence the looser tolerance.
    assert bool(jnp.allclose(out, ref, atol=5e-2, rtol=5e-2)), "mismatch vs reference"
    print("KERNEL_OK")
</pallas_src>

<mosaic_0001>
module attributes {stable_mosaic.version = 11 : i64} {
  func.func @_ipa_attn_kernel(%arg0: i32, %arg1: i32, %arg2: memref<1x4x8x30xf32, #tpu.memory_space<vmem>>, %arg3: memref<1x4x30x8xf32, #tpu.memory_space<vmem>>, %arg4: memref<1x4x8x40xbf16, #tpu.memory_space<vmem>>, %arg5: memref<1x4x8x8xbf16, #tpu.memory_space<vmem>>, %arg6: memref<1x8x8x8xbf16, #tpu.memory_space<vmem>>, %arg7: memref<1x1x8xf32, #tpu.memory_space<vmem>>, %arg8: memref<1x8x1xf32, #tpu.memory_space<vmem>>, %arg9: memref<1x8x160xf32, #tpu.memory_space<vmem>>, %arg10: memref<1x8x32xbf16, #tpu.memory_space<vmem>>) attributes {dimension_semantics = [#tpu.dimension_semantics<parallel>, #tpu.dimension_semantics<parallel>], iteration_bounds = array<i64: 2, 1>, scalar_prefetch = 0 : i64, scratch_operands = 0 : i64, tpu.core_type = #tpu.core_type<tc>, window_params = [{transform_indices = @transform_0, window_bounds = array<i64: 1, 4, 8, 30>}, {pipeline_mode = #tpu.pipeline_mode<synchronous>, transform_indices = @transform_1, window_bounds = array<i64: 1, 4, 30, 8>}, {pipeline_mode = #tpu.pipeline_mode<synchronous>, transform_indices = @transform_2, window_bounds = array<i64: 1, 4, 8, 40>}, {transform_indices = @transform_3, window_bounds = array<i64: 1, 4, 8, 8>}, {transform_indices = @transform_4, window_bounds = array<i64: 1, 8, 8, 8>}, {pipeline_mode = #tpu.pipeline_mode<synchronous>, transform_indices = @transform_5, window_bounds = array<i64: 1, 1, 8>}, {transform_indices = @transform_6, window_bounds = array<i64: 1, 8, 1>}, {transform_indices = @transform_7, window_bounds = array<i64: 1, 8, 160>}, {transform_indices = @transform_8, window_bounds = array<i64: 1, 8, 32>}]} {
    %c0 = arith.constant 0 : index
    %c0_0 = arith.constant 0 : index
    %c0_1 = arith.constant 0 : index
    %c0_2 = arith.constant 0 : index
    %0 = vector.load %arg2[%c0, %c0_0, %c0_1, %c0_2] : memref<1x4x8x30xf32, #tpu.memory_space<vmem>>, vector<1x4x8x30xf32>
    %1 = vector.shape_cast %0 : vector<1x4x8x30xf32> to vector<4x8x30xf32>
    %c0_3 = arith.constant 0 : index
    %c0_4 = arith.constant 0 : index
    %c0_5 = arith.constant 0 : index
    %c0_6 = arith.constant 0 : index
    %2 = vector.load %arg3[%c0_3, %c0_4, %c0_5, %c0_6] : memref<1x4x30x8xf32, #tpu.memory_space<vmem>>, vector<1x4x30x8xf32>
    %3 = vector.shape_cast %2 : vector<1x4x30x8xf32> to vector<4x30x8xf32>
    %c0_7 = arith.constant 0 : index
    %c0_8 = arith.constant 0 : index
    %c0_9 = arith.constant 0 : index
    %c0_10 = arith.constant 0 : index
    %4 = vector.load %arg4[%c0_7, %c0_8, %c0_9, %c0_10] : memref<1x4x8x40xbf16, #tpu.memory_space<vmem>>, vector<1x4x8x40xbf16>
    %5 = vector.shape_cast %4 : vector<1x4x8x40xbf16> to vector<4x8x40xbf16>
    %c0_11 = arith.constant 0 : index
    %c0_12 = arith.constant 0 : index
    %c0_13 = arith.constant 0 : index
    %c0_14 = arith.constant 0 : index
    %6 = vector.load %arg5[%c0_11, %c0_12, %c0_13, %c0_14] : memref<1x4x8x8xbf16, #tpu.memory_space<vmem>>, vector<1x4x8x8xbf16>
    %7 = vector.shape_cast %6 : vector<1x4x8x8xbf16> to vector<4x8x8xbf16>
    %c0_15 = arith.constant 0 : index
    %c0_16 = arith.constant 0 : index
    %c0_17 = arith.constant 0 : index
    %c0_18 = arith.constant 0 : index
    %8 = vector.load %arg6[%c0_15, %c0_16, %c0_17, %c0_18] : memref<1x8x8x8xbf16, #tpu.memory_space<vmem>>, vector<1x8x8x8xbf16>
    %9 = vector.shape_cast %8 : vector<1x8x8x8xbf16> to vector<8x8x8xbf16>
    %c0_19 = arith.constant 0 : index
    %c0_20 = arith.constant 0 : index
    %c0_21 = arith.constant 0 : index
    %10 = vector.load %arg7[%c0_19, %c0_20, %c0_21] : memref<1x1x8xf32, #tpu.memory_space<vmem>>, vector<1x1x8xf32>
    %11 = vector.shape_cast %10 : vector<1x1x8xf32> to vector<1x8xf32>
    %c0_22 = arith.constant 0 : index
    %c0_23 = arith.constant 0 : index
    %c0_24 = arith.constant 0 : index
    %12 = vector.load %arg8[%c0_22, %c0_23, %c0_24] : memref<1x8x1xf32, #tpu.memory_space<vmem>>, vector<1x8x1xf32>
    %13 = vector.shape_cast %12 : vector<1x8x1xf32> to vector<8x1xf32>
    "tpu.trace_start"() <{level = 10 : i32, message = "hqd,hdk->hqk"}> : () -> ()
    %cst = arith.constant dense<0.000000e+00> : vector<4x8x8xf32>
    %14 = tpu.matmul %1, %3, %cst {dimension_numbers = #tpu.dot_dimension_numbers<[2], [1], [1], [2], [0, 0, 0, 1, 1, 2], [0], [0]>} : vector<4x8x30xf32>, vector<4x30x8xf32>, vector<4x8x8xf32> -> vector<4x8x8xf32>
    "tpu.trace_stop"() : () -> ()
    %15 = arith.extf %7 : vector<4x8x8xbf16> to vector<4x8x8xf32>
    %16 = arith.addf %14, %15 : vector<4x8x8xf32>
    %17 = vector.broadcast %13 : vector<8x1xf32> to vector<8x8xf32>
    %18 = vector.broadcast %11 : vector<1x8xf32> to vector<8x8xf32>
    %19 = arith.mulf %17, %18 : vector<8x8xf32>
    %cst_25 = arith.constant 1.000000e+00 : f32
    %20 = vector.broadcast %cst_25 : f32 to vector<8x8xf32>
    %21 = arith.subf %19, %20 : vector<8x8xf32>
    %cst_26 = arith.constant 1.000000e+05 : f32
    %22 = vector.broadcast %cst_26 : f32 to vector<8x8xf32>
    %23 = arith.mulf %21, %22 : vector<8x8xf32>
    %24 = vector.shape_cast %23 : vector<8x8xf32> to vector<1x8x8xf32>
    %25 = vector.broadcast %24 : vector<1x8x8xf32> to vector<4x8x8xf32>
    %26 = arith.addf %16, %25 : vector<4x8x8xf32>
    %cst_27 = arith.constant dense<0xFF800000> : vector<4x8xf32>
    %27 = vector.multi_reduction <maximumf>, %26, %cst_27 [2] : vector<4x8x8xf32> to vector<4x8xf32>
    %28 = vector.shape_cast %27 : vector<4x8xf32> to vector<4x8x1xf32>
    %29 = vector.broadcast %28 : vector<4x8x1xf32> to vector<4x8x8xf32>
    %30 = arith.subf %26, %29 : vector<4x8x8xf32>
    %31 = math.exp %30 : vector<4x8x8xf32>
    %cst_28 = arith.constant dense<0.000000e+00> : vector<4x8xf32>
    %32 = vector.multi_reduction <add>, %31, %cst_28 [2] : vector<4x8x8xf32> to vector<4x8xf32>
    %33 = vector.shape_cast %32 : vector<4x8xf32> to vector<4x8x1xf32>
    %34 = tpu.reciprocal %33 {approx = true} : vector<4x8x1xf32> -> vector<4x8x1xf32>
    %35 = vector.broadcast %34 : vector<4x8x1xf32> to vector<4x8x8xf32>
    %36 = arith.mulf %31, %35 : vector<4x8x8xf32>
    %37 = arith.truncf %36 : vector<4x8x8xf32> to vector<4x8x8xbf16>
    "tpu.trace_start"() <{level = 10 : i32, message = "hqk,hkd->hqd"}> : () -> ()
    %cst_29 = arith.constant dense<0.000000e+00> : vector<4x8x40xf32>
    %38 = tpu.matmul %37, %5, %cst_29 {dimension_numbers = #tpu.dot_dimension_numbers<[2], [1], [1], [2], [0, 0, 0, 1, 1, 2], [0], [0]>} : vector<4x8x8xbf16>, vector<4x8x40xbf16>, vector<4x8x40xf32> -> vector<4x8x40xf32>
    "tpu.trace_stop"() : () -> ()
    %39 = tpu.transpose %38, [1, 0, 2] : vector<4x8x40xf32> -> vector<8x4x40xf32>
    %40 = vector.shape_cast %39 : vector<8x4x40xf32> to vector<8x160xf32>
    %c0_30 = arith.constant 0 : index
    %c0_31 = arith.constant 0 : index
    %c0_32 = arith.constant 0 : index
    %41 = vector.load %arg9[%c0_30, %c0_31, %c0_32] : memref<1x8x160xf32, #tpu.memory_space<vmem>>, vector<1x8x160xf32>
    %42 = vector.shape_cast %41 : vector<1x8x160xf32> to vector<8x160xf32>
    %43 = vector.shape_cast %40 : vector<8x160xf32> to vector<1x8x160xf32>
    tpu.vector_store %arg9[%c0_30, %c0_31, %c0_32], %43 {strides = array<i32>} : memref<1x8x160xf32, #tpu.memory_space<vmem>>, vector<1x8x160xf32>,
    %44 = tpu.transpose %36, [1, 0, 2] : vector<4x8x8xf32> -> vector<8x4x8xf32>
    %45 = arith.truncf %44 : vector<8x4x8xf32> to vector<8x4x8xbf16>
    "tpu.trace_start"() <{level = 10 : i32, message = "qhk,qkc->qhc"}> : () -> ()
    %cst_33 = arith.constant dense<0.000000e+00> : vector<8x4x8xf32>
    %46 = tpu.matmul %45, %9, %cst_33 {dimension_numbers = #tpu.dot_dimension_numbers<[2], [1], [1], [2], [0, 0, 0, 1, 1, 2], [0], [0]>} : vector<8x4x8xbf16>, vector<8x8x8xbf16>, vector<8x4x8xf32> -> vector<8x4x8xf32>
    "tpu.trace_stop"() : () -> ()
    %47 = vector.shape_cast %46 : vector<8x4x8xf32> to vector<8x32xf32>
    %48 = arith.truncf %47 : vector<8x32xf32> to vector<8x32xbf16>
    %c0_34 = arith.constant 0 : index
    %c0_35 = arith.constant 0 : index
    %c0_36 = arith.constant 0 : index
    %49 = vector.load %arg10[%c0_34, %c0_35, %c0_36] : memref<1x8x32xbf16, #tpu.memory_space<vmem>>, vector<1x8x32xbf16>
    %50 = vector.shape_cast %49 : vector<1x8x32xbf16> to vector<8x32xbf16>
    %51 = vector.shape_cast %48 : vector<8x32xbf16> to vector<1x8x32xbf16>
    tpu.vector_store %arg10[%c0_34, %c0_35, %c0_36], %51 {strides = array<i32>} : memref<1x8x32xbf16, #tpu.memory_space<vmem>>, vector<1x8x32xbf16>,
    return
  }
  func.func @transform_0(%arg0: i32, %arg1: i32) -> (i32, i32, i32, i32) {
    %c0_i32 = arith.constant 0 : i32
    %c0_i32_0 = arith.constant 0 : i32
    %c0_i32_1 = arith.constant 0 : i32
    return %arg0, %c0_i32, %arg1, %c0_i32_0 : i32, i32, i32, i32
  }
  func.func @transform_1(%arg0: i32, %arg1: i32) -> (i32, i32, i32, i32) {
    %c0_i32 = arith.constant 0 : i32
    %c0_i32_0 = arith.constant 0 : i32
    %c0_i32_1 = arith.constant 0 : i32
    %c0_i32_2 = arith.constant 0 : i32
    return %arg0, %c0_i32, %c0_i32_0, %c0_i32_1 : i32, i32, i32, i32
  }
  func.func @transform_2(%arg0: i32, %arg1: i32) -> (i32, i32, i32, i32) {
    %c0_i32 = arith.constant 0 : i32
    %c0_i32_0 = arith.constant 0 : i32
    %c0_i32_1 = arith.constant 0 : i32
    %c0_i32_2 = arith.constant 0 : i32
    return %arg0, %c0_i32, %c0_i32_0, %c0_i32_1 : i32, i32, i32, i32
  }
  func.func @transform_3(%arg0: i32, %arg1: i32) -> (i32, i32, i32, i32) {
    %c0_i32 = arith.constant 0 : i32
    %c0_i32_0 = arith.constant 0 : i32
    %c0_i32_1 = arith.constant 0 : i32
    return %arg0, %c0_i32, %arg1, %c0_i32_0 : i32, i32, i32, i32
  }
  func.func @transform_4(%arg0: i32, %arg1: i32) -> (i32, i32, i32, i32) {
    %c0_i32 = arith.constant 0 : i32
    %c0_i32_0 = arith.constant 0 : i32
    %c0_i32_1 = arith.constant 0 : i32
    return %arg0, %arg1, %c0_i32, %c0_i32_0 : i32, i32, i32, i32
  }
  func.func @transform_5(%arg0: i32, %arg1: i32) -> (i32, i32, i32) {
    %c0_i32 = arith.constant 0 : i32
    %c0_i32_0 = arith.constant 0 : i32
    %c0_i32_1 = arith.constant 0 : i32
    return %arg0, %c0_i32, %c0_i32_0 : i32, i32, i32
  }
  func.func @transform_6(%arg0: i32, %arg1: i32) -> (i32, i32, i32) {
    %c0_i32 = arith.constant 0 : i32
    %c0_i32_0 = arith.constant 0 : i32
    return %arg0, %arg1, %c0_i32 : i32, i32, i32
  }
  func.func @transform_7(%arg0: i32, %arg1: i32) -> (i32, i32, i32) {
    %c0_i32 = arith.constant 0 : i32
    %c0_i32_0 = arith.constant 0 : i32
    return %arg0, %arg1, %c0_i32 : i32, i32, i32
  }
  func.func @transform_8(%arg0: i32, %arg1: i32) -> (i32, i32, i32) {
    %c0_i32 = arith.constant 0 : i32
    %c0_i32_0 = arith.constant 0 : i32
    return %arg0, %arg1, %c0_i32 : i32, i32, i32
  }
}

module attributes {stable_mosaic.version = 11 : i64} {
  func.func @_ipa_attn_kernel(%arg0: i32, %arg1: i32, %arg2: memref<1x4x8x30xf32, #tpu.memory_space<vmem>>, %arg3: memref<1x4x30x8xf32, #tpu.memory_space<vmem>>, %arg4: memref<1x4x8x40xbf16, #tpu.memory_space<vmem>>, %arg5: memref<1x4x8x8xbf16, #tpu.memory_space<vmem>>, %arg6: memref<1x8x8x8xbf16, #tpu.memory_space<vmem>>, %arg7: memref<1x1x8xf32, #tpu.memory_space<vmem>>, %arg8: memref<1x8x1xf32, #tpu.memory_space<vmem>>, %arg9: memref<1x8x160xf32, #tpu.memory_space<vmem>>, %arg10: memref<1x8x32xbf16, #tpu.memory_space<vmem>>) attributes {dimension_semantics = [#tpu.dimension_semantics<parallel>, #tpu.dimension_semantics<parallel>], iteration_bounds = array<i64: 2, 1>, scalar_prefetch = 0 : i64, scratch_operands = 0 : i64, tpu.core_type = #tpu.core_type<tc>, window_params = [{transform_indices = @transform_0, window_bounds = array<i64: 1, 4, 8, 30>}, {transform_indices = @transform_1, window_bounds = array<i64: 1, 4, 30, 8>}, {transform_indices = @transform_2, window_bounds = array<i64: 1, 4, 8, 40>}, {transform_indices = @transform_3, window_bounds = array<i64: 1, 4, 8, 8>}, {transform_indices = @transform_4, window_bounds = array<i64: 1, 8, 8, 8>}, {transform_indices = @transform_5, window_bounds = array<i64: 1, 1, 8>}, {transform_indices = @transform_6, window_bounds = array<i64: 1, 8, 1>}, {transform_indices = @transform_7, window_bounds = array<i64: 1, 8, 160>}, {transform_indices = @transform_8, window_bounds = array<i64: 1, 8, 32>}]} {
    %c0 = arith.constant 0 : index
    %c0_0 = arith.constant 0 : index
    %c0_1 = arith.constant 0 : index
    %c0_2 = arith.constant 0 : index
    %0 = vector.load %arg2[%c0, %c0_0, %c0_1, %c0_2] : memref<1x4x8x30xf32, #tpu.memory_space<vmem>>, vector<1x4x8x30xf32>
    %1 = vector.shape_cast %0 : vector<1x4x8x30xf32> to vector<4x8x30xf32>
    %c0_3 = arith.constant 0 : index
    %c0_4 = arith.constant 0 : index
    %c0_5 = arith.constant 0 : index
    %c0_6 = arith.constant 0 : index
    %2 = vector.load %arg3[%c0_3, %c0_4, %c0_5, %c0_6] : memref<1x4x30x8xf32, #tpu.memory_space<vmem>>, vector<1x4x30x8xf32>
    %3 = vector.shape_cast %2 : vector<1x4x30x8xf32> to vector<4x30x8xf32>
    %c0_7 = arith.constant 0 : index
    %c0_8 = arith.constant 0 : index
    %c0_9 = arith.constant 0 : index
    %c0_10 = arith.constant 0 : index
    %4 = vector.load %arg4[%c0_7, %c0_8, %c0_9, %c0_10] : memref<1x4x8x40xbf16, #tpu.memory_space<vmem>>, vector<1x4x8x40xbf16>
    %5 = vector.shape_cast %4 : vector<1x4x8x40xbf16> to vector<4x8x40xbf16>
    %c0_11 = arith.constant 0 : index
    %c0_12 = arith.constant 0 : index
    %c0_13 = arith.constant 0 : index
    %c0_14 = arith.constant 0 : index
    %6 = vector.load %arg5[%c0_11, %c0_12, %c0_13, %c0_14] : memref<1x4x8x8xbf16, #tpu.memory_space<vmem>>, vector<1x4x8x8xbf16>
    %7 = vector.shape_cast %6 : vector<1x4x8x8xbf16> to vector<4x8x8xbf16>
    %c0_15 = arith.constant 0 : index
    %c0_16 = arith.constant 0 : index
    %c0_17 = arith.constant 0 : index
    %c0_18 = arith.constant 0 : index
    %8 = vector.load %arg6[%c0_15, %c0_16, %c0_17, %c0_18] : memref<1x8x8x8xbf16, #tpu.memory_space<vmem>>, vector<1x8x8x8xbf16>
    %9 = vector.shape_cast %8 : vector<1x8x8x8xbf16> to vector<8x8x8xbf16>
    %c0_19 = arith.constant 0 : index
    %c0_20 = arith.constant 0 : index
    %c0_21 = arith.constant 0 : index
    %10 = vector.load %arg7[%c0_19, %c0_20, %c0_21] : memref<1x1x8xf32, #tpu.memory_space<vmem>>, vector<1x1x8xf32>
    %11 = vector.shape_cast %10 : vector<1x1x8xf32> to vector<1x8xf32>
    %c0_22 = arith.constant 0 : index
    %c0_23 = arith.constant 0 : index
    %c0_24 = arith.constant 0 : index
    %12 = vector.load %arg8[%c0_22, %c0_23, %c0_24] : memref<1x8x1xf32, #tpu.memory_space<vmem>>, vector<1x8x1xf32>
    %13 = vector.shape_cast %12 : vector<1x8x1xf32> to vector<8x1xf32>
    "tpu.trace_start"() <{level = 10 : i32, message = "hqd,hdk->hqk"}> : () -> ()
    %cst = arith.constant dense<0.000000e+00> : vector<4x8x8xf32>
    %14 = tpu.matmul %1, %3, %cst {dimension_numbers = #tpu.dot_dimension_numbers<[2], [1], [1], [2], [0, 0, 0, 1, 1, 2], [0], [0]>} : vector<4x8x30xf32>, vector<4x30x8xf32>, vector<4x8x8xf32> -> vector<4x8x8xf32>
    "tpu.trace_stop"() : () -> ()
    %15 = arith.extf %7 : vector<4x8x8xbf16> to vector<4x8x8xf32>
    %16 = arith.addf %14, %15 : vector<4x8x8xf32>
    %17 = vector.broadcast %13 : vector<8x1xf32> to vector<8x8xf32>
    %18 = vector.broadcast %11 : vector<1x8xf32> to vector<8x8xf32>
    %19 = arith.mulf %17, %18 : vector<8x8xf32>
    %cst_25 = arith.constant 1.000000e+00 : f32
    %20 = vector.broadcast %cst_25 : f32 to vector<8x8xf32>
    %21 = arith.subf %19, %20 : vector<8x8xf32>
    %cst_26 = arith.constant 1.000000e+05 : f32
    %22 = vector.broadcast %cst_26 : f32 to vector<8x8xf32>
    %23 = arith.mulf %21, %22 : vector<8x8xf32>
    %24 = vector.shape_cast %23 : vector<8x8xf32> to vector<1x8x8xf32>
    %25 = vector.broadcast %24 : vector<1x8x8xf32> to vector<4x8x8xf32>
    %26 = arith.addf %16, %25 : vector<4x8x8xf32>
    %cst_27 = arith.constant dense<0xFF800000> : vector<4x8xf32>
    %27 = vector.multi_reduction <maximumf>, %26, %cst_27 [2] : vector<4x8x8xf32> to vector<4x8xf32>
    %28 = vector.shape_cast %27 : vector<4x8xf32> to vector<4x8x1xf32>
    %29 = vector.broadcast %28 : vector<4x8x1xf32> to vector<4x8x8xf32>
    %30 = arith.subf %26, %29 : vector<4x8x8xf32>
    %31 = math.exp %30 : vector<4x8x8xf32>
    %cst_28 = arith.constant dense<0.000000e+00> : vector<4x8xf32>
    %32 = vector.multi_reduction <add>, %31, %cst_28 [2] : vector<4x8x8xf32> to vector<4x8xf32>
    %33 = vector.shape_cast %32 : vector<4x8xf32> to vector<4x8x1xf32>
    %34 = tpu.reciprocal %33 {approx = true} : vector<4x8x1xf32> -> vector<4x8x1xf32>
    %35 = vector.broadcast %34 : vector<4x8x1xf32> to vector<4x8x8xf32>
    %36 = arith.mulf %31, %35 : vector<4x8x8xf32>
    %37 = arith.truncf %36 : vector<4x8x8xf32> to vector<4x8x8xbf16>
    "tpu.trace_start"() <{level = 10 : i32, message = "hqk,hkd->hqd"}> : () -> ()
    %cst_29 = arith.constant dense<0.000000e+00> : vector<4x8x40xf32>
    %38 = tpu.matmul %37, %5, %cst_29 {dimension_numbers = #tpu.dot_dimension_numbers<[2], [1], [1], [2], [0, 0, 0, 1, 1, 2], [0], [0]>} : vector<4x8x8xbf16>, vector<4x8x40xbf16>, vector<4x8x40xf32> -> vector<4x8x40xf32>
    "tpu.trace_stop"() : () -> ()
    %39 = tpu.transpose %38, [1, 0, 2] : vector<4x8x40xf32> -> vector<8x4x40xf32>
    %40 = vector.shape_cast %39 : vector<8x4x40xf32> to vector<8x160xf32>
    %c0_30 = arith.constant 0 : index
    %c0_31 = arith.constant 0 : index
    %c0_32 = arith.constant 0 : index
    %41 = vector.load %arg9[%c0_30, %c0_31, %c0_32] : memref<1x8x160xf32, #tpu.memory_space<vmem>>, vector<1x8x160xf32>
    %42 = vector.shape_cast %41 : vector<1x8x160xf32> to vector<8x160xf32>
    %43 = vector.shape_cast %40 : vector<8x160xf32> to vector<1x8x160xf32>
    tpu.vector_store %arg9[%c0_30, %c0_31, %c0_32], %43 {strides = array<i32>} : memref<1x8x160xf32, #tpu.memory_space<vmem>>, vector<1x8x160xf32>,
    %44 = tpu.transpose %36, [1, 0, 2] : vector<4x8x8xf32> -> vector<8x4x8xf32>
    %45 = arith.truncf %44 : vector<8x4x8xf32> to vector<8x4x8xbf16>
    "tpu.trace_start"() <{level = 10 : i32, message = "qhk,qkc->qhc"}> : () -> ()
    %cst_33 = arith.constant dense<0.000000e+00> : vector<8x4x8xf32>
    %46 = tpu.matmul %45, %9, %cst_33 {dimension_numbers = #tpu.dot_dimension_numbers<[2], [1], [1], [2], [0, 0, 0, 1, 1, 2], [0], [0]>} : vector<8x4x8xbf16>, vector<8x8x8xbf16>, vector<8x4x8xf32> -> vector<8x4x8xf32>
    "tpu.trace_stop"() : () -> ()
    %47 = vector.shape_cast %46 : vector<8x4x8xf32> to vector<8x32xf32>
    %48 = arith.truncf %47 : vector<8x32xf32> to vector<8x32xbf16>
    %c0_34 = arith.constant 0 : index
    %c0_35 = arith.constant 0 : index
    %c0_36 = arith.constant 0 : index
    %49 = vector.load %arg10[%c0_34, %c0_35, %c0_36] : memref<1x8x32xbf16, #tpu.memory_space<vmem>>, vector<1x8x32xbf16>
    %50 = vector.shape_cast %49 : vector<1x8x32xbf16> to vector<8x32xbf16>
    %51 = vector.shape_cast %48 : vector<8x32xbf16> to vector<1x8x32xbf16>
    tpu.vector_store %arg10[%c0_34, %c0_35, %c0_36], %51 {strides = array<i32>} : memref<1x8x32xbf16, #tpu.memory_space<vmem>>, vector<1x8x32xbf16>,
    return
  }
  func.func @transform_0(%arg0: i32, %arg1: i32) -> (i32, i32, i32, i32) {
    %c0_i32 = arith.constant 0 : i32
    %c0_i32_0 = arith.constant 0 : i32
    %c0_i32_1 = arith.constant 0 : i32
    return %arg0, %c0_i32, %arg1, %c0_i32_0 : i32, i32, i32, i32
  }
  func.func @transform_1(%arg0: i32, %arg1: i32) -> (i32, i32, i32, i32) {
    %c0_i32 = arith.constant 0 : i32
    %c0_i32_0 = arith.constant 0 : i32
    %c0_i32_1 = arith.constant 0 : i32
    %c0_i32_2 = arith.constant 0 : i32
    return %arg0, %c0_i32, %c0_i32_0, %c0_i32_1 : i32, i32, i32, i32
  }
  func.func @transform_2(%arg0: i32, %arg1: i32) -> (i32, i32, i32, i32) {
    %c0_i32 = arith.constant 0 : i32
    %c0_i32_0 = arith.constant 0 : i32
    %c0_i32_1 = arith.constant 0 : i32
    %c0_i32_2 = arith.constant 0 : i32
    return %arg0, %c0_i32, %c0_i32_0, %c0_i32_1 : i32, i32, i32, i32
  }
  func.func @transform_3(%arg0: i32, %arg1: i32) -> (i32, i32, i32, i32) {
    %c0_i32 = arith.constant 0 : i32
    %c0_i32_0 = arith.constant 0 : i32
    %c0_i32_1 = arith.constant 0 : i32
    return %arg0, %c0_i32, %arg1, %c0_i32_0 : i32, i32, i32, i32
  }
  func.func @transform_4(%arg0: i32, %arg1: i32) -> (i32, i32, i32, i32) {
    %c0_i32 = arith.constant 0 : i32
    %c0_i32_0 = arith.constant 0 : i32
    %c0_i32_1 = arith.constant 0 : i32
    return %arg0, %arg1, %c0_i32, %c0_i32_0 : i32, i32, i32, i32
  }
  func.func @transform_5(%arg0: i32, %arg1: i32) -> (i32, i32, i32) {
    %c0_i32 = arith.constant 0 : i32
    %c0_i32_0 = arith.constant 0 : i32
    %c0_i32_1 = arith.constant 0 : i32
    return %arg0, %c0_i32, %c0_i32_0 : i32, i32, i32
  }
  func.func @transform_6(%arg0: i32, %arg1: i32) -> (i32, i32, i32) {
    %c0_i32 = arith.constant 0 : i32
    %c0_i32_0 = arith.constant 0 : i32
    return %arg0, %arg1, %c0_i32 : i32, i32, i32
  }
  func.func @transform_7(%arg0: i32, %arg1: i32) -> (i32, i32, i32) {
    %c0_i32 = arith.constant 0 : i32
    %c0_i32_0 = arith.constant 0 : i32
    return %arg0, %arg1, %c0_i32 : i32, i32, i32
  }
  func.func @transform_8(%arg0: i32, %arg1: i32) -> (i32, i32, i32) {
    %c0_i32 = arith.constant 0 : i32
    %c0_i32_0 = arith.constant 0 : i32
    return %arg0, %arg1, %c0_i32 : i32, i32, i32
  }
}

</mosaic_0001>

<llo_original>
// kernel: tpu_custom_call.1
$region0: #{tpu_custom_call.1}
  #allocation0 [shape = 'u32[]', space=smem, size = 0x4, offset = 0x4, fixed_abs, tag = 'smem constant byte address 0x4 - core index']
  #allocation1 [shape = 'u32[144,128]{1,0:T(1,128)}', space=vmem, size = 0x12000, scoped, tag = 'internal scratch']
  %s0 = inlined_call_operand.vmem [shape: f32[2,4,8,30], index: 0, kind: input, shape index: {}]
  %s1 = inlined_call_operand.vmem [shape: f32[2,4,30,8], index: 1, kind: input, shape index: {}]
  %s2 = inlined_call_operand.vmem [shape: bf16[2,4,8,40], index: 2, kind: input, shape index: {}]
  %s3 = inlined_call_operand.vmem [shape: bf16[2,4,8,8], index: 3, kind: input, shape index: {}]
  %s4 = inlined_call_operand.vmem [shape: bf16[2,8,8,8], index: 4, kind: input, shape index: {}]
  %s5 = inlined_call_operand.vmem [shape: f32[2,1,8], index: 5, kind: input, shape index: {}]
  %s6 = inlined_call_operand.vmem [shape: f32[2,8,1], index: 6, kind: input, shape index: {}]
  %s7 = inlined_call_operand.hbm [shape: f32[2,8,160], index: 7, kind: output, shape index: {0}]
  %s8 = inlined_call_operand.hbm [shape: bf16[2,8,32], index: 8, kind: output, shape index: {1}]
  %9 = xla_tuple %s7, %s8
  %s10 = sld [smem:[#allocation0]]
  $region69: #{tpu_custom_call.1} parent=0
    _
  %s12 = ssub.s32 1, %s10
  %s13 = scalar_select 0, %s12, %s10
  $region1: #{tpu_custom_call.1} parent=0
    #allocation2 [shape = 'u8[16384]{0}', space=vmem, size = 0x4000, scoped, tag = 'output window, operand 0']
    #allocation3 [shape = 's32[2]{0}', space=sflag, size = 0x8, scoped, tag = 'scoped memory for tpu_custom_call.1']
    #allocation4 [shape = 'u8[4096]{0}', space=vmem, size = 0x1000, scoped, tag = 'output window, operand 1']
    #allocation5 [shape = 's32[2]{0}', space=sflag, size = 0x8, scoped, tag = 'scoped memory for tpu_custom_call.1']
    %14 = vsyncpa [#allocation3], 0
    %s15 = scalar_lea.sflag [#allocation3], 1
    %16 = vsyncpa %s15, 0
    %17 = vsyncpa [#allocation5], 0
    %s18 = scalar_lea.sflag [#allocation5], 1
    %19 = vsyncpa %s18, 0
    loop: start=0, step=1, limit=4
    $region2: #{tpu_custom_call.1} parent=1 // loop_pre_header
      _
    $region3: #{tpu_custom_call.1} parent=1 // loop_header
      %s21 = sphi 0, %s25
      %p22 = scmp.ge.s32.totalorder %s21, 4
      %s28 = sphi 0, %s40
      %s29 = sphi 0, %s36
      %s30 = sphi 0, %s28
      %s31 = sphi 0, %s29
      %s32 = sphi 0, %s30
      %s33 = sphi 0, %s31
      %s45 = sphi 0, %s47
      %s48 = sphi 0, %s45
      %s49 = sphi 0, %s48
      %s65 = sphi 0, %s49
      %s71 = sphi 0, %s73
      %s74 = sphi 0, %s71
      %s75 = sphi 0, %s74
      %s91 = sphi 0, %s75
      %s97 = sphi 0, %s99
      %s100 = sphi 0, %s97
      %s101 = sphi 0, %s100
      %s117 = sphi 0, %s101
      %s125 = sphi 0, %s127
      %s128 = sphi 0, %s125
      %s129 = sphi 0, %s128
      %s145 = sphi 0, %s129
      %s153 = sphi 0, %s155
      %s156 = sphi 0, %s153
      %s157 = sphi 0, %s156
      %s173 = sphi 0, %s157
      %s179 = sphi 0, %s181
      %s182 = sphi 0, %s179
      %s183 = sphi 0, %s182
      %s199 = sphi 0, %s183
      %s207 = sphi 0, %s209
      %s210 = sphi 0, %s207
      %s211 = sphi 0, %s210
      %s227 = sphi 0, %s211
      %s235 = sphi 0, %s237
      %s238 = sphi 0, %s235
      %s239 = sphi 0, %s238
      %s255 = sphi 0, %s239
      %s263 = sphi 0, %s265
      %s266 = sphi 0, %s263
      %s267 = sphi 0, %s266
      %s283 = sphi 0, %s267
    $region4: #{tpu_custom_call.1} parent=1 // loop_header_branch
      %24 = sbr.rel (%p22) target = $region8
    $region5: #{tpu_custom_call.1} parent=1 // loop_body
      %s26 = ssub.s32 %s21, 1
      %s27 = ssub.s32 %s21, 2
      %s34 = sadd.s32 1, %s29
      %p35 = scmp.ge.s32.totalorder %s34, 1
      %s36 = scalar_select %p35, 0, %s34
      %s37 = sadd.s32 1, %s28
      %s38 = scalar_select %p35, %s37, %s28
      %p39 = scmp.ge.s32.totalorder %s38, 2
      %s40 = scalar_select %p39, 0, %s38
      %s41 = ssub.s32 %s28, %s40
      %s42 = ssub.s32 %s29, %s36
      %s43 = sor.u32 %s41, %s42
      %p44 = scmp.eq.s32.totalorder %s43, 0
      %s46 = sadd.s32 %s45, 1
      %s47 = scalar_select %p44, %s45, %s46
      %p50 = pneg %p44
      %p51 = scmp.eq.s32.totalorder %s21, 1
      %p52 = por %p50, %p51
      %p53 = scmp.ne.s32.totalorder %s45, %s48
      %p54 = scmp.eq.s32.totalorder %s21, 0
      %p55 = por %p53, %p54
      %p56 = scmp.ne.s32.totalorder %s45, %s48
      %p57 = scmp.eq.s32.totalorder %s26, 1
      %p58 = por %p56, %p57
      %p59 = scmp.ne.s32.totalorder %s48, %s49
      %p60 = scmp.eq.s32.totalorder %s26, 0
      %p61 = por %p59, %p60
      %p62 = scmp.ne.s32.totalorder %s48, %s49
      %p63 = scmp.eq.s32.totalorder %s27, 1
      %p64 = por %p62, %p63
      %p66 = scmp.ne.s32.totalorder %s49, %s65
      %p67 = scmp.eq.s32.totalorder %s27, 0
      %p68 = por %p66, %p67
      %s69 = ssub.s32 %s28, %s40
      %p70 = scmp.eq.s32.totalorder %s69, 0
      %s72 = sadd.s32 %s71, 1
      %s73 = scalar_select %p70, %s71, %s72
      %p76 = pneg %p70
      %p77 = scmp.eq.s32.totalorder %s21, 1
      %p78 = por %p76, %p77
      %p79 = scmp.ne.s32.totalorder %s71, %s74
      %p80 = scmp.eq.s32.totalorder %s21, 0
      %p81 = por %p79, %p80
      %p82 = scmp.ne.s32.totalorder %s71, %s74
      %p83 = scmp.eq.s32.totalorder %s26, 1
      %p84 = por %p82, %p83
      %p85 = scmp.ne.s32.totalorder %s74, %s75
      %p86 = scmp.eq.s32.totalorder %s26, 0
      %p87 = por %p85, %p86
      %p88 = scmp.ne.s32.totalorder %s74, %s75
      %p89 = scmp.eq.s32.totalorder %s27, 1
      %p90 = por %p88, %p89
      %p92 = scmp.ne.s32.totalorder %s75, %s91
      %p93 = scmp.eq.s32.totalorder %s27, 0
      %p94 = por %p92, %p93
      %s95 = ssub.s32 %s28, %s40
      %p96 = scmp.eq.s32.totalorder %s95, 0
      %s98 = sadd.s32 %s97, 1
      %s99 = scalar_select %p96, %s97, %s98
      %p102 = pneg %p96
      %p103 = scmp.eq.s32.totalorder %s21, 1
      %p104 = por %p102, %p103
      %p105 = scmp.ne.s32.totalorder %s97, %s100
      %p106 = scmp.eq.s32.totalorder %s21, 0
      %p107 = por %p105, %p106
      %p108 = scmp.ne.s32.totalorder %s97, %s100
      %p109 = scmp.eq.s32.totalorder %s26, 1
      %p110 = por %p108, %p109
      %p111 = scmp.ne.s32.totalorder %s100, %s101
      %p112 = scmp.eq.s32.totalorder %s26, 0
      %p113 = por %p111, %p112
      %p114 = scmp.ne.s32.totalorder %s100, %s101
      %p115 = scmp.eq.s32.totalorder %s27, 1
      %p116 = por %p114, %p115
      %p118 = scmp.ne.s32.totalorder %s101, %s117
      %p119 = scmp.eq.s32.totalorder %s27, 0
      %p120 = por %p118, %p119
      %s121 = ssub.s32 %s28, %s40
      %s122 = ssub.s32 %s29, %s36
      %s123 = sor.u32 %s121, %s122
      %p124 = scmp.eq.s32.totalorder %s123, 0
      %s126 = sadd.s32 %s125, 1
      %s127 = scalar_select %p124, %s125, %s126
      %p130 = pneg %p124
      %p131 = scmp.eq.s32.totalorder %s21, 1
      %p132 = por %p130, %p131
      %p133 = scmp.ne.s32.totalorder %s125, %s128
      %p134 = scmp.eq.s32.totalorder %s21, 0
      %p135 = por %p133, %p134
      %p136 = scmp.ne.s32.totalorder %s125, %s128
      %p137 = scmp.eq.s32.totalorder %s26, 1
      %p138 = por %p136, %p137
      %p139 = scmp.ne.s32.totalorder %s128, %s129
      %p140 = scmp.eq.s32.totalorder %s26, 0
      %p141 = por %p139, %p140
      %p142 = scmp.ne.s32.totalorder %s128, %s129
      %p143 = scmp.eq.s32.totalorder %s27, 1
      %p144 = por %p142, %p143
      %p146 = scmp.ne.s32.totalorder %s129, %s145
      %p147 = scmp.eq.s32.totalorder %s27, 0
      %p148 = por %p146, %p147
      %s149 = ssub.s32 %s28, %s40
      %s150 = ssub.s32 %s29, %s36
      %s151 = sor.u32 %s149, %s150
      %p152 = scmp.eq.s32.totalorder %s151, 0
      %s154 = sadd.s32 %s153, 1
      %s155 = scalar_select %p152, %s153, %s154
      %p158 = pneg %p152
      %p159 = scmp.eq.s32.totalorder %s21, 1
      %p160 = por %p158, %p159
      %p161 = scmp.ne.s32.totalorder %s153, %s156
      %p162 = scmp.eq.s32.totalorder %s21, 0
      %p163 = por %p161, %p162
      %p164 = scmp.ne.s32.totalorder %s153, %s156
      %p165 = scmp.eq.s32.totalorder %s26, 1
      %p166 = por %p164, %p165
      %p167 = scmp.ne.s32.totalorder %s156, %s157
      %p168 = scmp.eq.s32.totalorder %s26, 0
      %p169 = por %p167, %p168
      %p170 = scmp.ne.s32.totalorder %s156, %s157
      %p171 = scmp.eq.s32.totalorder %s27, 1
      %p172 = por %p170, %p171
      %p174 = scmp.ne.s32.totalorder %s157, %s173
      %p175 = scmp.eq.s32.totalorder %s27, 0
      %p176 = por %p174, %p175
      %s177 = ssub.s32 %s28, %s40
      %p178 = scmp.eq.s32.totalorder %s177, 0
      %s180 = sadd.s32 %s179, 1
      %s181 = scalar_select %p178, %s179, %s180
      %p184 = pneg %p178
      %p185 = scmp.eq.s32.totalorder %s21, 1
      %p186 = por %p184, %p185
      %p187 = scmp.ne.s32.totalorder %s179, %s182
      %p188 = scmp.eq.s32.totalorder %s21, 0
      %p189 = por %p187, %p188
      %p190 = scmp.ne.s32.totalorder %s179, %s182
      %p191 = scmp.eq.s32.totalorder %s26, 1
      %p192 = por %p190, %p191
      %p193 = scmp.ne.s32.totalorder %s182, %s183
      %p194 = scmp.eq.s32.totalorder %s26, 0
      %p195 = por %p193, %p194
      %p196 = scmp.ne.s32.totalorder %s182, %s183
      %p197 = scmp.eq.s32.totalorder %s27, 1
      %p198 = por %p196, %p197
      %p200 = scmp.ne.s32.totalorder %s183, %s199
      %p201 = scmp.eq.s32.totalorder %s27, 0
      %p202 = por %p200, %p201
      %s203 = ssub.s32 %s28, %s40
      %s204 = ssub.s32 %s29, %s36
      %s205 = sor.u32 %s203, %s204
      %p206 = scmp.eq.s32.totalorder %s205, 0
      %s208 = sadd.s32 %s207, 1
      %s209 = scalar_select %p206, %s207, %s208
      %p212 = pneg %p206
      %p213 = scmp.eq.s32.totalorder %s21, 1
      %p214 = por %p212, %p213
      %p215 = scmp.ne.s32.totalorder %s207, %s210
      %p216 = scmp.eq.s32.totalorder %s21, 0
      %p217 = por %p215, %p216
      %p218 = scmp.ne.s32.totalorder %s207, %s210
      %p219 = scmp.eq.s32.totalorder %s26, 1
      %p220 = por %p218, %p219
      %p221 = scmp.ne.s32.totalorder %s210, %s211
      %p222 = scmp.eq.s32.totalorder %s26, 0
      %p223 = por %p221, %p222
      %p224 = scmp.ne.s32.totalorder %s210, %s211
      %p225 = scmp.eq.s32.totalorder %s27, 1
      %p226 = por %p224, %p225
      %p228 = scmp.ne.s32.totalorder %s211, %s227
      %p229 = scmp.eq.s32.totalorder %s27, 0
      %p230 = por %p228, %p229
      %s231 = ssub.s32 %s28, %s40
      %s232 = ssub.s32 %s29, %s36
      %s233 = sor.u32 %s231, %s232
      %p234 = scmp.eq.s32.totalorder %s233, 0
      %s236 = sadd.s32 %s235, 1
      %s237 = scalar_select %p234, %s235, %s236
      %p240 = pneg %p234
      %p241 = scmp.eq.s32.totalorder %s21, 1
      %p242 = por %p240, %p241
      %p243 = scmp.ne.s32.totalorder %s235, %s238
      %p244 = scmp.eq.s32.totalorder %s21, 0
      %p245 = por %p243, %p244
      %p246 = scmp.ne.s32.totalorder %s235, %s238
      %p247 = scmp.eq.s32.totalorder %s26, 1
      %p248 = por %p246, %p247
      %p249 = scmp.ne.s32.totalorder %s238, %s239
      %p250 = scmp.eq.s32.totalorder %s26, 0
      %p251 = por %p249, %p250
      %p252 = scmp.ne.s32.totalorder %s238, %s239
      %p253 = scmp.eq.s32.totalorder %s27, 1
      %p254 = por %p252, %p253
      %p256 = scmp.ne.s32.totalorder %s239, %s255
      %p257 = scmp.eq.s32.totalorder %s27, 0
      %p258 = por %p256, %p257
      %s259 = ssub.s32 %s28, %s40
      %s260 = ssub.s32 %s29, %s36
      %s261 = sor.u32 %s259, %s260
      %p262 = scmp.eq.s32.totalorder %s261, 0
      %s264 = sadd.s32 %s263, 1
      %s265 = scalar_select %p262, %s263, %s264
      %p268 = pneg %p262
      %p269 = scmp.eq.s32.totalorder %s21, 1
      %p270 = por %p268, %p269
      %p271 = scmp.ne.s32.totalorder %s263, %s266
      %p272 = scmp.eq.s32.totalorder %s21, 0
      %p273 = por %p271, %p272
      %p274 = scmp.ne.s32.totalorder %s263, %s266
      %p275 = scmp.eq.s32.totalorder %s26, 1
      %p276 = por %p274, %p275
      %p277 = scmp.ne.s32.totalorder %s266, %s267
      %p278 = scmp.eq.s32.totalorder %s26, 0
      %p279 = por %p277, %p278
      %p280 = scmp.ne.s32.totalorder %s266, %s267
      %p281 = scmp.eq.s32.totalorder %s27, 1
      %p282 = por %p280, %p281
      %p284 = scmp.ne.s32.totalorder %s267, %s283
      %p285 = scmp.eq.s32.totalorder %s27, 0
      %p286 = por %p284, %p285
      %p287 = scmp.le.s32.totalorder 1, %s21
      %p288 = scmp.lt.s32.totalorder %s21, 3
      %p289 = pnand %p287, %p288
      %p290 = pneg %p289
      // Predicated region
      $region9: #{tpu_custom_call.1} parent=5 // pred_check
        _
      $region10: #{tpu_custom_call.1} parent=5 // pred_check_branch
        %292 = sbr.rel (%p289) target = $region12
      $region11: #{tpu_custom_call.1} parent=5 // pred_region
        %s293 = ssub.s32 %s21, 1
        // Predicated region
        $region13: #{tpu_custom_call.1} parent=11 // pred_check
          %p294 = pneg %p87
        $region14: #{tpu_custom_call.1} parent=11 // pred_check_branch
          %296 = sbr.rel (%p294) target = $region16
        $region15: #{tpu_custom_call.1} parent=11 // pred_region
          %p297 = scmp.lt.s32.totalorder %s30, 1
          %s298 = scalar_select %p297, %s30, 1
          %s299 = smul.addr %s298, 16
          %s300 = smul.addr %s299, 8
          %s301 = scalar_lea.vmem %s1, %s300
        $region16: #{tpu_custom_call.1} parent=11 // pred_fallthru
          _
        // Predicated region
        $region17: #{tpu_custom_call.1} parent=11 // pred_check
          %p302 = pneg %p113
        $region18: #{tpu_custom_call.1} parent=11 // pred_check_branch
          %304 = sbr.rel (%p302) target = $region20
        $region19: #{tpu_custom_call.1} parent=11 // pred_region
          %p305 = scmp.lt.s32.totalorder %s30, 1
          %s306 = scalar_select %p305, %s30, 1
          %s307 = smul.addr %s306, 4
          %s308 = smul.addr %s307, 4
          %s309 = scalar_lea.vmem %s2, %s308
        $region20: #{tpu_custom_call.1} parent=11 // pred_fallthru
          _
        // Predicated region
        $region21: #{tpu_custom_call.1} parent=11 // pred_check
          %p310 = pneg %p195
        $region22: #{tpu_custom_call.1} parent=11 // pred_check_branch
          %312 = sbr.rel (%p310) target = $region24
        $region23: #{tpu_custom_call.1} parent=11 // pred_region
          %p313 = scmp.lt.s32.totalorder %s30, 1
          %s314 = scalar_select %p313, %s30, 1
          %s315 = scalar_lea.vmem %s5, %s314
        $region24: #{tpu_custom_call.1} parent=11 // pred_fallthru
          _
      $region12: #{tpu_custom_call.1} parent=5 // pred_fallthru
        _
      %p316 = scmp.lt.s32.totalorder %s21, 2
      // Predicated region
      $region25: #{tpu_custom_call.1} parent=5 // pred_check
        %p317 = pneg %p316
      $region26: #{tpu_custom_call.1} parent=5 // pred_check_branch
        %319 = sbr.rel (%p317) target = $region28
      $region27: #{tpu_custom_call.1} parent=5 // pred_region
        // Predicated region
        $region29: #{tpu_custom_call.1} parent=27 // pred_check
          %p320 = pneg %p55
        $region30: #{tpu_custom_call.1} parent=27 // pred_check_branch
          %322 = sbr.rel (%p320) target = $region32
        $region31: #{tpu_custom_call.1} parent=27 // pred_region
          %p323 = scmp.lt.s32.totalorder %s28, 1
          %s324 = scalar_select %p323, %s28, 1
          %p325 = scmp.lt.s32.totalorder %s29, 0
          %s326 = scalar_select %p325, %s29, 0
          %s327 = smul.addr %s324, 4
          %s328 = sadd.s32 %s326, %s327
          %s329 = smul.addr %s328, 8
          %s330 = scalar_lea.vmem %s0, %s329
        $region32: #{tpu_custom_call.1} parent=27 // pred_fallthru
          _
        // Predicated region
        $region33: #{tpu_custom_call.1} parent=27 // pred_check
          %p331 = pneg %p135
        $region34: #{tpu_custom_call.1} parent=27 // pred_check_branch
          %333 = sbr.rel (%p331) target = $region36
        $region35: #{tpu_custom_call.1} parent=27 // pred_region
          %p334 = scmp.lt.s32.totalorder %s28, 1
          %s335 = scalar_select %p334, %s28, 1
          %p336 = scmp.lt.s32.totalorder %s29, 0
          %s337 = scalar_select %p336, %s29, 0
          %s338 = smul.addr %s335, 4
          %s339 = sadd.s32 %s337, %s338
          %s340 = smul.addr %s339, 4
          %s341 = scalar_lea.vmem %s3, %s340
        $region36: #{tpu_custom_call.1} parent=27 // pred_fallthru
          _
        // Predicated region
        $region37: #{tpu_custom_call.1} parent=27 // pred_check
          %p342 = pneg %p163
        $region38: #{tpu_custom_call.1} parent=27 // pred_check_branch
          %344 = sbr.rel (%p342) target = $region40
        $region39: #{tpu_custom_call.1} parent=27 // pred_region
          %s345 = smul.u32 8, %s29
          %p346 = scmp.lt.s32.totalorder %s28, 1
          %s347 = scalar_select %p346, %s28, 1
          %p348 = scmp.lt.s32.totalorder %s345, 7
          %s349 = scalar_select %p348, %s345, 7
          %s350 = smul.addr %s347, 8
          %s351 = sadd.s32 %s349, %s350
          %s352 = smul.addr %s351, 4
          %s353 = scalar_lea.vmem %s4, %s352
          %s354 = smul.u32 8, %s29
        $region40: #{tpu_custom_call.1} parent=27 // pred_fallthru
          _
        // Predicated region
        $region41: #{tpu_custom_call.1} parent=27 // pred_check
          %p355 = pneg %p217
        $region42: #{tpu_custom_call.1} parent=27 // pred_check_branch
          %357 = sbr.rel (%p355) target = $region44
        $region43: #{tpu_custom_call.1} parent=27 // pred_region
          %p358 = scmp.lt.s32.totalorder %s28, 1
          %s359 = scalar_select %p358, %s28, 1
          %p360 = scmp.lt.s32.totalorder %s29, 0
          %s361 = scalar_select %p360, %s29, 0
          %s362 = sadd.s32 %s361, %s359
          %s363 = smul.addr %s362, 8
          %s364 = scalar_lea.vmem %s6, %s363
        $region44: #{tpu_custom_call.1} parent=27 // pred_fallthru
          _
      $region28: #{tpu_custom_call.1} parent=5 // pred_fallthru
        _
      %p365 = scmp.le.s32.totalorder 1, %s21
      %p366 = scmp.lt.s32.totalorder %s21, 3
      %p367 = pnand %p365, %p366
      %p368 = pneg %p367
      // Predicated region
      $region45: #{tpu_custom_call.1} parent=5 // pred_check
        _
      $region46: #{tpu_custom_call.1} parent=5 // pred_check_branch
        %370 = sbr.rel (%p367) target = $region48
      $region47: #{tpu_custom_call.1} parent=5 // pred_region
        %s371 = ssub.s32 %s21, 1
        %p372 = scmp.lt.s32.totalorder %s30, 1
        %s373 = scalar_select %p372, %s30, 1
        %p374 = scmp.lt.s32.totalorder %s31, 0
        %s375 = scalar_select %p374, %s31, 0
        %s376 = smul.addr %s373, 4
        %s377 = sadd.s32 %s375, %s376
        %s378 = smul.addr %s377, 8
        %s379 = scalar_lea.vmem %s0, %s378
        %p380 = pneg %p61
        %p381 = pneg %p58
        %p382 = scmp.lt.s32.totalorder %s30, 1
        %s383 = scalar_select %p382, %s30, 1
        %s384 = smul.addr %s383, 16
        %s385 = smul.addr %s384, 8
        %s386 = scalar_lea.vmem %s1, %s385
        %p387 = pneg %p87
        %p388 = pneg %p84
        %p389 = scmp.lt.s32.totalorder %s30, 1
        %s390 = scalar_select %p389, %s30, 1
        %s391 = smul.addr %s390, 4
        %s392 = smul.addr %s391, 4
        %s393 = scalar_lea.vmem %s2, %s392
        %p394 = pneg %p113
        %p395 = pneg %p110
        %p396 = scmp.lt.s32.totalorder %s30, 1
        %s397 = scalar_select %p396, %s30, 1
        %p398 = scmp.lt.s32.totalorder %s31, 0
        %s399 = scalar_select %p398, %s31, 0
        %s400 = smul.addr %s397, 4
        %s401 = sadd.s32 %s399, %s400
        %s402 = smul.addr %s401, 4
        %s403 = scalar_lea.vmem %s3, %s402
        %p404 = pneg %p141
        %p405 = pneg %p138
        %s406 = smul.u32 8, %s31
        %p407 = scmp.lt.s32.totalorder %s30, 1
        %s408 = scalar_select %p407, %s30, 1
        %p409 = scmp.lt.s32.totalorder %s406, 7
        %s410 = scalar_select %p409, %s406, 7
        %s411 = smul.addr %s408, 8
        %s412 = sadd.s32 %s410, %s411
        %s413 = smul.addr %s412, 4
        %s414 = scalar_lea.vmem %s4, %s413
        %p415 = pneg %p169
        %p416 = pneg %p166
        %p417 = scmp.lt.s32.totalorder %s30, 1
        %s418 = scalar_select %p417, %s30, 1
        %s419 = scalar_lea.vmem %s5, %s418
        %p420 = pneg %p195
        %p421 = pneg %p192
        %p422 = scmp.lt.s32.totalorder %s30, 1
        %s423 = scalar_select %p422, %s30, 1
        %p424 = scmp.lt.s32.totalorder %s31, 0
        %s425 = scalar_select %p424, %s31, 0
        %s426 = sadd.s32 %s425, %s423
        %s427 = smul.addr %s426, 8
        %s428 = scalar_lea.vmem %s6, %s427
        %p429 = pneg %p223
        %p430 = pneg %p220
        %p431 = pneg %p251
        %p432 = pneg %p248
        %s433 = sand.u32 %s238, 1
        %s434 = scalar_lea.sflag [#allocation3], %s433
        %s435 = sand.u32 %s238, 1
        %s436 = smul.addr %s435, 16
        %s437 = scalar_lea.vmem [#allocation2], %s436
        %p438 = pneg %p279
        %p439 = pneg %p276
        %s440 = sand.u32 %s266, 1
        %s441 = scalar_lea.sflag [#allocation5], %s440
        %s442 = sand.u32 %s266, 1
        %s443 = smul.addr %s442, 4
        %s444 = scalar_lea.vmem [#allocation4], %s443
        %p445 = scmp.lt.s32.totalorder %s30, 1
        %s446 = scalar_select %p445, %s30, 1
        %p447 = scmp.lt.s32.totalorder %s31, 0
        %s448 = scalar_select %p447, %s31, 0
        %s449 = smul.addr %s446, 4
        %s450 = sadd.s32 %s448, %s449
        %s451 = smul.addr %s450, 8
        %s452 = scalar_lea.vmem %s0, %s451
        %p453 = scmp.lt.s32.totalorder %s30, 1
        %s454 = scalar_select %p453, %s30, 1
        %s455 = smul.addr %s454, 16
        %s456 = smul.addr %s455, 8
        %s457 = scalar_lea.vmem %s1, %s456
        %p458 = scmp.lt.s32.totalorder %s30, 1
        %s459 = scalar_select %p458, %s30, 1
        %s460 = smul.addr %s459, 4
        %s461 = smul.addr %s460, 4
        %s462 = scalar_lea.vmem %s2, %s461
        %p463 = scmp.lt.s32.totalorder %s30, 1
        %s464 = scalar_select %p463, %s30, 1
        %p465 = scmp.lt.s32.totalorder %s31, 0
        %s466 = scalar_select %p465, %s31, 0
        %s467 = smul.addr %s464, 4
        %s468 = sadd.s32 %s466, %s467
        %s469 = smul.addr %s468, 4
        %s470 = scalar_lea.vmem %s3, %s469
        %s471 = smul.u32 8, %s31
        %p472 = scmp.lt.s32.totalorder %s30, 1
        %s473 = scalar_select %p472, %s30, 1
        %p474 = scmp.lt.s32.totalorder %s471, 7
        %s475 = scalar_select %p474, %s471, 7
        %s476 = smul.addr %s473, 8
        %s477 = sadd.s32 %s475, %s476
        %s478 = smul.addr %s477, 4
        %s479 = scalar_lea.vmem %s4, %s478
        %s480 = smul.u32 8, %s31
        %p481 = scmp.lt.s32.totalorder %s30, 1
        %s482 = scalar_select %p481, %s30, 1
        %s483 = scalar_lea.vmem %s5, %s482
        %p484 = scmp.lt.s32.totalorder %s30, 1
        %s485 = scalar_select %p484, %s30, 1
        %p486 = scmp.lt.s32.totalorder %s31, 0
        %s487 = scalar_select %p486, %s31, 0
        %s488 = sadd.s32 %s487, %s485
        %s489 = smul.addr %s488, 8
        %s490 = scalar_lea.vmem %s6, %s489
        %v492 = vld [vmem:[%s452] sm:$0xff]
        %v493 = vld [vmem:[%s452 + $0x8] sm:$0xff]
        %v494 = vld [vmem:[%s452 + $0x10] sm:$0xff]
        %v495 = vld [vmem:[%s452 + $0x18] sm:$0xff]
        %v496 = vld [vmem:[%s457] sm:$0xff]
        %v497 = vld [vmem:[%s457 + $0x8] sm:$0xff]
        %v498 = vld [vmem:[%s457 + $0x10] sm:$0xff]
        %v499 = vld [vmem:[%s457 + $0x18] sm:$0x3f]
        %v500 = vld [vmem:[%s457 + $0x20] sm:$0xff]
        %v501 = vld [vmem:[%s457 + $0x28] sm:$0xff]
        %v502 = vld [vmem:[%s457 + $0x30] sm:$0xff]
        %v503 = vld [vmem:[%s457 + $0x38] sm:$0x3f]
        %v504 = vld [vmem:[%s457 + $0x40] sm:$0xff]
        %v505 = vld [vmem:[%s457 + $0x48] sm:$0xff]
        %v506 = vld [vmem:[%s457 + $0x50] sm:$0xff]
        %v507 = vld [vmem:[%s457 + $0x58] sm:$0x3f]
        %v508 = vld [vmem:[%s457 + $0x60] sm:$0xff]
        %v509 = vld [vmem:[%s457 + $0x68] sm:$0xff]
        %v510 = vld [vmem:[%s457 + $0x70] sm:$0xff]
        %v511 = vld [vmem:[%s457 + $0x78] sm:$0x3f]
        %v512 = vld [vmem:[%s462] sm:$0xf]
        %v513 = vld [vmem:[%s462 + $0x4] sm:$0xf]
        %v514 = vld [vmem:[%s462 + $0x8] sm:$0xf]
        %v515 = vld [vmem:[%s462 + $0xc] sm:$0xf]
        %v516 = vld [vmem:[%s470] sm:$0xf]
        %v517 = vld [vmem:[%s470 + $0x4] sm:$0xf]
        %v518 = vld [vmem:[%s470 + $0x8] sm:$0xf]
        %v519 = vld [vmem:[%s470 + $0xc] sm:$0xf]
        %v520 = vld [vmem:[%s479] sm:$0xf]
        %v521 = vld [vmem:[%s479 + $0x4] sm:$0xf]
        %v522 = vld [vmem:[%s479 + $0x8] sm:$0xf]
        %v523 = vld [vmem:[%s479 + $0xc] sm:$0xf]
        %v524 = vld [vmem:[%s479 + $0x10] sm:$0xf]
        %v525 = vld [vmem:[%s479 + $0x14] sm:$0xf]
        %v526 = vld [vmem:[%s479 + $0x18] sm:$0xf]
        %v527 = vld [vmem:[%s479 + $0x1c] sm:$0xf]
        %v528 = vld [vmem:[%s483] sm:$0x1]
        %v529 = vld [vmem:[%s490] sm:$0xff]
        %v530 = vunpack.c.l.bf16 %v516
        %v531 = vunpack.c.l.bf16 %v517
        %v532 = vunpack.c.l.bf16 %v518
        %v533 = vunpack.c.l.bf16 %v519
        %vm534 = vcmask 244736
        %v536 = vsel %vm534, %v492, 0
        %vm538 = vcmask 1045504
        %v540 = vsel %vm538, %v499, 0
        %542 = vmatprep.subr.mxu0 0.0
        %543 = vmatpush1.msra.mxu0 0.0
        %544 = vmatprep.subr.mxu0 0.0
        %545 = vmatpush1.msra.mxu0 0.0
        %546 = vmatprep.subr.mxu0 0.0
        %547 = vmatpush1.msra.mxu0 0.0
        %548 = vmatprep.subr.mxu0 0.0
        %549 = vmatpush1.msra.mxu0 0.0
        %550 = vmatprep.subr.mxu0 0.0
        %551 = vmatpush1.msra.mxu0 0.0
        %552 = vmatprep.subr.mxu0 0.0
        %553 = vmatpush1.msra.mxu0 0.0
        %554 = vmatprep.subr.mxu0 0.0
        %555 = vmatpush1.msra.mxu0 0.0
        %556 = vmatprep.subr.mxu0 0.0
        %557 = vmatpush1.msra.mxu0 0.0
        %558 = vmatprep.subr.mxu0 0.0
        %559 = vmatpush1.msra.mxu0 0.0
        %560 = vmatprep.subr.mxu0 0.0
        %561 = vmatpush1.msra.mxu0 0.0
        %562 = vmatprep.subr.mxu0 0.0
        %563 = vmatpush1.msra.mxu0 0.0
        %564 = vmatprep.subr.mxu0 0.0
        %565 = vmatpush1.msra.mxu0 0.0
        %566 = vmatprep.subr.mxu0 0.0
        %567 = vmatpush1.msra.mxu0 %v540
        %568 = vmatprep.subr.mxu0 0.0
        %569 = vmatpush1.msra.mxu0 %v498
        %570 = vmatprep.subr.mxu0 0.0
        %571 = vmatpush1.msra.mxu0 %v497
        %572 = vmatprep.subr.mxu0 0.0
        %573 = vmatpush1.msra.mxu0 %v496
        %574 = vmatprep.subr.mxu0 0.0
        %575 = vmatpush2.msra.mxu0 0.0
        %576 = vmatprep.subr.mxu0 0.0
        %577 = vmatpush2.msra.mxu0 0.0
        %578 = vmatprep.subr.mxu0 0.0
        %579 = vmatpush2.msra.mxu0 0.0
        %580 = vmatprep.subr.mxu0 0.0
        %581 = vmatpush2.msra.mxu0 0.0
        %582 = vmatprep.subr.mxu0 0.0
        %583 = vmatpush2.msra.mxu0 0.0
        %584 = vmatprep.subr.mxu0 0.0
        %585 = vmatpush2.msra.mxu0 0.0
        %586 = vmatprep.subr.mxu0 0.0
        %587 = vmatpush2.msra.mxu0 0.0
        %588 = vmatprep.subr.mxu0 0.0
        %589 = vmatpush2.msra.mxu0 0.0
        %590 = vmatprep.subr.mxu0 0.0
        %591 = vmatpush2.msra.mxu0 0.0
        %592 = vmatprep.subr.mxu0 0.0
        %593 = vmatpush2.msra.mxu0 0.0
        %594 = vmatprep.subr.mxu0 0.0
        %595 = vmatpush2.msra.mxu0 0.0
        %596 = vmatprep.subr.mxu0 0.0
        %597 = vmatpush2.msra.mxu0 0.0
        %598 = vmatprep.subr.mxu0 0.0
        %599 = vmatpush2.msra.mxu0 0.0
        %600 = vmatprep.subr.mxu0 0.0
        %601 = vmatpush2.msra.mxu0 0.0
        %602 = vmatprep.subr.mxu0 0.0
        %603 = vmatpush2.msra.mxu0 0.0
        %604 = vmatprep.subr.mxu0 0.0
        %605 = vmatpush2.msra.mxu0 0.0
        %606 = vmatprep.mubr.f32.mxu0 0.0
        %607 = vmatmul.mubr.f32.gmra.mxu0 %v536
        %v608 = vpop.f32.mrf.mxu0
        %v609 = vadd.f32 %v530, %v608
        %v610 = vpop.f32.mrf.mxu0
        %611 = vdwg.mxu0
        %v613 = vsel %vm534, %v493, 0
        %v616 = vsel %vm538, %v503, 0
        %618 = vmatprep.subr.mxu0 0.0
        %619 = vmatpush1.msra.mxu0 0.0
        %620 = vmatprep.subr.mxu0 0.0
        %621 = vmatpush1.msra.mxu0 0.0
        %622 = vmatprep.subr.mxu0 0.0
        %623 = vmatpush1.msra.mxu0 0.0
        %624 = vmatprep.subr.mxu0 0.0
        %625 = vmatpush1.msra.mxu0 0.0
        %626 = vmatprep.subr.mxu0 0.0
        %627 = vmatpush1.msra.mxu0 0.0
        %628 = vmatprep.subr.mxu0 0.0
        %629 = vmatpush1.msra.mxu0 0.0
        %630 = vmatprep.subr.mxu0 0.0
        %631 = vmatpush1.msra.mxu0 0.0
        %632 = vmatprep.subr.mxu0 0.0
        %633 = vmatpush1.msra.mxu0 0.0
        %634 = vmatprep.subr.mxu0 0.0
        %635 = vmatpush1.msra.mxu0 0.0
        %636 = vmatprep.subr.mxu0 0.0
        %637 = vmatpush1.msra.mxu0 0.0
        %638 = vmatprep.subr.mxu0 0.0
        %639 = vmatpush1.msra.mxu0 0.0
        %640 = vmatprep.subr.mxu0 0.0
        %641 = vmatpush1.msra.mxu0 0.0
        %642 = vmatprep.subr.mxu0 0.0
        %643 = vmatpush1.msra.mxu0 %v616
        %644 = vmatprep.subr.mxu0 0.0
        %645 = vmatpush1.msra.mxu0 %v502
        %646 = vmatprep.subr.mxu0 0.0
        %647 = vmatpush1.msra.mxu0 %v501
        %648 = vmatprep.subr.mxu0 0.0
        %649 = vmatpush1.msra.mxu0 %v500
        %650 = vmatprep.subr.mxu0 0.0
        %651 = vmatpush2.msra.mxu0 0.0
        %652 = vmatprep.subr.mxu0 0.0
        %653 = vmatpush2.msra.mxu0 0.0
        %654 = vmatprep.subr.mxu0 0.0
        %655 = vmatpush2.msra.mxu0 0.0
        %656 = vmatprep.subr.mxu0 0.0
        %657 = vmatpush2.msra.mxu0 0.0
        %658 = vmatprep.subr.mxu0 0.0
        %659 = vmatpush2.msra.mxu0 0.0
        %660 = vmatprep.subr.mxu0 0.0
        %661 = vmatpush2.msra.mxu0 0.0
        %662 = vmatprep.subr.mxu0 0.0
        %663 = vmatpush2.msra.mxu0 0.0
        %664 = vmatprep.subr.mxu0 0.0
        %665 = vmatpush2.msra.mxu0 0.0
        %666 = vmatprep.subr.mxu0 0.0
        %667 = vmatpush2.msra.mxu0 0.0
        %668 = vmatprep.subr.mxu0 0.0
        %669 = vmatpush2.msra.mxu0 0.0
        %670 = vmatprep.subr.mxu0 0.0
        %671 = vmatpush2.msra.mxu0 0.0
        %672 = vmatprep.subr.mxu0 0.0
        %673 = vmatpush2.msra.mxu0 0.0
        %674 = vmatprep.subr.mxu0 0.0
        %675 = vmatpush2.msra.mxu0 0.0
        %676 = vmatprep.subr.mxu0 0.0
        %677 = vmatpush2.msra.mxu0 0.0
        %678 = vmatprep.subr.mxu0 0.0
        %679 = vmatpush2.msra.mxu0 0.0
        %680 = vmatprep.subr.mxu0 0.0
        %681 = vmatpush2.msra.mxu0 0.0
        %682 = vmatprep.mubr.f32.mxu0 0.0
        %683 = vmatmul.mubr.f32.gmra.mxu0 %v613
        %v684 = vpop.f32.mrf.mxu0
        %v685 = vadd.f32 %v531, %v684
        %v686 = vpop.f32.mrf.mxu0
        %687 = vdwg.mxu0
        %v689 = vsel %vm534, %v494, 0
        %v692 = vsel %vm538, %v507, 0
        %694 = vmatprep.subr.mxu0 0.0
        %695 = vmatpush1.msra.mxu0 0.0
        %696 = vmatprep.subr.mxu0 0.0
        %697 = vmatpush1.msra.mxu0 0.0
        %698 = vmatprep.subr.mxu0 0.0
        %699 = vmatpush1.msra.mxu0 0.0
        %700 = vmatprep.subr.mxu0 0.0
        %701 = vmatpush1.msra.mxu0 0.0
        %702 = vmatprep.subr.mxu0 0.0
        %703 = vmatpush1.msra.mxu0 0.0
        %704 = vmatprep.subr.mxu0 0.0
        %705 = vmatpush1.msra.mxu0 0.0
        %706 = vmatprep.subr.mxu0 0.0
        %707 = vmatpush1.msra.mxu0 0.0
        %708 = vmatprep.subr.mxu0 0.0
        %709 = vmatpush1.msra.mxu0 0.0
        %710 = vmatprep.subr.mxu0 0.0
        %711 = vmatpush1.msra.mxu0 0.0
        %712 = vmatprep.subr.mxu0 0.0
        %713 = vmatpush1.msra.mxu0 0.0
        %714 = vmatprep.subr.mxu0 0.0
        %715 = vmatpush1.msra.mxu0 0.0
        %716 = vmatprep.subr.mxu0 0.0
        %717 = vmatpush1.msra.mxu0 0.0
        %718 = vmatprep.subr.mxu0 0.0
        %719 = vmatpush1.msra.mxu0 %v692
        %720 = vmatprep.subr.mxu0 0.0
        %721 = vmatpush1.msra.mxu0 %v506
        %722 = vmatprep.subr.mxu0 0.0
        %723 = vmatpush1.msra.mxu0 %v505
        %724 = vmatprep.subr.mxu0 0.0
        %725 = vmatpush1.msra.mxu0 %v504
        %726 = vmatprep.subr.mxu0 0.0
        %727 = vmatpush2.msra.mxu0 0.0
        %728 = vmatprep.subr.mxu0 0.0
        %729 = vmatpush2.msra.mxu0 0.0
        %730 = vmatprep.subr.mxu0 0.0
        %731 = vmatpush2.msra.mxu0 0.0
        %732 = vmatprep.subr.mxu0 0.0
        %733 = vmatpush2.msra.mxu0 0.0
        %734 = vmatprep.subr.mxu0 0.0
        %735 = vmatpush2.msra.mxu0 0.0
        %736 = vmatprep.subr.mxu0 0.0
        %737 = vmatpush2.msra.mxu0 0.0
        %738 = vmatprep.subr.mxu0 0.0
        %739 = vmatpush2.msra.mxu0 0.0
        %740 = vmatprep.subr.mxu0 0.0
        %741 = vmatpush2.msra.mxu0 0.0
        %742 = vmatprep.subr.mxu0 0.0
        %743 = vmatpush2.msra.mxu0 0.0
        %744 = vmatprep.subr.mxu0 0.0
        %745 = vmatpush2.msra.mxu0 0.0
        %746 = vmatprep.subr.mxu0 0.0
        %747 = vmatpush2.msra.mxu0 0.0
        %748 = vmatprep.subr.mxu0 0.0
        %749 = vmatpush2.msra.mxu0 0.0
        %750 = vmatprep.subr.mxu0 0.0
        %751 = vmatpush2.msra.mxu0 0.0
        %752 = vmatprep.subr.mxu0 0.0
        %753 = vmatpush2.msra.mxu0 0.0
        %754 = vmatprep.subr.mxu0 0.0
        %755 = vmatpush2.msra.mxu0 0.0
        %756 = vmatprep.subr.mxu0 0.0
        %757 = vmatpush2.msra.mxu0 0.0
        %758 = vmatprep.mubr.f32.mxu0 0.0
        %759 = vmatmul.mubr.f32.gmra.mxu0 %v689
        %v760 = vpop.f32.mrf.mxu0
        %v761 = vadd.f32 %v532, %v760
        %v762 = vpop.f32.mrf.mxu0
        %763 = vdwg.mxu0
        %v765 = vsel %vm534, %v495, 0
        %v768 = vsel %vm538, %v511, 0
        %770 = vmatprep.subr.mxu0 0.0
        %771 = vmatpush1.msra.mxu0 0.0
        %772 = vmatprep.subr.mxu0 0.0
        %773 = vmatpush1.msra.mxu0 0.0
        %774 = vmatprep.subr.mxu0 0.0
        %775 = vmatpush1.msra.mxu0 0.0
        %776 = vmatprep.subr.mxu0 0.0
        %777 = vmatpush1.msra.mxu0 0.0
        %778 = vmatprep.subr.mxu0 0.0
        %779 = vmatpush1.msra.mxu0 0.0
        %780 = vmatprep.subr.mxu0 0.0
        %781 = vmatpush1.msra.mxu0 0.0
        %782 = vmatprep.subr.mxu0 0.0
        %783 = vmatpush1.msra.mxu0 0.0
        %784 = vmatprep.subr.mxu0 0.0
        %785 = vmatpush1.msra.mxu0 0.0
        %786 = vmatprep.subr.mxu0 0.0
        %787 = vmatpush1.msra.mxu0 0.0
        %788 = vmatprep.subr.mxu0 0.0
        %789 = vmatpush1.msra.mxu0 0.0
        %790 = vmatprep.subr.mxu0 0.0
        %791 = vmatpush1.msra.mxu0 0.0
        %792 = vmatprep.subr.mxu0 0.0
        %793 = vmatpush1.msra.mxu0 0.0
        %794 = vmatprep.subr.mxu0 0.0
        %795 = vmatpush1.msra.mxu0 %v768
        %796 = vmatprep.subr.mxu0 0.0
        %797 = vmatpush1.msra.mxu0 %v510
        %798 = vmatprep.subr.mxu0 0.0
        %799 = vmatpush1.msra.mxu0 %v509
        %800 = vmatprep.subr.mxu0 0.0
        %801 = vmatpush1.msra.mxu0 %v508
        %802 = vmatprep.subr.mxu0 0.0
        %803 = vmatpush2.msra.mxu0 0.0
        %804 = vmatprep.subr.mxu0 0.0
        %805 = vmatpush2.msra.mxu0 0.0
        %806 = vmatprep.subr.mxu0 0.0
        %807 = vmatpush2.msra.mxu0 0.0
        %808 = vmatprep.subr.mxu0 0.0
        %809 = vmatpush2.msra.mxu0 0.0
        %810 = vmatprep.subr.mxu0 0.0
        %811 = vmatpush2.msra.mxu0 0.0
        %812 = vmatprep.subr.mxu0 0.0
        %813 = vmatpush2.msra.mxu0 0.0
        %814 = vmatprep.subr.mxu0 0.0
        %815 = vmatpush2.msra.mxu0 0.0
        %816 = vmatprep.subr.mxu0 0.0
        %817 = vmatpush2.msra.mxu0 0.0
        %818 = vmatprep.subr.mxu0 0.0
        %819 = vmatpush2.msra.mxu0 0.0
        %820 = vmatprep.subr.mxu0 0.0
        %821 = vmatpush2.msra.mxu0 0.0
        %822 = vmatprep.subr.mxu0 0.0
        %823 = vmatpush2.msra.mxu0 0.0
        %824 = vmatprep.subr.mxu0 0.0
        %825 = vmatpush2.msra.mxu0 0.0
        %826 = vmatprep.subr.mxu0 0.0
        %827 = vmatpush2.msra.mxu0 0.0
        %828 = vmatprep.subr.mxu0 0.0
        %829 = vmatpush2.msra.mxu0 0.0
        %830 = vmatprep.subr.mxu0 0.0
        %831 = vmatpush2.msra.mxu0 0.0
        %832 = vmatprep.subr.mxu0 0.0
        %833 = vmatpush2.msra.mxu0 0.0
        %834 = vmatprep.mubr.f32.mxu0 0.0
        %835 = vmatmul.mubr.f32.gmra.mxu0 %v765
        %v836 = vpop.f32.mrf.mxu0
        %v837 = vadd.f32 %v533, %v836
        %v838 = vpop.f32.mrf.mxu0
        %839 = vdwg.mxu0
        %841 = vset.pattern.permute.xlu0 0
        %842 = vperm.xlu0 %841, %v529
        %v843 = vpop.permute.xlu0 %842
        %v846 = vlaneseq
        %v847 = vshrl.u32 %v846, 7
        %v848 = vsub.s32 0, %v847
        %v849 = vrot.slane %v528, %v848
        %v851 = vmul.f32 %v843, %v849
        %v852 = vsub.f32 %v851, 1.0
        %v853 = vmul.f32 %v852, 100000.0
        %v854 = vadd.f32 %v609, %v853
        %v855 = vadd.f32 %v685, %v853
        %v856 = vadd.f32 %v761, %v853
        %v857 = vadd.f32 %v837, %v853
        %vm858 = vcmask 64512
        %v859 = vsel %vm858, %v854, -inf
        %860 = vmax.xlane.f32.xlu0 %v859
        %v861 = vpop.xlane.xlu0 %860
        %v862 = vsel %vm858, %v855, -inf
        %863 = vmax.xlane.f32.xlu0 %v862
        %v864 = vpop.xlane.xlu0 %863
        %v865 = vsel %vm858, %v856, -inf
        %866 = vmax.xlane.f32.xlu0 %v865
        %v867 = vpop.xlane.xlu0 %866
        %v868 = vsel %vm858, %v857, -inf
        %869 = vmax.xlane.f32.xlu0 %v868
        %v870 = vpop.xlane.xlu0 %869
        %v871 = vsub.f32 %v854, %v861
        %v872 = vsub.f32 %v855, %v864
        %v873 = vsub.f32 %v856, %v867
        %v874 = vsub.f32 %v857, %v870
        %v875 = vmul.f32 %v871, 1.442695
        %v876 = vpow.pop %v875
        %v877 = vmul.f32 %v872, 1.442695
        %v878 = vpow.pop %v877
        %v879 = vmul.f32 %v873, 1.442695
        %v880 = vpow.pop %v879
        %v881 = vmul.f32 %v874, 1.442695
        %v882 = vpow.pop %v881
        %v883 = vsel %vm858, %v876, 0.0
        %884 = vadd.xlane.f32.xlu0 %v883
        %v885 = vpop.xlane.xlu0 %884
        %v886 = vsel %vm858, %v878, 0.0
        %887 = vadd.xlane.f32.xlu0 %v886
        %v888 = vpop.xlane.xlu0 %887
        %v889 = vsel %vm858, %v880, 0.0
        %890 = vadd.xlane.f32.xlu0 %v889
        %v891 = vpop.xlane.xlu0 %890
        %v892 = vsel %vm858, %v882, 0.0
        %893 = vadd.xlane.f32.xlu0 %v892
        %v894 = vpop.xlane.xlu0 %893
        %v895 = vrcp.pop %v885
        %v896 = vrcp.pop %v888
        %v897 = vrcp.pop %v891
        %v898 = vrcp.pop %v894
        %v899 = vmul.f32 %v876, %v895
        %v900 = vmul.f32 %v878, %v896
        %v901 = vmul.f32 %v880, %v897
        %v902 = vmul.f32 %v882, %v898
        %v903 = vpack.c.bf16 %v899, %v899
        %v904 = vpack.c.bf16 %v900, %v900
        %v905 = vpack.c.bf16 %v901, %v901
        %v906 = vpack.c.bf16 %v902, %v902
        %v908 = vsel %vm858, %v903, 0
        %vm910 = vcmask 1043456
        %v912 = vsel %vm910, %v512, 0
        %914 = vmatprep.subr.bf16.mxu0 0
        %915 = vmatpush1.bf16.msra.mxu0 0
        %916 = vmatprep.subr.bf16.mxu0 0
        %917 = vmatpush1.bf16.msra.mxu0 0
        %918 = vmatprep.subr.bf16.mxu0 0
        %919 = vmatpush1.bf16.msra.mxu0 0
        %920 = vmatprep.subr.bf16.mxu0 0
        %921 = vmatpush1.bf16.msra.mxu0 0
        %922 = vmatprep.subr.bf16.mxu0 0
        %923 = vmatpush1.bf16.msra.mxu0 0
        %924 = vmatprep.subr.bf16.mxu0 0
        %925 = vmatpush1.bf16.msra.mxu0 0
        %926 = vmatprep.subr.bf16.mxu0 0
        %927 = vmatpush1.bf16.msra.mxu0 0
        %928 = vmatprep.subr.bf16.mxu0 0
        %929 = vmatpush1.bf16.msra.mxu0 %v912
        %930 = vmatprep.subr.bf16.mxu0 0
        %931 = vmatpush2.bf16.msra.mxu0 0
        %932 = vmatprep.subr.bf16.mxu0 0
        %933 = vmatpush2.bf16.msra.mxu0 0
        %934 = vmatprep.subr.bf16.mxu0 0
        %935 = vmatpush2.bf16.msra.mxu0 0
        %936 = vmatprep.subr.bf16.mxu0 0
        %937 = vmatpush2.bf16.msra.mxu0 0
        %938 = vmatprep.subr.bf16.mxu0 0
        %939 = vmatpush2.bf16.msra.mxu0 0
        %940 = vmatprep.subr.bf16.mxu0 0
        %941 = vmatpush2.bf16.msra.mxu0 0
        %942 = vmatprep.subr.bf16.mxu0 0
        %943 = vmatpush2.bf16.msra.mxu0 0
        %944 = vmatprep.subr.bf16.mxu0 0
        %945 = vmatpush2.bf16.msra.mxu0 0
        %946 = vmatprep.mubr.bf16.mxu0 0
        %947 = vmatmul.mubr.bf16.gmra.mxu0 %v908
        %v948 = vpop.f32.mrf.mxu0
        %v949 = vadd.f32 0.0, %v948
        %v950 = vpop.f32.mrf.mxu0
        %v951 = vpop.f32.mrf.mxu0
        %v952 = vpop.f32.mrf.mxu0
        %953 = vdwg.mxu0
        %v955 = vsel %vm858, %v904, 0
        %v958 = vsel %vm910, %v513, 0
        %960 = vmatprep.subr.bf16.mxu0 0
        %961 = vmatpush1.bf16.msra.mxu0 0
        %962 = vmatprep.subr.bf16.mxu0 0
        %963 = vmatpush1.bf16.msra.mxu0 0
        %964 = vmatprep.subr.bf16.mxu0 0
        %965 = vmatpush1.bf16.msra.mxu0 0
        %966 = vmatprep.subr.bf16.mxu0 0
        %967 = vmatpush1.bf16.msra.mxu0 0
        %968 = vmatprep.subr.bf16.mxu0 0
        %969 = vmatpush1.bf16.msra.mxu0 0
        %970 = vmatprep.subr.bf16.mxu0 0
        %971 = vmatpush1.bf16.msra.mxu0 0
        %972 = vmatprep.subr.bf16.mxu0 0
        %973 = vmatpush1.bf16.msra.mxu0 0
        %974 = vmatprep.subr.bf16.mxu0 0
        %975 = vmatpush1.bf16.msra.mxu0 %v958
        %976 = vmatprep.subr.bf16.mxu0 0
        %977 = vmatpush2.bf16.msra.mxu0 0
        %978 = vmatprep.subr.bf16.mxu0 0
        %979 = vmatpush2.bf16.msra.mxu0 0
        %980 = vmatprep.subr.bf16.mxu0 0
        %981 = vmatpush2.bf16.msra.mxu0 0
        %982 = vmatprep.subr.bf16.mxu0 0
        %983 = vmatpush2.bf16.msra.mxu0 0
        %984 = vmatprep.subr.bf16.mxu0 0
        %985 = vmatpush2.bf16.msra.mxu0 0
        %986 = vmatprep.subr.bf16.mxu0 0
        %987 = vmatpush2.bf16.msra.mxu0 0
        %988 = vmatprep.subr.bf16.mxu0 0
        %989 = vmatpush2.bf16.msra.mxu0 0
        %990 = vmatprep.subr.bf16.mxu0 0
        %991 = vmatpush2.bf16.msra.mxu0 0
        %992 = vmatprep.mubr.bf16.mxu0 0
        %993 = vmatmul.mubr.bf16.gmra.mxu0 %v955
        %v994 = vpop.f32.mrf.mxu0
        %v995 = vadd.f32 0.0, %v994
        %v996 = vpop.f32.mrf.mxu0
        %v997 = vpop.f32.mrf.mxu0
        %v998 = vpop.f32.mrf.mxu0
        %999 = vdwg.mxu0
        %v1001 = vsel %vm858, %v905, 0
        %v1004 = vsel %vm910, %v514, 0
        %1006 = vmatprep.subr.bf16.mxu0 0
        %1007 = vmatpush1.bf16.msra.mxu0 0
        %1008 = vmatprep.subr.bf16.mxu0 0
        %1009 = vmatpush1.bf16.msra.mxu0 0
        %1010 = vmatprep.subr.bf16.mxu0 0
        %1011 = vmatpush1.bf16.msra.mxu0 0
        %1012 = vmatprep.subr.bf16.mxu0 0
        %1013 = vmatpush1.bf16.msra.mxu0 0
        %1014 = vmatprep.subr.bf16.mxu0 0
        %1015 = vmatpush1.bf16.msra.mxu0 0
        %1016 = vmatprep.subr.bf16.mxu0 0
        %1017 = vmatpush1.bf16.msra.mxu0 0
        %1018 = vmatprep.subr.bf16.mxu0 0
        %1019 = vmatpush1.bf16.msra.mxu0 0
        %1020 = vmatprep.subr.bf16.mxu0 0
        %1021 = vmatpush1.bf16.msra.mxu0 %v1004
        %1022 = vmatprep.subr.bf16.mxu0 0
        %1023 = vmatpush2.bf16.msra.mxu0 0
        %1024 = vmatprep.subr.bf16.mxu0 0
        %1025 = vmatpush2.bf16.msra.mxu0 0
        %1026 = vmatprep.subr.bf16.mxu0 0
        %1027 = vmatpush2.bf16.msra.mxu0 0
        %1028 = vmatprep.subr.bf16.mxu0 0
        %1029 = vmatpush2.bf16.msra.mxu0 0
        %1030 = vmatprep.subr.bf16.mxu0 0
        %1031 = vmatpush2.bf16.msra.mxu0 0
        %1032 = vmatprep.subr.bf16.mxu0 0
        %1033 = vmatpush2.bf16.msra.mxu0 0
        %1034 = vmatprep.subr.bf16.mxu0 0
        %1035 = vmatpush2.bf16.msra.mxu0 0
        %1036 = vmatprep.subr.bf16.mxu0 0
        %1037 = vmatpush2.bf16.msra.mxu0 0
        %1038 = vmatprep.mubr.bf16.mxu0 0
        %1039 = vmatmul.mubr.bf16.gmra.mxu0 %v1001
        %v1040 = vpop.f32.mrf.mxu0
        %v1041 = vadd.f32 0.0, %v1040
        %v1042 = vpop.f32.mrf.mxu0
        %v1043 = vpop.f32.mrf.mxu0
        %v1044 = vpop.f32.mrf.mxu0
        %1045 = vdwg.mxu0
        %v1047 = vsel %vm858, %v906, 0
        %v1050 = vsel %vm910, %v515, 0
        %1052 = vmatprep.subr.bf16.mxu0 0
        %1053 = vmatpush1.bf16.msra.mxu0 0
        %1054 = vmatprep.subr.bf16.mxu0 0
        %1055 = vmatpush1.bf16.msra.mxu0 0
        %1056 = vmatprep.subr.bf16.mxu0 0
        %1057 = vmatpush1.bf16.msra.mxu0 0
        %1058 = vmatprep.subr.bf16.mxu0 0
        %1059 = vmatpush1.bf16.msra.mxu0 0
        %1060 = vmatprep.subr.bf16.mxu0 0
        %1061 = vmatpush1.bf16.msra.mxu0 0
        %1062 = vmatprep.subr.bf16.mxu0 0
        %1063 = vmatpush1.bf16.msra.mxu0 0
        %1064 = vmatprep.subr.bf16.mxu0 0
        %1065 = vmatpush1.bf16.msra.mxu0 0
        %1066 = vmatprep.subr.bf16.mxu0 0
        %1067 = vmatpush1.bf16.msra.mxu0 %v1050
        %1068 = vmatprep.subr.bf16.mxu0 0
        %1069 = vmatpush2.bf16.msra.mxu0 0
        %1070 = vmatprep.subr.bf16.mxu0 0
        %1071 = vmatpush2.bf16.msra.mxu0 0
        %1072 = vmatprep.subr.bf16.mxu0 0
        %1073 = vmatpush2.bf16.msra.mxu0 0
        %1074 = vmatprep.subr.bf16.mxu0 0
        %1075 = vmatpush2.bf16.msra.mxu0 0
        %1076 = vmatprep.subr.bf16.mxu0 0
        %1077 = vmatpush2.bf16.msra.mxu0 0
        %1078 = vmatprep.subr.bf16.mxu0 0
        %1079 = vmatpush2.bf16.msra.mxu0 0
        %1080 = vmatprep.subr.bf16.mxu0 0
        %1081 = vmatpush2.bf16.msra.mxu0 0
        %1082 = vmatprep.subr.bf16.mxu0 0
        %1083 = vmatpush2.bf16.msra.mxu0 0
        %1084 = vmatprep.mubr.bf16.mxu0 0
        %1085 = vmatmul.mubr.bf16.gmra.mxu0 %v1047
        %v1086 = vpop.f32.mrf.mxu0
        %v1087 = vadd.f32 0.0, %v1086
        %v1088 = vpop.f32.mrf.mxu0
        %v1089 = vpop.f32.mrf.mxu0
        %v1090 = vpop.f32.mrf.mxu0
        %1091 = vdwg.mxu0
        %v1092 = vcombine.low %v949, %v1041
        %v1093 = vcombine.high %v949, %v1041
        %v1095 = vunpack.c.l.s4 1983009808
        %v1096 = vunpack.c.0.s8 %v1095
        %v1097 = vlaneseq
        %v1098 = vshrl.u32 %v1097, 7
        %v1099 = vsub.s32 %v1096, %v1098
        %v1100 = vrot.slane %v1092, %v1099
        %v1102 = vunpack.c.l.s4 1983009808
        %v1103 = vunpack.c.0.s8 %v1102
        %v1104 = vlaneseq
        %v1105 = vshrl.u32 %v1104, 7
        %v1106 = vsub.s32 %v1103, %v1105
        %v1107 = vrot.slane %v1093, %v1106
        %v1108 = vcombine.low %v995, %v1087
        %v1109 = vcombine.high %v995, %v1087
        %v1111 = vunpack.c.l.s4 1983009808
        %v1112 = vunpack.c.0.s8 %v1111
        %v1113 = vlaneseq
        %v1114 = vshrl.u32 %v1113, 7
        %v1115 = vsub.s32 %v1112, %v1114
        %v1116 = vrot.slane %v1108, %v1115
        %v1118 = vunpack.c.l.s4 1983009808
        %v1119 = vunpack.c.0.s8 %v1118
        %v1120 = vlaneseq
        %v1121 = vshrl.u32 %v1120, 7
        %v1122 = vsub.s32 %v1119, %v1121
        %v1123 = vrot.slane %v1109, %v1122
        %v1124 = vcombine.low %v1100, %v1116
        %v1125 = vcombine.high %v1100, %v1116
        %v1127 = vunpack.c.l.s4 1934713408
        %v1128 = vunpack.c.0.s8 %v1127
        %v1129 = vlaneseq
        %v1130 = vshrl.u32 %v1129, 7
        %v1131 = vsub.s32 %v1128, %v1130
        %v1132 = vrot.slane %v1124, %v1131
        %v1134 = vunpack.c.l.s4 1934713408
        %v1135 = vunpack.c.0.s8 %v1134
        %v1136 = vlaneseq
        %v1137 = vshrl.u32 %v1136, 7
        %v1138 = vsub.s32 %v1135, %v1137
        %v1139 = vrot.slane %v1125, %v1138
        %v1140 = vcombine.low %v1107, %v1123
        %v1141 = vcombine.high %v1107, %v1123
        %v1143 = vunpack.c.l.s4 1934713408
        %v1144 = vunpack.c.0.s8 %v1143
        %v1145 = vlaneseq
        %v1146 = vshrl.u32 %v1145, 7
        %v1147 = vsub.s32 %v1144, %v1146
        %v1148 = vrot.slane %v1140, %v1147
        %v1150 = vunpack.c.l.s4 1934713408
        %v1151 = vunpack.c.0.s8 %v1150
        %v1152 = vlaneseq
        %v1153 = vshrl.u32 %v1152, 7
        %v1154 = vsub.s32 %v1151, %v1153
        %v1155 = vrot.slane %v1141, %v1154
        %v1156 = vcombine.high %v1132, 0.0
        %v1157 = vcombine.high %v1139, 0.0
        %v1158 = vcombine.high %v1148, 0.0
        %v1159 = vcombine.high %v1155, 0.0
        %v1160 = vcombine.low %v1132, %v1139
        %v1162 = vunpack.c.l.s4 1983009808
        %v1163 = vunpack.c.0.s8 %v1162
        %v1164 = vlaneseq
        %v1165 = vshrl.u32 %v1164, 7
        %v1166 = vsub.s32 %v1163, %v1165
        %v1167 = vrot.slane %v1160, %v1166
        %v1168 = vcombine.low %v1156, %v1157
        %v1170 = vunpack.c.l.s4 1983009808
        %v1171 = vunpack.c.0.s8 %v1170
        %v1172 = vlaneseq
        %v1173 = vshrl.u32 %v1172, 7
        %v1174 = vsub.s32 %v1171, %v1173
        %v1175 = vrot.slane %v1168, %v1174
        %v1176 = vcombine.low %v1148, %v1155
        %v1178 = vunpack.c.l.s4 1983009808
        %v1179 = vunpack.c.0.s8 %v1178
        %v1180 = vlaneseq
        %v1181 = vshrl.u32 %v1180, 7
        %v1182 = vsub.s32 %v1179, %v1181
        %v1183 = vrot.slane %v1176, %v1182
        %v1184 = vcombine.low %v1158, %v1159
        %v1186 = vunpack.c.l.s4 1983009808
        %v1187 = vunpack.c.0.s8 %v1186
        %v1188 = vlaneseq
        %v1189 = vshrl.u32 %v1188, 7
        %v1190 = vsub.s32 %v1187, %v1189
        %v1191 = vrot.slane %v1184, %v1190
        %v1192 = vcombine.low %v1167, %v1175
        %v1193 = vcombine.high %v1167, %v1175
        %v1195 = vunpack.c.l.s4 1934713408
        %v1196 = vunpack.c.0.s8 %v1195
        %v1197 = vlaneseq
        %v1198 = vshrl.u32 %v1197, 7
        %v1199 = vsub.s32 %v1196, %v1198
        %v1200 = vrot.slane %v1192, %v1199
        %v1202 = vunpack.c.l.s4 1934713408
        %v1203 = vunpack.c.0.s8 %v1202
        %v1204 = vlaneseq
        %v1205 = vshrl.u32 %v1204, 7
        %v1206 = vsub.s32 %v1203, %v1205
        %v1207 = vrot.slane %v1193, %v1206
        %v1208 = vcombine.low %v1183, %v1191
        %v1209 = vcombine.high %v1183, %v1191
        %v1211 = vunpack.c.l.s4 1934713408
        %v1212 = vunpack.c.0.s8 %v1211
        %v1213 = vlaneseq
        %v1214 = vshrl.u32 %v1213, 7
        %v1215 = vsub.s32 %v1212, %v1214
        %v1216 = vrot.slane %v1208, %v1215
        %v1218 = vunpack.c.l.s4 1934713408
        %v1219 = vunpack.c.0.s8 %v1218
        %v1220 = vlaneseq
        %v1221 = vshrl.u32 %v1220, 7
        %v1222 = vsub.s32 %v1219, %v1221
        %v1223 = vrot.slane %v1209, %v1222
        %v1224 = vcombine.low %v1200, %v1216
        %v1225 = vcombine.high %v1200, %v1216
        %v1226 = vcombine.low %v1207, %v1223
        %v1227 = vcombine.high %v1207, %v1223
        %1229 = vrot.lane.b32.xlu0 %v1225, 40
        %v1230 = vpop.permute.xlu0 %1229
        %1233 = vrot.lane.b32.xlu0 %v1226, 80
        %v1234 = vpop.permute.xlu0 %1233
        %1237 = vrot.lane.b32.xlu0 %v1227, 120
        %v1238 = vpop.permute.xlu0 %1237
        %vm1240 = vcmask 326656
        %v1241 = vsel %vm1240, %v1224, %v1230
        %vm1242 = vcmask 654336
        %v1243 = vsel %vm1242, %v1241, %v1234
        %vm1244 = vcmask 982016
        %v1245 = vsel %vm1244, %v1243, %v1238
        %1246 = vst [vmem:[%s437] sm:$0xff] %v1245
        %vm1247 = vcmask 261120
        %1248 = vst.msk [vmem:[%s437 + $0x8] sm:$0xff] %vm1247, %v1238
        %v1249 = vcombine.low %v899, %v901
        %v1250 = vcombine.high %v899, %v901
        %v1252 = vunpack.c.l.s4 1983009808
        %v1253 = vunpack.c.0.s8 %v1252
        %v1254 = vlaneseq
        %v1255 = vshrl.u32 %v1254, 7
        %v1256 = vsub.s32 %v1253, %v1255
        %v1257 = vrot.slane %v1249, %v1256
        %v1259 = vunpack.c.l.s4 1983009808
        %v1260 = vunpack.c.0.s8 %v1259
        %v1261 = vlaneseq
        %v1262 = vshrl.u32 %v1261, 7
        %v1263 = vsub.s32 %v1260, %v1262
        %v1264 = vrot.slane %v1250, %v1263
        %v1265 = vcombine.low %v900, %v902
        %v1266 = vcombine.high %v900, %v902
        %v1268 = vunpack.c.l.s4 1983009808
        %v1269 = vunpack.c.0.s8 %v1268
        %v1270 = vlaneseq
        %v1271 = vshrl.u32 %v1270, 7
        %v1272 = vsub.s32 %v1269, %v1271
        %v1273 = vrot.slane %v1265, %v1272
        %v1275 = vunpack.c.l.s4 1983009808
        %v1276 = vunpack.c.0.s8 %v1275
        %v1277 = vlaneseq
        %v1278 = vshrl.u32 %v1277, 7
        %v1279 = vsub.s32 %v1276, %v1278
        %v1280 = vrot.slane %v1266, %v1279
        %v1281 = vcombine.low %v1257, %v1273
        %v1282 = vcombine.high %v1257, %v1273
        %v1284 = vunpack.c.l.s4 1934713408
        %v1285 = vunpack.c.0.s8 %v1284
        %v1286 = vlaneseq
        %v1287 = vshrl.u32 %v1286, 7
        %v1288 = vsub.s32 %v1285, %v1287
        %v1289 = vrot.slane %v1281, %v1288
        %v1291 = vunpack.c.l.s4 1934713408
        %v1292 = vunpack.c.0.s8 %v1291
        %v1293 = vlaneseq
        %v1294 = vshrl.u32 %v1293, 7
        %v1295 = vsub.s32 %v1292, %v1294
        %v1296 = vrot.slane %v1282, %v1295
        %v1297 = vcombine.low %v1264, %v1280
        %v1298 = vcombine.high %v1264, %v1280
        %v1300 = vunpack.c.l.s4 1934713408
        %v1301 = vunpack.c.0.s8 %v1300
        %v1302 = vlaneseq
        %v1303 = vshrl.u32 %v1302, 7
        %v1304 = vsub.s32 %v1301, %v1303
        %v1305 = vrot.slane %v1297, %v1304
        %v1307 = vunpack.c.l.s4 1934713408
        %v1308 = vunpack.c.0.s8 %v1307
        %v1309 = vlaneseq
        %v1310 = vshrl.u32 %v1309, 7
        %v1311 = vsub.s32 %v1308, %v1310
        %v1312 = vrot.slane %v1298, %v1311
        %v1313 = vcombine.high %v1289, 0.0
        %v1314 = vcombine.high %v1296, 0.0
        %v1315 = vcombine.high %v1305, 0.0
        %v1316 = vcombine.high %v1312, 0.0
        %v1317 = vpack.c.bf16 %v1289, %v1289
        %v1318 = vpack.c.bf16 %v1313, %v1313
        %v1319 = vpack.c.bf16 %v1296, %v1296
        %v1320 = vpack.c.bf16 %v1314, %v1314
        %v1321 = vpack.c.bf16 %v1305, %v1305
        %v1322 = vpack.c.bf16 %v1315, %v1315
        %v1323 = vpack.c.bf16 %v1312, %v1312
        %v1324 = vpack.c.bf16 %v1316, %v1316
        %v1326 = vsel %vm858, %v1317, 0
        %v1329 = vsel %vm910, %v520, 0
        %1331 = vmatprep.subr.bf16.mxu0 0
        %1332 = vmatpush1.bf16.msra.mxu0 0
        %1333 = vmatprep.subr.bf16.mxu0 0
        %1334 = vmatpush1.bf16.msra.mxu0 0
        %1335 = vmatprep.subr.bf16.mxu0 0
        %1336 = vmatpush1.bf16.msra.mxu0 0
        %1337 = vmatprep.subr.bf16.mxu0 0
        %1338 = vmatpush1.bf16.msra.mxu0 0
        %1339 = vmatprep.subr.bf16.mxu0 0
        %1340 = vmatpush1.bf16.msra.mxu0 0
        %1341 = vmatprep.subr.bf16.mxu0 0
        %1342 = vmatpush1.bf16.msra.mxu0 0
        %1343 = vmatprep.subr.bf16.mxu0 0
        %1344 = vmatpush1.bf16.msra.mxu0 0
        %1345 = vmatprep.subr.bf16.mxu0 0
        %1346 = vmatpush1.bf16.msra.mxu0 %v1329
        %1347 = vmatprep.subr.bf16.mxu0 0
        %1348 = vmatpush2.bf16.msra.mxu0 0
        %1349 = vmatprep.subr.bf16.mxu0 0
        %1350 = vmatpush2.bf16.msra.mxu0 0
        %1351 = vmatprep.subr.bf16.mxu0 0
        %1352 = vmatpush2.bf16.msra.mxu0 0
        %1353 = vmatprep.subr.bf16.mxu0 0
        %1354 = vmatpush2.bf16.msra.mxu0 0
        %1355 = vmatprep.subr.bf16.mxu0 0
        %1356 = vmatpush2.bf16.msra.mxu0 0
        %1357 = vmatprep.subr.bf16.mxu0 0
        %1358 = vmatpush2.bf16.msra.mxu0 0
        %1359 = vmatprep.subr.bf16.mxu0 0
        %1360 = vmatpush2.bf16.msra.mxu0 0
        %1361 = vmatprep.subr.bf16.mxu0 0
        %1362 = vmatpush2.bf16.msra.mxu0 0
        %1363 = vmatprep.mubr.bf16.mxu0 0
        %1364 = vmatmul.mubr.bf16.gmra.mxu0 %v1326
        %v1365 = vpop.f32.mrf.mxu0
        %v1366 = vadd.f32 0.0, %v1365
        %v1367 = vpop.f32.mrf.mxu0
        %v1368 = vpop.f32.mrf.mxu0
        %v1369 = vpop.f32.mrf.mxu0
        %1370 = vdwg.mxu0
        %v1372 = vsel %vm858, %v1318, 0
        %v1375 = vsel %vm910, %v521, 0
        %1377 = vmatprep.subr.bf16.mxu0 0
        %1378 = vmatpush1.bf16.msra.mxu0 0
        %1379 = vmatprep.subr.bf16.mxu0 0
        %1380 = vmatpush1.bf16.msra.mxu0 0
        %1381 = vmatprep.subr.bf16.mxu0 0
        %1382 = vmatpush1.bf16.msra.mxu0 0
        %1383 = vmatprep.subr.bf16.mxu0 0
        %1384 = vmatpush1.bf16.msra.mxu0 0
        %1385 = vmatprep.subr.bf16.mxu0 0
        %1386 = vmatpush1.bf16.msra.mxu0 0
        %1387 = vmatprep.subr.bf16.mxu0 0
        %1388 = vmatpush1.bf16.msra.mxu0 0
        %1389 = vmatprep.subr.bf16.mxu0 0
        %1390 = vmatpush1.bf16.msra.mxu0 0
        %1391 = vmatprep.subr.bf16.mxu0 0
        %1392 = vmatpush1.bf16.msra.mxu0 %v1375
        %1393 = vmatprep.subr.bf16.mxu0 0
        %1394 = vmatpush2.bf16.msra.mxu0 0
        %1395 = vmatprep.subr.bf16.mxu0 0
        %1396 = vmatpush2.bf16.msra.mxu0 0
        %1397 = vmatprep.subr.bf16.mxu0 0
        %1398 = vmatpush2.bf16.msra.mxu0 0
        %1399 = vmatprep.subr.bf16.mxu0 0
        %1400 = vmatpush2.bf16.msra.mxu0 0
        %1401 = vmatprep.subr.bf16.mxu0 0
        %1402 = vmatpush2.bf16.msra.mxu0 0
        %1403 = vmatprep.subr.bf16.mxu0 0
        %1404 = vmatpush2.bf16.msra.mxu0 0
        %1405 = vmatprep.subr.bf16.mxu0 0
        %1406 = vmatpush2.bf16.msra.mxu0 0
        %1407 = vmatprep.subr.bf16.mxu0 0
        %1408 = vmatpush2.bf16.msra.mxu0 0
        %1409 = vmatprep.mubr.bf16.mxu0 0
        %1410 = vmatmul.mubr.bf16.gmra.mxu0 %v1372
        %v1411 = vpop.f32.mrf.mxu0
        %v1412 = vadd.f32 0.0, %v1411
        %v1413 = vpop.f32.mrf.mxu0
        %v1414 = vpop.f32.mrf.mxu0
        %v1415 = vpop.f32.mrf.mxu0
        %1416 = vdwg.mxu0
        %v1418 = vsel %vm858, %v1319, 0
        %v1421 = vsel %vm910, %v522, 0
        %1423 = vmatprep.subr.bf16.mxu0 0
        %1424 = vmatpush1.bf16.msra.mxu0 0
        %1425 = vmatprep.subr.bf16.mxu0 0
        %1426 = vmatpush1.bf16.msra.mxu0 0
        %1427 = vmatprep.subr.bf16.mxu0 0
        %1428 = vmatpush1.bf16.msra.mxu0 0
        %1429 = vmatprep.subr.bf16.mxu0 0
        %1430 = vmatpush1.bf16.msra.mxu0 0
        %1431 = vmatprep.subr.bf16.mxu0 0
        %1432 = vmatpush1.bf16.msra.mxu0 0
        %1433 = vmatprep.subr.bf16.mxu0 0
        %1434 = vmatpush1.bf16.msra.mxu0 0
        %1435 = vmatprep.subr.bf16.mxu0 0
        %1436 = vmatpush1.bf16.msra.mxu0 0
        %1437 = vmatprep.subr.bf16.mxu0 0
        %1438 = vmatpush1.bf16.msra.mxu0 %v1421
        %1439 = vmatprep.subr.bf16.mxu0 0
        %1440 = vmatpush2.bf16.msra.mxu0 0
        %1441 = vmatprep.subr.bf16.mxu0 0
        %1442 = vmatpush2.bf16.msra.mxu0 0
        %1443 = vmatprep.subr.bf16.mxu0 0
        %1444 = vmatpush2.bf16.msra.mxu0 0
        %1445 = vmatprep.subr.bf16.mxu0 0
        %1446 = vmatpush2.bf16.msra.mxu0 0
        %1447 = vmatprep.subr.bf16.mxu0 0
        %1448 = vmatpush2.bf16.msra.mxu0 0
        %1449 = vmatprep.subr.bf16.mxu0 0
        %1450 = vmatpush2.bf16.msra.mxu0 0
        %1451 = vmatprep.subr.bf16.mxu0 0
        %1452 = vmatpush2.bf16.msra.mxu0 0
        %1453 = vmatprep.subr.bf16.mxu0 0
        %1454 = vmatpush2.bf16.msra.mxu0 0
        %1455 = vmatprep.mubr.bf16.mxu0 0
        %1456 = vmatmul.mubr.bf16.gmra.mxu0 %v1418
        %v1457 = vpop.f32.mrf.mxu0
        %v1458 = vadd.f32 0.0, %v1457
        %v1459 = vpop.f32.mrf.mxu0
        %v1460 = vpop.f32.mrf.mxu0
        %v1461 = vpop.f32.mrf.mxu0
        %1462 = vdwg.mxu0
        %v1464 = vsel %vm858, %v1320, 0
        %v1467 = vsel %vm910, %v523, 0
        %1469 = vmatprep.subr.bf16.mxu0 0
        %1470 = vmatpush1.bf16.msra.mxu0 0
        %1471 = vmatprep.subr.bf16.mxu0 0
        %1472 = vmatpush1.bf16.msra.mxu0 0
        %1473 = vmatprep.subr.bf16.mxu0 0
        %1474 = vmatpush1.bf16.msra.mxu0 0
        %1475 = vmatprep.subr.bf16.mxu0 0
        %1476 = vmatpush1.bf16.msra.mxu0 0
        %1477 = vmatprep.subr.bf16.mxu0 0
        %1478 = vmatpush1.bf16.msra.mxu0 0
        %1479 = vmatprep.subr.bf16.mxu0 0
        %1480 = vmatpush1.bf16.msra.mxu0 0
        %1481 = vmatprep.subr.bf16.mxu0 0
        %1482 = vmatpush1.bf16.msra.mxu0 0
        %1483 = vmatprep.subr.bf16.mxu0 0
        %1484 = vmatpush1.bf16.msra.mxu0 %v1467
        %1485 = vmatprep.subr.bf16.mxu0 0
        %1486 = vmatpush2.bf16.msra.mxu0 0
        %1487 = vmatprep.subr.bf16.mxu0 0
        %1488 = vmatpush2.bf16.msra.mxu0 0
        %1489 = vmatprep.subr.bf16.mxu0 0
        %1490 = vmatpush2.bf16.msra.mxu0 0
        %1491 = vmatprep.subr.bf16.mxu0 0
        %1492 = vmatpush2.bf16.msra.mxu0 0
        %1493 = vmatprep.subr.bf16.mxu0 0
        %1494 = vmatpush2.bf16.msra.mxu0 0
        %1495 = vmatprep.subr.bf16.mxu0 0
        %1496 = vmatpush2.bf16.msra.mxu0 0
        %1497 = vmatprep.subr.bf16.mxu0 0
        %1498 = vmatpush2.bf16.msra.mxu0 0
        %1499 = vmatprep.subr.bf16.mxu0 0
        %1500 = vmatpush2.bf16.msra.mxu0 0
        %1501 = vmatprep.mubr.bf16.mxu0 0
        %1502 = vmatmul.mubr.bf16.gmra.mxu0 %v1464
        %v1503 = vpop.f32.mrf.mxu0
        %v1504 = vadd.f32 0.0, %v1503
        %v1505 = vpop.f32.mrf.mxu0
        %v1506 = vpop.f32.mrf.mxu0
        %v1507 = vpop.f32.mrf.mxu0
        %1508 = vdwg.mxu0
        %v1510 = vsel %vm858, %v1321, 0
        %v1513 = vsel %vm910, %v524, 0
        %1515 = vmatprep.subr.bf16.mxu0 0
        %1516 = vmatpush1.bf16.msra.mxu0 0
        %1517 = vmatprep.subr.bf16.mxu0 0
        %1518 = vmatpush1.bf16.msra.mxu0 0
        %1519 = vmatprep.subr.bf16.mxu0 0
        %1520 = vmatpush1.bf16.msra.mxu0 0
        %1521 = vmatprep.subr.bf16.mxu0 0
        %1522 = vmatpush1.bf16.msra.mxu0 0
        %1523 = vmatprep.subr.bf16.mxu0 0
        %1524 = vmatpush1.bf16.msra.mxu0 0
        %1525 = vmatprep.subr.bf16.mxu0 0
        %1526 = vmatpush1.bf16.msra.mxu0 0
        %1527 = vmatprep.subr.bf16.mxu0 0
        %1528 = vmatpush1.bf16.msra.mxu0 0
        %1529 = vmatprep.subr.bf16.mxu0 0
        %1530 = vmatpush1.bf16.msra.mxu0 %v1513
        %1531 = vmatprep.subr.bf16.mxu0 0
        %1532 = vmatpush2.bf16.msra.mxu0 0
        %1533 = vmatprep.subr.bf16.mxu0 0
        %1534 = vmatpush2.bf16.msra.mxu0 0
        %1535 = vmatprep.subr.bf16.mxu0 0
        %1536 = vmatpush2.bf16.msra.mxu0 0
        %1537 = vmatprep.subr.bf16.mxu0 0
        %1538 = vmatpush2.bf16.msra.mxu0 0
        %1539 = vmatprep.subr.bf16.mxu0 0
        %1540 = vmatpush2.bf16.msra.mxu0 0
        %1541 = vmatprep.subr.bf16.mxu0 0
        %1542 = vmatpush2.bf16.msra.mxu0 0
        %1543 = vmatprep.subr.bf16.mxu0 0
        %1544 = vmatpush2.bf16.msra.mxu0 0
        %1545 = vmatprep.subr.bf16.mxu0 0
        %1546 = vmatpush2.bf16.msra.mxu0 0
        %1547 = vmatprep.mubr.bf16.mxu0 0
        %1548 = vmatmul.mubr.bf16.gmra.mxu0 %v1510
        %v1549 = vpop.f32.mrf.mxu0
        %v1550 = vadd.f32 0.0, %v1549
        %v1551 = vpop.f32.mrf.mxu0
        %v1552 = vpop.f32.mrf.mxu0
        %v1553 = vpop.f32.mrf.mxu0
        %1554 = vdwg.mxu0
        %v1556 = vsel %vm858, %v1322, 0
        %v1559 = vsel %vm910, %v525, 0
        %1561 = vmatprep.subr.bf16.mxu0 0
        %1562 = vmatpush1.bf16.msra.mxu0 0
        %1563 = vmatprep.subr.bf16.mxu0 0
        %1564 = vmatpush1.bf16.msra.mxu0 0
        %1565 = vmatprep.subr.bf16.mxu0 0
        %1566 = vmatpush1.bf16.msra.mxu0 0
        %1567 = vmatprep.subr.bf16.mxu0 0
        %1568 = vmatpush1.bf16.msra.mxu0 0
        %1569 = vmatprep.subr.bf16.mxu0 0
        %1570 = vmatpush1.bf16.msra.mxu0 0
        %1571 = vmatprep.subr.bf16.mxu0 0
        %1572 = vmatpush1.bf16.msra.mxu0 0
        %1573 = vmatprep.subr.bf16.mxu0 0
        %1574 = vmatpush1.bf16.msra.mxu0 0
        %1575 = vmatprep.subr.bf16.mxu0 0
        %1576 = vmatpush1.bf16.msra.mxu0 %v1559
        %1577 = vmatprep.subr.bf16.mxu0 0
        %1578 = vmatpush2.bf16.msra.mxu0 0
        %1579 = vmatprep.subr.bf16.mxu0 0
        %1580 = vmatpush2.bf16.msra.mxu0 0
        %1581 = vmatprep.subr.bf16.mxu0 0
        %1582 = vmatpush2.bf16.msra.mxu0 0
        %1583 = vmatprep.subr.bf16.mxu0 0
        %1584 = vmatpush2.bf16.msra.mxu0 0
        %1585 = vmatprep.subr.bf16.mxu0 0
        %1586 = vmatpush2.bf16.msra.mxu0 0
        %1587 = vmatprep.subr.bf16.mxu0 0
        %1588 = vmatpush2.bf16.msra.mxu0 0
        %1589 = vmatprep.subr.bf16.mxu0 0
        %1590 = vmatpush2.bf16.msra.mxu0 0
        %1591 = vmatprep.subr.bf16.mxu0 0
        %1592 = vmatpush2.bf16.msra.mxu0 0
        %1593 = vmatprep.mubr.bf16.mxu0 0
        %1594 = vmatmul.mubr.bf16.gmra.mxu0 %v1556
        %v1595 = vpop.f32.mrf.mxu0
        %v1596 = vadd.f32 0.0, %v1595
        %v1597 = vpop.f32.mrf.mxu0
        %v1598 = vpop.f32.mrf.mxu0
        %v1599 = vpop.f32.mrf.mxu0
        %1600 = vdwg.mxu0
        %v1602 = vsel %vm858, %v1323, 0
        %v1605 = vsel %vm910, %v526, 0
        %1607 = vmatprep.subr.bf16.mxu0 0
        %1608 = vmatpush1.bf16.msra.mxu0 0
        %1609 = vmatprep.subr.bf16.mxu0 0
        %1610 = vmatpush1.bf16.msra.mxu0 0
        %1611 = vmatprep.subr.bf16.mxu0 0
        %1612 = vmatpush1.bf16.msra.mxu0 0
        %1613 = vmatprep.subr.bf16.mxu0 0
        %1614 = vmatpush1.bf16.msra.mxu0 0
        %1615 = vmatprep.subr.bf16.mxu0 0
        %1616 = vmatpush1.bf16.msra.mxu0 0
        %1617 = vmatprep.subr.bf16.mxu0 0
        %1618 = vmatpush1.bf16.msra.mxu0 0
        %1619 = vmatprep.subr.bf16.mxu0 0
        %1620 = vmatpush1.bf16.msra.mxu0 0
        %1621 = vmatprep.subr.bf16.mxu0 0
        %1622 = vmatpush1.bf16.msra.mxu0 %v1605
        %1623 = vmatprep.subr.bf16.mxu0 0
        %1624 = vmatpush2.bf16.msra.mxu0 0
        %1625 = vmatprep.subr.bf16.mxu0 0
        %1626 = vmatpush2.bf16.msra.mxu0 0
        %1627 = vmatprep.subr.bf16.mxu0 0
        %1628 = vmatpush2.bf16.msra.mxu0 0
        %1629 = vmatprep.subr.bf16.mxu0 0
        %1630 = vmatpush2.bf16.msra.mxu0 0
        %1631 = vmatprep.subr.bf16.mxu0 0
        %1632 = vmatpush2.bf16.msra.mxu0 0
        %1633 = vmatprep.subr.bf16.mxu0 0
        %1634 = vmatpush2.bf16.msra.mxu0 0
        %1635 = vmatprep.subr.bf16.mxu0 0
        %1636 = vmatpush2.bf16.msra.mxu0 0
        %1637 = vmatprep.subr.bf16.mxu0 0
        %1638 = vmatpush2.bf16.msra.mxu0 0
        %1639 = vmatprep.mubr.bf16.mxu0 0
        %1640 = vmatmul.mubr.bf16.gmra.mxu0 %v1602
        %v1641 = vpop.f32.mrf.mxu0
        %v1642 = vadd.f32 0.0, %v1641
        %v1643 = vpop.f32.mrf.mxu0
        %v1644 = vpop.f32.mrf.mxu0
        %v1645 = vpop.f32.mrf.mxu0
        %1646 = vdwg.mxu0
        %v1648 = vsel %vm858, %v1324, 0
        %v1651 = vsel %vm910, %v527, 0
        %1653 = vmatprep.subr.bf16.mxu0 0
        %1654 = vmatpush1.bf16.msra.mxu0 0
        %1655 = vmatprep.subr.bf16.mxu0 0
        %1656 = vmatpush1.bf16.msra.mxu0 0
        %1657 = vmatprep.subr.bf16.mxu0 0
        %1658 = vmatpush1.bf16.msra.mxu0 0
        %1659 = vmatprep.subr.bf16.mxu0 0
        %1660 = vmatpush1.bf16.msra.mxu0 0
        %1661 = vmatprep.subr.bf16.mxu0 0
        %1662 = vmatpush1.bf16.msra.mxu0 0
        %1663 = vmatprep.subr.bf16.mxu0 0
        %1664 = vmatpush1.bf16.msra.mxu0 0
        %1665 = vmatprep.subr.bf16.mxu0 0
        %1666 = vmatpush1.bf16.msra.mxu0 0
        %1667 = vmatprep.subr.bf16.mxu0 0
        %1668 = vmatpush1.bf16.msra.mxu0 %v1651
        %1669 = vmatprep.subr.bf16.mxu0 0
        %1670 = vmatpush2.bf16.msra.mxu0 0
        %1671 = vmatprep.subr.bf16.mxu0 0
        %1672 = vmatpush2.bf16.msra.mxu0 0
        %1673 = vmatprep.subr.bf16.mxu0 0
        %1674 = vmatpush2.bf16.msra.mxu0 0
        %1675 = vmatprep.subr.bf16.mxu0 0
        %1676 = vmatpush2.bf16.msra.mxu0 0
        %1677 = vmatprep.subr.bf16.mxu0 0
        %1678 = vmatpush2.bf16.msra.mxu0 0
        %1679 = vmatprep.subr.bf16.mxu0 0
        %1680 = vmatpush2.bf16.msra.mxu0 0
        %1681 = vmatprep.subr.bf16.mxu0 0
        %1682 = vmatpush2.bf16.msra.mxu0 0
        %1683 = vmatprep.subr.bf16.mxu0 0
        %1684 = vmatpush2.bf16.msra.mxu0 0
        %1685 = vmatprep.mubr.bf16.mxu0 0
        %1686 = vmatmul.mubr.bf16.gmra.mxu0 %v1648
        %v1687 = vpop.f32.mrf.mxu0
        %v1688 = vadd.f32 0.0, %v1687
        %v1689 = vpop.f32.mrf.mxu0
        %v1690 = vpop.f32.mrf.mxu0
        %v1691 = vpop.f32.mrf.mxu0
        %1692 = vdwg.mxu0
        %v1693 = vcombine.low %v1366, %v1458
        %v1695 = vunpack.c.l.s4 1983009808
        %v1696 = vunpack.c.0.s8 %v1695
        %v1697 = vlaneseq
        %v1698 = vshrl.u32 %v1697, 7
        %v1699 = vsub.s32 %v1696, %v1698
        %v1700 = vrot.slane %v1693, %v1699
        %v1701 = vcombine.low %v1412, %v1504
        %v1703 = vunpack.c.l.s4 1983009808
        %v1704 = vunpack.c.0.s8 %v1703
        %v1705 = vlaneseq
        %v1706 = vshrl.u32 %v1705, 7
        %v1707 = vsub.s32 %v1704, %v1706
        %v1708 = vrot.slane %v1701, %v1707
        %v1709 = vcombine.low %v1550, %v1642
        %v1711 = vunpack.c.l.s4 1983009808
        %v1712 = vunpack.c.0.s8 %v1711
        %v1713 = vlaneseq
        %v1714 = vshrl.u32 %v1713, 7
        %v1715 = vsub.s32 %v1712, %v1714
        %v1716 = vrot.slane %v1709, %v1715
        %v1717 = vcombine.low %v1596, %v1688
        %v1719 = vunpack.c.l.s4 1983009808
        %v1720 = vunpack.c.0.s8 %v1719
        %v1721 = vlaneseq
        %v1722 = vshrl.u32 %v1721, 7
        %v1723 = vsub.s32 %v1720, %v1722
        %v1724 = vrot.slane %v1717, %v1723
        %v1725 = vcombine.low %v1700, %v1708
        %v1726 = vcombine.high %v1700, %v1708
        %v1728 = vunpack.c.l.s4 1934713408
        %v1729 = vunpack.c.0.s8 %v1728
        %v1730 = vlaneseq
        %v1731 = vshrl.u32 %v1730, 7
        %v1732 = vsub.s32 %v1729, %v1731
        %v1733 = vrot.slane %v1725, %v1732
        %v1735 = vunpack.c.l.s4 1934713408
        %v1736 = vunpack.c.0.s8 %v1735
        %v1737 = vlaneseq
        %v1738 = vshrl.u32 %v1737, 7
        %v1739 = vsub.s32 %v1736, %v1738
        %v1740 = vrot.slane %v1726, %v1739
        %v1741 = vcombine.low %v1716, %v1724
        %v1742 = vcombine.high %v1716, %v1724
        %v1744 = vunpack.c.l.s4 1934713408
        %v1745 = vunpack.c.0.s8 %v1744
        %v1746 = vlaneseq
        %v1747 = vshrl.u32 %v1746, 7
        %v1748 = vsub.s32 %v1745, %v1747
        %v1749 = vrot.slane %v1741, %v1748
        %v1751 = vunpack.c.l.s4 1934713408
        %v1752 = vunpack.c.0.s8 %v1751
        %v1753 = vlaneseq
        %v1754 = vshrl.u32 %v1753, 7
        %v1755 = vsub.s32 %v1752, %v1754
        %v1756 = vrot.slane %v1742, %v1755
        %v1757 = vcombine.low %v1733, %v1749
        %v1758 = vcombine.high %v1733, %v1749
        %v1759 = vcombine.low %v1740, %v1756
        %v1760 = vcombine.high %v1740, %v1756
        %1762 = vrot.lane.b32.xlu0 %v1758, 8
        %v1763 = vpop.permute.xlu0 %1762
        %1766 = vrot.lane.b32.xlu0 %v1759, 16
        %v1767 = vpop.permute.xlu0 %1766
        %1770 = vrot.lane.b32.xlu0 %v1760, 24
        %v1771 = vpop.permute.xlu0 %1770
        %v1773 = vsel %vm858, %v1757, %v1763
        %vm1774 = vcmask 130048
        %v1775 = vsel %vm1774, %v1773, %v1767
        %vm1776 = vcmask 195584
        %v1777 = vsel %vm1776, %v1775, %v1771
        %v1778 = vpack.c.bf16 %v1777, %v1777
        %vm1779 = vcmask 257024
        %1780 = vst.msk [vmem:[%s444] sm:$0xf] %vm1779, %v1778
        %s1781 = sand.u32 %s238, 1
        %s1782 = scalar_lea.sflag [#allocation3], %s1781
        %s1783 = sand.u32 %s238, 1
        %s1784 = smul.addr %s1783, 16
        %s1785 = scalar_lea.vmem [#allocation2], %s1784
        %s1786 = sand.u32 %s266, 1
        %s1787 = scalar_lea.sflag [#allocation5], %s1786
        %s1788 = sand.u32 %s266, 1
        %s1789 = smul.addr %s1788, 4
        %s1790 = scalar_lea.vmem [#allocation4], %s1789
        // Predicated region
        $region49: #{tpu_custom_call.1} parent=47 // pred_check
          %p1791 = pneg %p248
        $region50: #{tpu_custom_call.1} parent=47 // pred_check_branch
          %1793 = sbr.rel (%p1791) target = $region52
        $region51: #{tpu_custom_call.1} parent=47 // pred_region
          %s1795 = ssub.s32 256, 256
          %1796 = vsyncadd %s1782, %s1795
          %s1797 = smul.addr %s31, 2
          %s1798 = smul.addr %s30, 2
          %s1799 = sadd.s32 %s1797, %s1798
          %s1800 = smul.addr %s1799, 128
          %s1801 = scalar_lea.hbm %s7, %s1800
          %s1803 = sshll.u32 %s1785, 4
          %s1804 = int_to_ptr.vmem [resolvable:$true] %s1803
          %1806 = dma.vmem_to_hbm [thread:$0]  %s1804, 256, %s1801, %s1782
        $region52: #{tpu_custom_call.1} parent=47 // pred_fallthru
          _
        // Predicated region
        $region53: #{tpu_custom_call.1} parent=47 // pred_check
          %p1807 = pneg %p276
        $region54: #{tpu_custom_call.1} parent=47 // pred_check_branch
          %1809 = sbr.rel (%p1807) target = $region56
        $region55: #{tpu_custom_call.1} parent=47 // pred_region
          %s1811 = ssub.s32 64, 64
          %1812 = vsyncadd %s1787, %s1811
          %s1813 = sadd.s32 %s31, %s30
          %s1814 = smul.addr %s1813, 64
          %s1815 = scalar_lea.hbm %s8, %s1814
          %s1817 = sshll.u32 %s1790, 4
          %s1818 = int_to_ptr.vmem [resolvable:$true] %s1817
          %1820 = dma.vmem_to_hbm [thread:$0]  %s1818, 64, %s1815, %s1787
        $region56: #{tpu_custom_call.1} parent=47 // pred_fallthru
          _
      $region48: #{tpu_custom_call.1} parent=5 // pred_fallthru
        _
      %p1821 = scmp.le.s32.totalorder 2, %s21
      // Predicated region
      $region57: #{tpu_custom_call.1} parent=5 // pred_check
        %p1822 = pneg %p1821
      $region58: #{tpu_custom_call.1} parent=5 // pred_check_branch
        %1824 = sbr.rel (%p1822) target = $region60
      $region59: #{tpu_custom_call.1} parent=5 // pred_region
        %s1825 = ssub.s32 %s21, 2
        // Predicated region
        $region61: #{tpu_custom_call.1} parent=59 // pred_check
          %p1826 = pneg %p254
        $region62: #{tpu_custom_call.1} parent=59 // pred_check_branch
          %1828 = sbr.rel (%p1826) target = $region64
        $region63: #{tpu_custom_call.1} parent=59 // pred_region
          %s1829 = sand.u32 %s239, 1
          %s1830 = scalar_lea.sflag [#allocation3], %s1829
          %s1831 = sand.u32 %s239, 1
          %s1832 = smul.addr %s1831, 16
          %s1833 = scalar_lea.vmem [#allocation2], %s1832
          %1834 = dma.done %s1830, 256
        $region64: #{tpu_custom_call.1} parent=59 // pred_fallthru
          _
        // Predicated region
        $region65: #{tpu_custom_call.1} parent=59 // pred_check
          %p1835 = pneg %p282
        $region66: #{tpu_custom_call.1} parent=59 // pred_check_branch
          %1837 = sbr.rel (%p1835) target = $region68
        $region67: #{tpu_custom_call.1} parent=59 // pred_region
          %s1838 = sand.u32 %s267, 1
          %s1839 = scalar_lea.sflag [#allocation5], %s1838
          %s1840 = sand.u32 %s267, 1
          %s1841 = smul.addr %s1840, 4
          %s1842 = scalar_lea.vmem [#allocation4], %s1841
          %1843 = dma.done %s1839, 64
        $region68: #{tpu_custom_call.1} parent=59 // pred_fallthru
          _
      $region60: #{tpu_custom_call.1} parent=5 // pred_fallthru
        _
    $region6: #{tpu_custom_call.1} parent=1 // loop_footer
      %s25 = sadd.s32 1, %s21
    $region7: #{tpu_custom_call.1} parent=1 // loop_footer_branch
      %20 = sbr.rel target = $region3
    $region8: #{tpu_custom_call.1} parent=1 // loop_exit
      _
    %1844 = vsyncpa [#allocation3], 1
    %s1845 = scalar_lea.sflag [#allocation3], 1
    %1846 = vsyncpa %s1845, 1
    %1847 = vsyncpa [#allocation5], 1
    %s1848 = scalar_lea.sflag [#allocation5], 1
    %1849 = vsyncpa %s1848, 1

// kernel: tpu_custom_call.1
$region0: #{tpu_custom_call.1}
  #allocation0 [shape = 'u32[]', space=smem, size = 0x4, offset = 0x4, fixed_abs, tag = 'smem constant byte address 0x4 - core index']
  #allocation1 [shape = 'u32[144,128]{1,0:T(1,128)}', space=vmem, size = 0x12000, scoped, tag = 'internal scratch']
  %s0 = inlined_call_operand.vmem [shape: f32[2,4,8,30], index: 0, kind: input, shape index: {}]
  %s1 = inlined_call_operand.vmem [shape: f32[2,4,30,8], index: 1, kind: input, shape index: {}]
  %s2 = inlined_call_operand.vmem [shape: bf16[2,4,8,40], index: 2, kind: input, shape index: {}]
  %s3 = inlined_call_operand.vmem [shape: bf16[2,4,8,8], index: 3, kind: input, shape index: {}]
  %s4 = inlined_call_operand.vmem [shape: bf16[2,8,8,8], index: 4, kind: input, shape index: {}]
  %s5 = inlined_call_operand.vmem [shape: f32[2,1,8], index: 5, kind: input, shape index: {}]
  %s6 = inlined_call_operand.vmem [shape: f32[2,8,1], index: 6, kind: input, shape index: {}]
  %s7 = inlined_call_operand.hbm [shape: f32[2,8,160], index: 7, kind: output, shape index: {0}]
  %s8 = inlined_call_operand.hbm [shape: bf16[2,8,32], index: 8, kind: output, shape index: {1}]
  %9 = xla_tuple %s7, %s8
  %s10 = sld [smem:[#allocation0]]
  $region69: #{tpu_custom_call.1} parent=0
    _
  %s12 = ssub.s32 1, %s10
  %s13 = scalar_select 0, %s12, %s10
  $region1: #{tpu_custom_call.1} parent=0
    #allocation2 [shape = 'u8[16384]{0}', space=vmem, size = 0x4000, scoped, tag = 'output window, operand 0']
    #allocation3 [shape = 's32[2]{0}', space=sflag, size = 0x8, scoped, tag = 'scoped memory for tpu_custom_call.1']
    #allocation4 [shape = 'u8[4096]{0}', space=vmem, size = 0x1000, scoped, tag = 'output window, operand 1']
    #allocation5 [shape = 's32[2]{0}', space=sflag, size = 0x8, scoped, tag = 'scoped memory for tpu_custom_call.1']
    %14 = vsyncpa [#allocation3], 0
    %s15 = scalar_lea.sflag [#allocation3], 1
    %16 = vsyncpa %s15, 0
    %17 = vsyncpa [#allocation5], 0
    %s18 = scalar_lea.sflag [#allocation5], 1
    %19 = vsyncpa %s18, 0
    loop: start=0, step=1, limit=4
    $region2: #{tpu_custom_call.1} parent=1 // loop_pre_header
      _
    $region3: #{tpu_custom_call.1} parent=1 // loop_header
      %s21 = sphi 0, %s25
      %p22 = scmp.ge.s32.totalorder %s21, 4
      %s28 = sphi 0, %s40
      %s29 = sphi 0, %s36
      %s30 = sphi 0, %s28
      %s31 = sphi 0, %s29
      %s32 = sphi 0, %s30
      %s33 = sphi 0, %s31
      %s45 = sphi 0, %s47
      %s48 = sphi 0, %s45
      %s49 = sphi 0, %s48
      %s65 = sphi 0, %s49
      %s71 = sphi 0, %s73
      %s74 = sphi 0, %s71
      %s75 = sphi 0, %s74
      %s91 = sphi 0, %s75
      %s97 = sphi 0, %s99
      %s100 = sphi 0, %s97
      %s101 = sphi 0, %s100
      %s117 = sphi 0, %s101
      %s125 = sphi 0, %s127
      %s128 = sphi 0, %s125
      %s129 = sphi 0, %s128
      %s145 = sphi 0, %s129
      %s153 = sphi 0, %s155
      %s156 = sphi 0, %s153
      %s157 = sphi 0, %s156
      %s173 = sphi 0, %s157
      %s179 = sphi 0, %s181
      %s182 = sphi 0, %s179
      %s183 = sphi 0, %s182
      %s199 = sphi 0, %s183
      %s207 = sphi 0, %s209
      %s210 = sphi 0, %s207
      %s211 = sphi 0, %s210
      %s227 = sphi 0, %s211
      %s235 = sphi 0, %s237
      %s238 = sphi 0, %s235
      %s239 = sphi 0, %s238
      %s255 = sphi 0, %s239
      %s263 = sphi 0, %s265
      %s266 = sphi 0, %s263
      %s267 = sphi 0, %s266
      %s283 = sphi 0, %s267
    $region4: #{tpu_custom_call.1} parent=1 // loop_header_branch
      %24 = sbr.rel (%p22) target = $region8
    $region5: #{tpu_custom_call.1} parent=1 // loop_body
      %s26 = ssub.s32 %s21, 1
      %s27 = ssub.s32 %s21, 2
      %s34 = sadd.s32 1, %s29
      %p35 = scmp.ge.s32.totalorder %s34, 1
      %s36 = scalar_select %p35, 0, %s34
      %s37 = sadd.s32 1, %s28
      %s38 = scalar_select %p35, %s37, %s28
      %p39 = scmp.ge.s32.totalorder %s38, 2
      %s40 = scalar_select %p39, 0, %s38
      %s41 = ssub.s32 %s28, %s40
      %s42 = ssub.s32 %s29, %s36
      %s43 = sor.u32 %s41, %s42
      %p44 = scmp.eq.s32.totalorder %s43, 0
      %s46 = sadd.s32 %s45, 1
      %s47 = scalar_select %p44, %s45, %s46
      %p50 = pneg %p44
      %p51 = scmp.eq.s32.totalorder %s21, 1
      %p52 = por %p50, %p51
      %p53 = scmp.ne.s32.totalorder %s45, %s48
      %p54 = scmp.eq.s32.totalorder %s21, 0
      %p55 = por %p53, %p54
      %p56 = scmp.ne.s32.totalorder %s45, %s48
      %p57 = scmp.eq.s32.totalorder %s26, 1
      %p58 = por %p56, %p57
      %p59 = scmp.ne.s32.totalorder %s48, %s49
      %p60 = scmp.eq.s32.totalorder %s26, 0
      %p61 = por %p59, %p60
      %p62 = scmp.ne.s32.totalorder %s48, %s49
      %p63 = scmp.eq.s32.totalorder %s27, 1
      %p64 = por %p62, %p63
      %p66 = scmp.ne.s32.totalorder %s49, %s65
      %p67 = scmp.eq.s32.totalorder %s27, 0
      %p68 = por %p66, %p67
      %s69 = ssub.s32 %s28, %s40
      %p70 = scmp.eq.s32.totalorder %s69, 0
      %s72 = sadd.s32 %s71, 1
      %s73 = scalar_select %p70, %s71, %s72
      %p76 = pneg %p70
      %p77 = scmp.eq.s32.totalorder %s21, 1
      %p78 = por %p76, %p77
      %p79 = scmp.ne.s32.totalorder %s71, %s74
      %p80 = scmp.eq.s32.totalorder %s21, 0
      %p81 = por %p79, %p80
      %p82 = scmp.ne.s32.totalorder %s71, %s74
      %p83 = scmp.eq.s32.totalorder %s26, 1
      %p84 = por %p82, %p83
      %p85 = scmp.ne.s32.totalorder %s74, %s75
      %p86 = scmp.eq.s32.totalorder %s26, 0
      %p87 = por %p85, %p86
      %p88 = scmp.ne.s32.totalorder %s74, %s75
      %p89 = scmp.eq.s32.totalorder %s27, 1
      %p90 = por %p88, %p89
      %p92 = scmp.ne.s32.totalorder %s75, %s91
      %p93 = scmp.eq.s32.totalorder %s27, 0
      %p94 = por %p92, %p93
      %s95 = ssub.s32 %s28, %s40
      %p96 = scmp.eq.s32.totalorder %s95, 0
      %s98 = sadd.s32 %s97, 1
      %s99 = scalar_select %p96, %s97, %s98
      %p102 = pneg %p96
      %p103 = scmp.eq.s32.totalorder %s21, 1
      %p104 = por %p102, %p103
      %p105 = scmp.ne.s32.totalorder %s97, %s100
      %p106 = scmp.eq.s32.totalorder %s21, 0
      %p107 = por %p105, %p106
      %p108 = scmp.ne.s32.totalorder %s97, %s100
      %p109 = scmp.eq.s32.totalorder %s26, 1
      %p110 = por %p108, %p109
      %p111 = scmp.ne.s32.totalorder %s100, %s101
      %p112 = scmp.eq.s32.totalorder %s26, 0
      %p113 = por %p111, %p112
      %p114 = scmp.ne.s32.totalorder %s100, %s101
      %p115 = scmp.eq.s32.totalorder %s27, 1
      %p116 = por %p114, %p115
      %p118 = scmp.ne.s32.totalorder %s101, %s117
      %p119 = scmp.eq.s32.totalorder %s27, 0
      %p120 = por %p118, %p119
      %s121 = ssub.s32 %s28, %s40
      %s122 = ssub.s32 %s29, %s36
      %s123 = sor.u32 %s121, %s122
      %p124 = scmp.eq.s32.totalorder %s123, 0
      %s126 = sadd.s32 %s125, 1
      %s127 = scalar_select %p124, %s125, %s126
      %p130 = pneg %p124
      %p131 = scmp.eq.s32.totalorder %s21, 1
      %p132 = por %p130, %p131
      %p133 = scmp.ne.s32.totalorder %s125, %s128
      %p134 = scmp.eq.s32.totalorder %s21, 0
      %p135 = por %p133, %p134
      %p136 = scmp.ne.s32.totalorder %s125, %s128
      %p137 = scmp.eq.s32.totalorder %s26, 1
      %p138 = por %p136, %p137
      %p139 = scmp.ne.s32.totalorder %s128, %s129
      %p140 = scmp.eq.s32.totalorder %s26, 0
      %p141 = por %p139, %p140
      %p142 = scmp.ne.s32.totalorder %s128, %s129
      %p143 = scmp.eq.s32.totalorder %s27, 1
      %p144 = por %p142, %p143
      %p146 = scmp.ne.s32.totalorder %s129, %s145
      %p147 = scmp.eq.s32.totalorder %s27, 0
      %p148 = por %p146, %p147
      %s149 = ssub.s32 %s28, %s40
      %s150 = ssub.s32 %s29, %s36
      %s151 = sor.u32 %s149, %s150
      %p152 = scmp.eq.s32.totalorder %s151, 0
      %s154 = sadd.s32 %s153, 1
      %s155 = scalar_select %p152, %s153, %s154
      %p158 = pneg %p152
      %p159 = scmp.eq.s32.totalorder %s21, 1
      %p160 = por %p158, %p159
      %p161 = scmp.ne.s32.totalorder %s153, %s156
      %p162 = scmp.eq.s32.totalorder %s21, 0
      %p163 = por %p161, %p162
      %p164 = scmp.ne.s32.totalorder %s153, %s156
      %p165 = scmp.eq.s32.totalorder %s26, 1
      %p166 = por %p164, %p165
      %p167 = scmp.ne.s32.totalorder %s156, %s157
      %p168 = scmp.eq.s32.totalorder %s26, 0
      %p169 = por %p167, %p168
      %p170 = scmp.ne.s32.totalorder %s156, %s157
      %p171 = scmp.eq.s32.totalorder %s27, 1
      %p172 = por %p170, %p171
      %p174 = scmp.ne.s32.totalorder %s157, %s173
      %p175 = scmp.eq.s32.totalorder %s27, 0
      %p176 = por %p174, %p175
      %s177 = ssub.s32 %s28, %s40
      %p178 = scmp.eq.s32.totalorder %s177, 0
      %s180 = sadd.s32 %s179, 1
      %s181 = scalar_select %p178, %s179, %s180
      %p184 = pneg %p178
      %p185 = scmp.eq.s32.totalorder %s21, 1
      %p186 = por %p184, %p185
      %p187 = scmp.ne.s32.totalorder %s179, %s182
      %p188 = scmp.eq.s32.totalorder %s21, 0
      %p189 = por %p187, %p188
      %p190 = scmp.ne.s32.totalorder %s179, %s182
      %p191 = scmp.eq.s32.totalorder %s26, 1
      %p192 = por %p190, %p191
      %p193 = scmp.ne.s32.totalorder %s182, %s183
      %p194 = scmp.eq.s32.totalorder %s26, 0
      %p195 = por %p193, %p194
      %p196 = scmp.ne.s32.totalorder %s182, %s183
      %p197 = scmp.eq.s32.totalorder %s27, 1
      %p198 = por %p196, %p197
      %p200 = scmp.ne.s32.totalorder %s183, %s199
      %p201 = scmp.eq.s32.totalorder %s27, 0
      %p202 = por %p200, %p201
      %s203 = ssub.s32 %s28, %s40
      %s204 = ssub.s32 %s29, %s36
      %s205 = sor.u32 %s203, %s204
      %p206 = scmp.eq.s32.totalorder %s205, 0
      %s208 = sadd.s32 %s207, 1
      %s209 = scalar_select %p206, %s207, %s208
      %p212 = pneg %p206
      %p213 = scmp.eq.s32.totalorder %s21, 1
      %p214 = por %p212, %p213
      %p215 = scmp.ne.s32.totalorder %s207, %s210
      %p216 = scmp.eq.s32.totalorder %s21, 0
      %p217 = por %p215, %p216
      %p218 = scmp.ne.s32.totalorder %s207, %s210
      %p219 = scmp.eq.s32.totalorder %s26, 1
      %p220 = por %p218, %p219
      %p221 = scmp.ne.s32.totalorder %s210, %s211
      %p222 = scmp.eq.s32.totalorder %s26, 0
      %p223 = por %p221, %p222
      %p224 = scmp.ne.s32.totalorder %s210, %s211
      %p225 = scmp.eq.s32.totalorder %s27, 1
      %p226 = por %p224, %p225
      %p228 = scmp.ne.s32.totalorder %s211, %s227
      %p229 = scmp.eq.s32.totalorder %s27, 0
      %p230 = por %p228, %p229
      %s231 = ssub.s32 %s28, %s40
      %s232 = ssub.s32 %s29, %s36
      %s233 = sor.u32 %s231, %s232
      %p234 = scmp.eq.s32.totalorder %s233, 0
      %s236 = sadd.s32 %s235, 1
      %s237 = scalar_select %p234, %s235, %s236
      %p240 = pneg %p234
      %p241 = scmp.eq.s32.totalorder %s21, 1
      %p242 = por %p240, %p241
      %p243 = scmp.ne.s32.totalorder %s235, %s238
      %p244 = scmp.eq.s32.totalorder %s21, 0
      %p245 = por %p243, %p244
      %p246 = scmp.ne.s32.totalorder %s235, %s238
      %p247 = scmp.eq.s32.totalorder %s26, 1
      %p248 = por %p246, %p247
      %p249 = scmp.ne.s32.totalorder %s238, %s239
      %p250 = scmp.eq.s32.totalorder %s26, 0
      %p251 = por %p249, %p250
      %p252 = scmp.ne.s32.totalorder %s238, %s239
      %p253 = scmp.eq.s32.totalorder %s27, 1
      %p254 = por %p252, %p253
      %p256 = scmp.ne.s32.totalorder %s239, %s255
      %p257 = scmp.eq.s32.totalorder %s27, 0
      %p258 = por %p256, %p257
      %s259 = ssub.s32 %s28, %s40
      %s260 = ssub.s32 %s29, %s36
      %s261 = sor.u32 %s259, %s260
      %p262 = scmp.eq.s32.totalorder %s261, 0
      %s264 = sadd.s32 %s263, 1
      %s265 = scalar_select %p262, %s263, %s264
      %p268 = pneg %p262
      %p269 = scmp.eq.s32.totalorder %s21, 1
      %p270 = por %p268, %p269
      %p271 = scmp.ne.s32.totalorder %s263, %s266
      %p272 = scmp.eq.s32.totalorder %s21, 0
      %p273 = por %p271, %p272
      %p274 = scmp.ne.s32.totalorder %s263, %s266
      %p275 = scmp.eq.s32.totalorder %s26, 1
      %p276 = por %p274, %p275
      %p277 = scmp.ne.s32.totalorder %s266, %s267
      %p278 = scmp.eq.s32.totalorder %s26, 0
      %p279 = por %p277, %p278
      %p280 = scmp.ne.s32.totalorder %s266, %s267
      %p281 = scmp.eq.s32.totalorder %s27, 1
      %p282 = por %p280, %p281
      %p284 = scmp.ne.s32.totalorder %s267, %s283
      %p285 = scmp.eq.s32.totalorder %s27, 0
      %p286 = por %p284, %p285
      %p287 = scmp.le.s32.totalorder 1, %s21
      %p288 = scmp.lt.s32.totalorder %s21, 3
      %p289 = pnand %p287, %p288
      %p290 = pneg %p289
      // Predicated region
      $region9: #{tpu_custom_call.1} parent=5 // pred_check
        _
      $region10: #{tpu_custom_call.1} parent=5 // pred_check_branch
        %292 = sbr.rel (%p289) target = $region12
      $region11: #{tpu_custom_call.1} parent=5 // pred_region
        %s293 = ssub.s32 %s21, 1
      $region12: #{tpu_custom_call.1} parent=5 // pred_fallthru
        _
      %p294 = scmp.lt.s32.totalorder %s21, 2
      // Predicated region
      $region13: #{tpu_custom_call.1} parent=5 // pred_check
        %p295 = pneg %p294
      $region14: #{tpu_custom_call.1} parent=5 // pred_check_branch
        %297 = sbr.rel (%p295) target = $region16
      $region15: #{tpu_custom_call.1} parent=5 // pred_region
        // Predicated region
        $region17: #{tpu_custom_call.1} parent=15 // pred_check
          %p298 = pneg %p55
        $region18: #{tpu_custom_call.1} parent=15 // pred_check_branch
          %300 = sbr.rel (%p298) target = $region20
        $region19: #{tpu_custom_call.1} parent=15 // pred_region
          %p301 = scmp.lt.s32.totalorder %s28, 1
          %s302 = scalar_select %p301, %s28, 1
          %p303 = scmp.lt.s32.totalorder %s29, 0
          %s304 = scalar_select %p303, %s29, 0
          %s305 = smul.addr %s302, 4
          %s306 = sadd.s32 %s304, %s305
          %s307 = smul.addr %s306, 8
          %s308 = scalar_lea.vmem %s0, %s307
        $region20: #{tpu_custom_call.1} parent=15 // pred_fallthru
          _
        // Predicated region
        $region21: #{tpu_custom_call.1} parent=15 // pred_check
          %p309 = pneg %p81
        $region22: #{tpu_custom_call.1} parent=15 // pred_check_branch
          %311 = sbr.rel (%p309) target = $region24
        $region23: #{tpu_custom_call.1} parent=15 // pred_region
          %p312 = scmp.lt.s32.totalorder %s28, 1
          %s313 = scalar_select %p312, %s28, 1
          %s314 = smul.addr %s313, 16
          %s315 = smul.addr %s314, 8
          %s316 = scalar_lea.vmem %s1, %s315
        $region24: #{tpu_custom_call.1} parent=15 // pred_fallthru
          _
        // Predicated region
        $region25: #{tpu_custom_call.1} parent=15 // pred_check
          %p317 = pneg %p107
        $region26: #{tpu_custom_call.1} parent=15 // pred_check_branch
          %319 = sbr.rel (%p317) target = $region28
        $region27: #{tpu_custom_call.1} parent=15 // pred_region
          %p320 = scmp.lt.s32.totalorder %s28, 1
          %s321 = scalar_select %p320, %s28, 1
          %s322 = smul.addr %s321, 4
          %s323 = smul.addr %s322, 4
          %s324 = scalar_lea.vmem %s2, %s323
        $region28: #{tpu_custom_call.1} parent=15 // pred_fallthru
          _
        // Predicated region
        $region29: #{tpu_custom_call.1} parent=15 // pred_check
          %p325 = pneg %p135
        $region30: #{tpu_custom_call.1} parent=15 // pred_check_branch
          %327 = sbr.rel (%p325) target = $region32
        $region31: #{tpu_custom_call.1} parent=15 // pred_region
          %p328 = scmp.lt.s32.totalorder %s28, 1
          %s329 = scalar_select %p328, %s28, 1
          %p330 = scmp.lt.s32.totalorder %s29, 0
          %s331 = scalar_select %p330, %s29, 0
          %s332 = smul.addr %s329, 4
          %s333 = sadd.s32 %s331, %s332
          %s334 = smul.addr %s333, 4
          %s335 = scalar_lea.vmem %s3, %s334
        $region32: #{tpu_custom_call.1} parent=15 // pred_fallthru
          _
        // Predicated region
        $region33: #{tpu_custom_call.1} parent=15 // pred_check
          %p336 = pneg %p163
        $region34: #{tpu_custom_call.1} parent=15 // pred_check_branch
          %338 = sbr.rel (%p336) target = $region36
        $region35: #{tpu_custom_call.1} parent=15 // pred_region
          %s339 = smul.u32 8, %s29
          %p340 = scmp.lt.s32.totalorder %s28, 1
          %s341 = scalar_select %p340, %s28, 1
          %p342 = scmp.lt.s32.totalorder %s339, 7
          %s343 = scalar_select %p342, %s339, 7
          %s344 = smul.addr %s341, 8
          %s345 = sadd.s32 %s343, %s344
          %s346 = smul.addr %s345, 4
          %s347 = scalar_lea.vmem %s4, %s346
          %s348 = smul.u32 8, %s29
        $region36: #{tpu_custom_call.1} parent=15 // pred_fallthru
          _
        // Predicated region
        $region37: #{tpu_custom_call.1} parent=15 // pred_check
          %p349 = pneg %p189
        $region38: #{tpu_custom_call.1} parent=15 // pred_check_branch
          %351 = sbr.rel (%p349) target = $region40
        $region39: #{tpu_custom_call.1} parent=15 // pred_region
          %p352 = scmp.lt.s32.totalorder %s28, 1
          %s353 = scalar_select %p352, %s28, 1
          %s354 = scalar_lea.vmem %s5, %s353
        $region40: #{tpu_custom_call.1} parent=15 // pred_fallthru
          _
        // Predicated region
        $region41: #{tpu_custom_call.1} parent=15 // pred_check
          %p355 = pneg %p217
        $region42: #{tpu_custom_call.1} parent=15 // pred_check_branch
          %357 = sbr.rel (%p355) target = $region44
        $region43: #{tpu_custom_call.1} parent=15 // pred_region
          %p358 = scmp.lt.s32.totalorder %s28, 1
          %s359 = scalar_select %p358, %s28, 1
          %p360 = scmp.lt.s32.totalorder %s29, 0
          %s361 = scalar_select %p360, %s29, 0
          %s362 = sadd.s32 %s361, %s359
          %s363 = smul.addr %s362, 8
          %s364 = scalar_lea.vmem %s6, %s363
        $region44: #{tpu_custom_call.1} parent=15 // pred_fallthru
          _
      $region16: #{tpu_custom_call.1} parent=5 // pred_fallthru
        _
      %p365 = scmp.le.s32.totalorder 1, %s21
      %p366 = scmp.lt.s32.totalorder %s21, 3
      %p367 = pnand %p365, %p366
      %p368 = pneg %p367
      // Predicated region
      $region45: #{tpu_custom_call.1} parent=5 // pred_check
        _
      $region46: #{tpu_custom_call.1} parent=5 // pred_check_branch
        %370 = sbr.rel (%p367) target = $region48
      $region47: #{tpu_custom_call.1} parent=5 // pred_region
        %s371 = ssub.s32 %s21, 1
        %p372 = scmp.lt.s32.totalorder %s30, 1
        %s373 = scalar_select %p372, %s30, 1
        %p374 = scmp.lt.s32.totalorder %s31, 0
        %s375 = scalar_select %p374, %s31, 0
        %s376 = smul.addr %s373, 4
        %s377 = sadd.s32 %s375, %s376
        %s378 = smul.addr %s377, 8
        %s379 = scalar_lea.vmem %s0, %s378
        %p380 = pneg %p61
        %p381 = pneg %p58
        %p382 = scmp.lt.s32.totalorder %s30, 1
        %s383 = scalar_select %p382, %s30, 1
        %s384 = smul.addr %s383, 16
        %s385 = smul.addr %s384, 8
        %s386 = scalar_lea.vmem %s1, %s385
        %p387 = pneg %p87
        %p388 = pneg %p84
        %p389 = scmp.lt.s32.totalorder %s30, 1
        %s390 = scalar_select %p389, %s30, 1
        %s391 = smul.addr %s390, 4
        %s392 = smul.addr %s391, 4
        %s393 = scalar_lea.vmem %s2, %s392
        %p394 = pneg %p113
        %p395 = pneg %p110
        %p396 = scmp.lt.s32.totalorder %s30, 1
        %s397 = scalar_select %p396, %s30, 1
        %p398 = scmp.lt.s32.totalorder %s31, 0
        %s399 = scalar_select %p398, %s31, 0
        %s400 = smul.addr %s397, 4
        %s401 = sadd.s32 %s399, %s400
        %s402 = smul.addr %s401, 4
        %s403 = scalar_lea.vmem %s3, %s402
        %p404 = pneg %p141
        %p405 = pneg %p138
        %s406 = smul.u32 8, %s31
        %p407 = scmp.lt.s32.totalorder %s30, 1
        %s408 = scalar_select %p407, %s30, 1
        %p409 = scmp.lt.s32.totalorder %s406, 7
        %s410 = scalar_select %p409, %s406, 7
        %s411 = smul.addr %s408, 8
        %s412 = sadd.s32 %s410, %s411
        %s413 = smul.addr %s412, 4
        %s414 = scalar_lea.vmem %s4, %s413
        %p415 = pneg %p169
        %p416 = pneg %p166
        %p417 = scmp.lt.s32.totalorder %s30, 1
        %s418 = scalar_select %p417, %s30, 1
        %s419 = scalar_lea.vmem %s5, %s418
        %p420 = pneg %p195
        %p421 = pneg %p192
        %p422 = scmp.lt.s32.totalorder %s30, 1
        %s423 = scalar_select %p422, %s30, 1
        %p424 = scmp.lt.s32.totalorder %s31, 0
        %s425 = scalar_select %p424, %s31, 0
        %s426 = sadd.s32 %s425, %s423
        %s427 = smul.addr %s426, 8
        %s428 = scalar_lea.vmem %s6, %s427
        %p429 = pneg %p223
        %p430 = pneg %p220
        %p431 = pneg %p251
        %p432 = pneg %p248
        %s433 = sand.u32 %s238, 1
        %s434 = scalar_lea.sflag [#allocation3], %s433
        %s435 = sand.u32 %s238, 1
        %s436 = smul.addr %s435, 16
        %s437 = scalar_lea.vmem [#allocation2], %s436
        %p438 = pneg %p279
        %p439 = pneg %p276
        %s440 = sand.u32 %s266, 1
        %s441 = scalar_lea.sflag [#allocation5], %s440
        %s442 = sand.u32 %s266, 1
        %s443 = smul.addr %s442, 4
        %s444 = scalar_lea.vmem [#allocation4], %s443
        %p445 = scmp.lt.s32.totalorder %s30, 1
        %s446 = scalar_select %p445, %s30, 1
        %p447 = scmp.lt.s32.totalorder %s31, 0
        %s448 = scalar_select %p447, %s31, 0
        %s449 = smul.addr %s446, 4
        %s450 = sadd.s32 %s448, %s449
        %s451 = smul.addr %s450, 8
        %s452 = scalar_lea.vmem %s0, %s451
        %p453 = scmp.lt.s32.totalorder %s30, 1
        %s454 = scalar_select %p453, %s30, 1
        %s455 = smul.addr %s454, 16
        %s456 = smul.addr %s455, 8
        %s457 = scalar_lea.vmem %s1, %s456
        %p458 = scmp.lt.s32.totalorder %s30, 1
        %s459 = scalar_select %p458, %s30, 1
        %s460 = smul.addr %s459, 4
        %s461 = smul.addr %s460, 4
        %s462 = scalar_lea.vmem %s2, %s461
        %p463 = scmp.lt.s32.totalorder %s30, 1
        %s464 = scalar_select %p463, %s30, 1
        %p465 = scmp.lt.s32.totalorder %s31, 0
        %s466 = scalar_select %p465, %s31, 0
        %s467 = smul.addr %s464, 4
        %s468 = sadd.s32 %s466, %s467
        %s469 = smul.addr %s468, 4
        %s470 = scalar_lea.vmem %s3, %s469
        %s471 = smul.u32 8, %s31
        %p472 = scmp.lt.s32.totalorder %s30, 1
        %s473 = scalar_select %p472, %s30, 1
        %p474 = scmp.lt.s32.totalorder %s471, 7
        %s475 = scalar_select %p474, %s471, 7
        %s476 = smul.addr %s473, 8
        %s477 = sadd.s32 %s475, %s476
        %s478 = smul.addr %s477, 4
        %s479 = scalar_lea.vmem %s4, %s478
        %s480 = smul.u32 8, %s31
        %p481 = scmp.lt.s32.totalorder %s30, 1
        %s482 = scalar_select %p481, %s30, 1
        %s483 = scalar_lea.vmem %s5, %s482
        %p484 = scmp.lt.s32.totalorder %s30, 1
        %s485 = scalar_select %p484, %s30, 1
        %p486 = scmp.lt.s32.totalorder %s31, 0
        %s487 = scalar_select %p486, %s31, 0
        %s488 = sadd.s32 %s487, %s485
        %s489 = smul.addr %s488, 8
        %s490 = scalar_lea.vmem %s6, %s489
        %v492 = vld [vmem:[%s452] sm:$0xff]
        %v493 = vld [vmem:[%s452 + $0x8] sm:$0xff]
        %v494 = vld [vmem:[%s452 + $0x10] sm:$0xff]
        %v495 = vld [vmem:[%s452 + $0x18] sm:$0xff]
        %v496 = vld [vmem:[%s457] sm:$0xff]
        %v497 = vld [vmem:[%s457 + $0x8] sm:$0xff]
        %v498 = vld [vmem:[%s457 + $0x10] sm:$0xff]
        %v499 = vld [vmem:[%s457 + $0x18] sm:$0x3f]
        %v500 = vld [vmem:[%s457 + $0x20] sm:$0xff]
        %v501 = vld [vmem:[%s457 + $0x28] sm:$0xff]
        %v502 = vld [vmem:[%s457 + $0x30] sm:$0xff]
        %v503 = vld [vmem:[%s457 + $0x38] sm:$0x3f]
        %v504 = vld [vmem:[%s457 + $0x40] sm:$0xff]
        %v505 = vld [vmem:[%s457 + $0x48] sm:$0xff]
        %v506 = vld [vmem:[%s457 + $0x50] sm:$0xff]
        %v507 = vld [vmem:[%s457 + $0x58] sm:$0x3f]
        %v508 = vld [vmem:[%s457 + $0x60] sm:$0xff]
        %v509 = vld [vmem:[%s457 + $0x68] sm:$0xff]
        %v510 = vld [vmem:[%s457 + $0x70] sm:$0xff]
        %v511 = vld [vmem:[%s457 + $0x78] sm:$0x3f]
        %v512 = vld [vmem:[%s462] sm:$0xf]
        %v513 = vld [vmem:[%s462 + $0x4] sm:$0xf]
        %v514 = vld [vmem:[%s462 + $0x8] sm:$0xf]
        %v515 = vld [vmem:[%s462 + $0xc] sm:$0xf]
        %v516 = vld [vmem:[%s470] sm:$0xf]
        %v517 = vld [vmem:[%s470 + $0x4] sm:$0xf]
        %v518 = vld [vmem:[%s470 + $0x8] sm:$0xf]
        %v519 = vld [vmem:[%s470 + $0xc] sm:$0xf]
        %v520 = vld [vmem:[%s479] sm:$0xf]
        %v521 = vld [vmem:[%s479 + $0x4] sm:$0xf]
        %v522 = vld [vmem:[%s479 + $0x8] sm:$0xf]
        %v523 = vld [vmem:[%s479 + $0xc] sm:$0xf]
        %v524 = vld [vmem:[%s479 + $0x10] sm:$0xf]
        %v525 = vld [vmem:[%s479 + $0x14] sm:$0xf]
        %v526 = vld [vmem:[%s479 + $0x18] sm:$0xf]
        %v527 = vld [vmem:[%s479 + $0x1c] sm:$0xf]
        %v528 = vld [vmem:[%s483] sm:$0x1]
        %v529 = vld [vmem:[%s490] sm:$0xff]
        %v530 = vunpack.c.l.bf16 %v516
        %v531 = vunpack.c.l.bf16 %v517
        %v532 = vunpack.c.l.bf16 %v518
        %v533 = vunpack.c.l.bf16 %v519
        %vm534 = vcmask 244736
        %v536 = vsel %vm534, %v492, 0
        %vm538 = vcmask 1045504
        %v540 = vsel %vm538, %v499, 0
        %542 = vmatprep.subr.mxu0 0.0
        %543 = vmatpush1.msra.mxu0 0.0
        %544 = vmatprep.subr.mxu0 0.0
        %545 = vmatpush1.msra.mxu0 0.0
        %546 = vmatprep.subr.mxu0 0.0
        %547 = vmatpush1.msra.mxu0 0.0
        %548 = vmatprep.subr.mxu0 0.0
        %549 = vmatpush1.msra.mxu0 0.0
        %550 = vmatprep.subr.mxu0 0.0
        %551 = vmatpush1.msra.mxu0 0.0
        %552 = vmatprep.subr.mxu0 0.0
        %553 = vmatpush1.msra.mxu0 0.0
        %554 = vmatprep.subr.mxu0 0.0
        %555 = vmatpush1.msra.mxu0 0.0
        %556 = vmatprep.subr.mxu0 0.0
        %557 = vmatpush1.msra.mxu0 0.0
        %558 = vmatprep.subr.mxu0 0.0
        %559 = vmatpush1.msra.mxu0 0.0
        %560 = vmatprep.subr.mxu0 0.0
        %561 = vmatpush1.msra.mxu0 0.0
        %562 = vmatprep.subr.mxu0 0.0
        %563 = vmatpush1.msra.mxu0 0.0
        %564 = vmatprep.subr.mxu0 0.0
        %565 = vmatpush1.msra.mxu0 0.0
        %566 = vmatprep.subr.mxu0 0.0
        %567 = vmatpush1.msra.mxu0 %v540
        %568 = vmatprep.subr.mxu0 0.0
        %569 = vmatpush1.msra.mxu0 %v498
        %570 = vmatprep.subr.mxu0 0.0
        %571 = vmatpush1.msra.mxu0 %v497
        %572 = vmatprep.subr.mxu0 0.0
        %573 = vmatpush1.msra.mxu0 %v496
        %574 = vmatprep.subr.mxu0 0.0
        %575 = vmatpush2.msra.mxu0 0.0
        %576 = vmatprep.subr.mxu0 0.0
        %577 = vmatpush2.msra.mxu0 0.0
        %578 = vmatprep.subr.mxu0 0.0
        %579 = vmatpush2.msra.mxu0 0.0
        %580 = vmatprep.subr.mxu0 0.0
        %581 = vmatpush2.msra.mxu0 0.0
        %582 = vmatprep.subr.mxu0 0.0
        %583 = vmatpush2.msra.mxu0 0.0
        %584 = vmatprep.subr.mxu0 0.0
        %585 = vmatpush2.msra.mxu0 0.0
        %586 = vmatprep.subr.mxu0 0.0
        %587 = vmatpush2.msra.mxu0 0.0
        %588 = vmatprep.subr.mxu0 0.0
        %589 = vmatpush2.msra.mxu0 0.0
        %590 = vmatprep.subr.mxu0 0.0
        %591 = vmatpush2.msra.mxu0 0.0
        %592 = vmatprep.subr.mxu0 0.0
        %593 = vmatpush2.msra.mxu0 0.0
        %594 = vmatprep.subr.mxu0 0.0
        %595 = vmatpush2.msra.mxu0 0.0
        %596 = vmatprep.subr.mxu0 0.0
        %597 = vmatpush2.msra.mxu0 0.0
        %598 = vmatprep.subr.mxu0 0.0
        %599 = vmatpush2.msra.mxu0 0.0
        %600 = vmatprep.subr.mxu0 0.0
        %601 = vmatpush2.msra.mxu0 0.0
        %602 = vmatprep.subr.mxu0 0.0
        %603 = vmatpush2.msra.mxu0 0.0
        %604 = vmatprep.subr.mxu0 0.0
        %605 = vmatpush2.msra.mxu0 0.0
        %606 = vmatprep.mubr.f32.mxu0 0.0
        %607 = vmatmul.mubr.f32.gmra.mxu0 %v536
        %v608 = vpop.f32.mrf.mxu0
        %v609 = vadd.f32 %v530, %v608
        %v610 = vpop.f32.mrf.mxu0
        %611 = vdwg.mxu0
        %v613 = vsel %vm534, %v493, 0
        %v616 = vsel %vm538, %v503, 0
        %618 = vmatprep.subr.mxu0 0.0
        %619 = vmatpush1.msra.mxu0 0.0
        %620 = vmatprep.subr.mxu0 0.0
        %621 = vmatpush1.msra.mxu0 0.0
        %622 = vmatprep.subr.mxu0 0.0
        %623 = vmatpush1.msra.mxu0 0.0
        %624 = vmatprep.subr.mxu0 0.0
        %625 = vmatpush1.msra.mxu0 0.0
        %626 = vmatprep.subr.mxu0 0.0
        %627 = vmatpush1.msra.mxu0 0.0
        %628 = vmatprep.subr.mxu0 0.0
        %629 = vmatpush1.msra.mxu0 0.0
        %630 = vmatprep.subr.mxu0 0.0
        %631 = vmatpush1.msra.mxu0 0.0
        %632 = vmatprep.subr.mxu0 0.0
        %633 = vmatpush1.msra.mxu0 0.0
        %634 = vmatprep.subr.mxu0 0.0
        %635 = vmatpush1.msra.mxu0 0.0
        %636 = vmatprep.subr.mxu0 0.0
        %637 = vmatpush1.msra.mxu0 0.0
        %638 = vmatprep.subr.mxu0 0.0
        %639 = vmatpush1.msra.mxu0 0.0
        %640 = vmatprep.subr.mxu0 0.0
        %641 = vmatpush1.msra.mxu0 0.0
        %642 = vmatprep.subr.mxu0 0.0
        %643 = vmatpush1.msra.mxu0 %v616
        %644 = vmatprep.subr.mxu0 0.0
        %645 = vmatpush1.msra.mxu0 %v502
        %646 = vmatprep.subr.mxu0 0.0
        %647 = vmatpush1.msra.mxu0 %v501
        %648 = vmatprep.subr.mxu0 0.0
        %649 = vmatpush1.msra.mxu0 %v500
        %650 = vmatprep.subr.mxu0 0.0
        %651 = vmatpush2.msra.mxu0 0.0
        %652 = vmatprep.subr.mxu0 0.0
        %653 = vmatpush2.msra.mxu0 0.0
        %654 = vmatprep.subr.mxu0 0.0
        %655 = vmatpush2.msra.mxu0 0.0
        %656 = vmatprep.subr.mxu0 0.0
        %657 = vmatpush2.msra.mxu0 0.0
        %658 = vmatprep.subr.mxu0 0.0
        %659 = vmatpush2.msra.mxu0 0.0
        %660 = vmatprep.subr.mxu0 0.0
        %661 = vmatpush2.msra.mxu0 0.0
        %662 = vmatprep.subr.mxu0 0.0
        %663 = vmatpush2.msra.mxu0 0.0
        %664 = vmatprep.subr.mxu0 0.0
        %665 = vmatpush2.msra.mxu0 0.0
        %666 = vmatprep.subr.mxu0 0.0
        %667 = vmatpush2.msra.mxu0 0.0
        %668 = vmatprep.subr.mxu0 0.0
        %669 = vmatpush2.msra.mxu0 0.0
        %670 = vmatprep.subr.mxu0 0.0
        %671 = vmatpush2.msra.mxu0 0.0
        %672 = vmatprep.subr.mxu0 0.0
        %673 = vmatpush2.msra.mxu0 0.0
        %674 = vmatprep.subr.mxu0 0.0
        %675 = vmatpush2.msra.mxu0 0.0
        %676 = vmatprep.subr.mxu0 0.0
        %677 = vmatpush2.msra.mxu0 0.0
        %678 = vmatprep.subr.mxu0 0.0
        %679 = vmatpush2.msra.mxu0 0.0
        %680 = vmatprep.subr.mxu0 0.0
        %681 = vmatpush2.msra.mxu0 0.0
        %682 = vmatprep.mubr.f32.mxu0 0.0
        %683 = vmatmul.mubr.f32.gmra.mxu0 %v613
        %v684 = vpop.f32.mrf.mxu0
        %v685 = vadd.f32 %v531, %v684
        %v686 = vpop.f32.mrf.mxu0
        %687 = vdwg.mxu0
        %v689 = vsel %vm534, %v494, 0
        %v692 = vsel %vm538, %v507, 0
        %694 = vmatprep.subr.mxu0 0.0
        %695 = vmatpush1.msra.mxu0 0.0
        %696 = vmatprep.subr.mxu0 0.0
        %697 = vmatpush1.msra.mxu0 0.0
        %698 = vmatprep.subr.mxu0 0.0
        %699 = vmatpush1.msra.mxu0 0.0
        %700 = vmatprep.subr.mxu0 0.0
        %701 = vmatpush1.msra.mxu0 0.0
        %702 = vmatprep.subr.mxu0 0.0
        %703 = vmatpush1.msra.mxu0 0.0
        %704 = vmatprep.subr.mxu0 0.0
        %705 = vmatpush1.msra.mxu0 0.0
        %706 = vmatprep.subr.mxu0 0.0
        %707 = vmatpush1.msra.mxu0 0.0
        %708 = vmatprep.subr.mxu0 0.0
        %709 = vmatpush1.msra.mxu0 0.0
        %710 = vmatprep.subr.mxu0 0.0
        %711 = vmatpush1.msra.mxu0 0.0
        %712 = vmatprep.subr.mxu0 0.0
        %713 = vmatpush1.msra.mxu0 0.0
        %714 = vmatprep.subr.mxu0 0.0
        %715 = vmatpush1.msra.mxu0 0.0
        %716 = vmatprep.subr.mxu0 0.0
        %717 = vmatpush1.msra.mxu0 0.0
        %718 = vmatprep.subr.mxu0 0.0
        %719 = vmatpush1.msra.mxu0 %v692
        %720 = vmatprep.subr.mxu0 0.0
        %721 = vmatpush1.msra.mxu0 %v506
        %722 = vmatprep.subr.mxu0 0.0
        %723 = vmatpush1.msra.mxu0 %v505
        %724 = vmatprep.subr.mxu0 0.0
        %725 = vmatpush1.msra.mxu0 %v504
        %726 = vmatprep.subr.mxu0 0.0
        %727 = vmatpush2.msra.mxu0 0.0
        %728 = vmatprep.subr.mxu0 0.0
        %729 = vmatpush2.msra.mxu0 0.0
        %730 = vmatprep.subr.mxu0 0.0
        %731 = vmatpush2.msra.mxu0 0.0
        %732 = vmatprep.subr.mxu0 0.0
        %733 = vmatpush2.msra.mxu0 0.0
        %734 = vmatprep.subr.mxu0 0.0
        %735 = vmatpush2.msra.mxu0 0.0
        %736 = vmatprep.subr.mxu0 0.0
        %737 = vmatpush2.msra.mxu0 0.0
        %738 = vmatprep.subr.mxu0 0.0
        %739 = vmatpush2.msra.mxu0 0.0
        %740 = vmatprep.subr.mxu0 0.0
        %741 = vmatpush2.msra.mxu0 0.0
        %742 = vmatprep.subr.mxu0 0.0
        %743 = vmatpush2.msra.mxu0 0.0
        %744 = vmatprep.subr.mxu0 0.0
        %745 = vmatpush2.msra.mxu0 0.0
        %746 = vmatprep.subr.mxu0 0.0
        %747 = vmatpush2.msra.mxu0 0.0
        %748 = vmatprep.subr.mxu0 0.0
        %749 = vmatpush2.msra.mxu0 0.0
        %750 = vmatprep.subr.mxu0 0.0
        %751 = vmatpush2.msra.mxu0 0.0
        %752 = vmatprep.subr.mxu0 0.0
        %753 = vmatpush2.msra.mxu0 0.0
        %754 = vmatprep.subr.mxu0 0.0
        %755 = vmatpush2.msra.mxu0 0.0
        %756 = vmatprep.subr.mxu0 0.0
        %757 = vmatpush2.msra.mxu0 0.0
        %758 = vmatprep.mubr.f32.mxu0 0.0
        %759 = vmatmul.mubr.f32.gmra.mxu0 %v689
        %v760 = vpop.f32.mrf.mxu0
        %v761 = vadd.f32 %v532, %v760
        %v762 = vpop.f32.mrf.mxu0
        %763 = vdwg.mxu0
        %v765 = vsel %vm534, %v495, 0
        %v768 = vsel %vm538, %v511, 0
        %770 = vmatprep.subr.mxu0 0.0
        %771 = vmatpush1.msra.mxu0 0.0
        %772 = vmatprep.subr.mxu0 0.0
        %773 = vmatpush1.msra.mxu0 0.0
        %774 = vmatprep.subr.mxu0 0.0
        %775 = vmatpush1.msra.mxu0 0.0
        %776 = vmatprep.subr.mxu0 0.0
        %777 = vmatpush1.msra.mxu0 0.0
        %778 = vmatprep.subr.mxu0 0.0
        %779 = vmatpush1.msra.mxu0 0.0
        %780 = vmatprep.subr.mxu0 0.0
        %781 = vmatpush1.msra.mxu0 0.0
        %782 = vmatprep.subr.mxu0 0.0
        %783 = vmatpush1.msra.mxu0 0.0
        %784 = vmatprep.subr.mxu0 0.0
        %785 = vmatpush1.msra.mxu0 0.0
        %786 = vmatprep.subr.mxu0 0.0
        %787 = vmatpush1.msra.mxu0 0.0
        %788 = vmatprep.subr.mxu0 0.0
        %789 = vmatpush1.msra.mxu0 0.0
        %790 = vmatprep.subr.mxu0 0.0
        %791 = vmatpush1.msra.mxu0 0.0
        %792 = vmatprep.subr.mxu0 0.0
        %793 = vmatpush1.msra.mxu0 0.0
        %794 = vmatprep.subr.mxu0 0.0
        %795 = vmatpush1.msra.mxu0 %v768
        %796 = vmatprep.subr.mxu0 0.0
        %797 = vmatpush1.msra.mxu0 %v510
        %798 = vmatprep.subr.mxu0 0.0
        %799 = vmatpush1.msra.mxu0 %v509
        %800 = vmatprep.subr.mxu0 0.0
        %801 = vmatpush1.msra.mxu0 %v508
        %802 = vmatprep.subr.mxu0 0.0
        %803 = vmatpush2.msra.mxu0 0.0
        %804 = vmatprep.subr.mxu0 0.0
        %805 = vmatpush2.msra.mxu0 0.0
        %806 = vmatprep.subr.mxu0 0.0
        %807 = vmatpush2.msra.mxu0 0.0
        %808 = vmatprep.subr.mxu0 0.0
        %809 = vmatpush2.msra.mxu0 0.0
        %810 = vmatprep.subr.mxu0 0.0
        %811 = vmatpush2.msra.mxu0 0.0
        %812 = vmatprep.subr.mxu0 0.0
        %813 = vmatpush2.msra.mxu0 0.0
        %814 = vmatprep.subr.mxu0 0.0
        %815 = vmatpush2.msra.mxu0 0.0
        %816 = vmatprep.subr.mxu0 0.0
        %817 = vmatpush2.msra.mxu0 0.0
        %818 = vmatprep.subr.mxu0 0.0
        %819 = vmatpush2.msra.mxu0 0.0
        %820 = vmatprep.subr.mxu0 0.0
        %821 = vmatpush2.msra.mxu0 0.0
        %822 = vmatprep.subr.mxu0 0.0
        %823 = vmatpush2.msra.mxu0 0.0
        %824 = vmatprep.subr.mxu0 0.0
        %825 = vmatpush2.msra.mxu0 0.0
        %826 = vmatprep.subr.mxu0 0.0
        %827 = vmatpush2.msra.mxu0 0.0
        %828 = vmatprep.subr.mxu0 0.0
        %829 = vmatpush2.msra.mxu0 0.0
        %830 = vmatprep.subr.mxu0 0.0
        %831 = vmatpush2.msra.mxu0 0.0
        %832 = vmatprep.subr.mxu0 0.0
        %833 = vmatpush2.msra.mxu0 0.0
        %834 = vmatprep.mubr.f32.mxu0 0.0
        %835 = vmatmul.mubr.f32.gmra.mxu0 %v765
        %v836 = vpop.f32.mrf.mxu0
        %v837 = vadd.f32 %v533, %v836
        %v838 = vpop.f32.mrf.mxu0
        %839 = vdwg.mxu0
        %841 = vset.pattern.permute.xlu0 0
        %842 = vperm.xlu0 %841, %v529
        %v843 = vpop.permute.xlu0 %842
        %v846 = vlaneseq
        %v847 = vshrl.u32 %v846, 7
        %v848 = vsub.s32 0, %v847
        %v849 = vrot.slane %v528, %v848
        %v851 = vmul.f32 %v843, %v849
        %v852 = vsub.f32 %v851, 1.0
        %v853 = vmul.f32 %v852, 100000.0
        %v854 = vadd.f32 %v609, %v853
        %v855 = vadd.f32 %v685, %v853
        %v856 = vadd.f32 %v761, %v853
        %v857 = vadd.f32 %v837, %v853
        %vm858 = vcmask 64512
        %v859 = vsel %vm858, %v854, -inf
        %860 = vmax.xlane.f32.xlu0 %v859
        %v861 = vpop.xlane.xlu0 %860
        %v862 = vsel %vm858, %v855, -inf
        %863 = vmax.xlane.f32.xlu0 %v862
        %v864 = vpop.xlane.xlu0 %863
        %v865 = vsel %vm858, %v856, -inf
        %866 = vmax.xlane.f32.xlu0 %v865
        %v867 = vpop.xlane.xlu0 %866
        %v868 = vsel %vm858, %v857, -inf
        %869 = vmax.xlane.f32.xlu0 %v868
        %v870 = vpop.xlane.xlu0 %869
        %v871 = vsub.f32 %v854, %v861
        %v872 = vsub.f32 %v855, %v864
        %v873 = vsub.f32 %v856, %v867
        %v874 = vsub.f32 %v857, %v870
        %v875 = vmul.f32 %v871, 1.442695
        %v876 = vpow.pop %v875
        %v877 = vmul.f32 %v872, 1.442695
        %v878 = vpow.pop %v877
        %v879 = vmul.f32 %v873, 1.442695
        %v880 = vpow.pop %v879
        %v881 = vmul.f32 %v874, 1.442695
        %v882 = vpow.pop %v881
        %v883 = vsel %vm858, %v876, 0.0
        %884 = vadd.xlane.f32.xlu0 %v883
        %v885 = vpop.xlane.xlu0 %884
        %v886 = vsel %vm858, %v878, 0.0
        %887 = vadd.xlane.f32.xlu0 %v886
        %v888 = vpop.xlane.xlu0 %887
        %v889 = vsel %vm858, %v880, 0.0
        %890 = vadd.xlane.f32.xlu0 %v889
        %v891 = vpop.xlane.xlu0 %890
        %v892 = vsel %vm858, %v882, 0.0
        %893 = vadd.xlane.f32.xlu0 %v892
        %v894 = vpop.xlane.xlu0 %893
        %v895 = vrcp.pop %v885
        %v896 = vrcp.pop %v888
        %v897 = vrcp.pop %v891
        %v898 = vrcp.pop %v894
        %v899 = vmul.f32 %v876, %v895
        %v900 = vmul.f32 %v878, %v896
        %v901 = vmul.f32 %v880, %v897
        %v902 = vmul.f32 %v882, %v898
        %v903 = vpack.c.bf16 %v899, %v899
        %v904 = vpack.c.bf16 %v900, %v900
        %v905 = vpack.c.bf16 %v901, %v901
        %v906 = vpack.c.bf16 %v902, %v902
        %v908 = vsel %vm858, %v903, 0
        %vm910 = vcmask 1043456
        %v912 = vsel %vm910, %v512, 0
        %914 = vmatprep.subr.bf16.mxu0 0
        %915 = vmatpush1.bf16.msra.mxu0 0
        %916 = vmatprep.subr.bf16.mxu0 0
        %917 = vmatpush1.bf16.msra.mxu0 0
        %918 = vmatprep.subr.bf16.mxu0 0
        %919 = vmatpush1.bf16.msra.mxu0 0
        %920 = vmatprep.subr.bf16.mxu0 0
        %921 = vmatpush1.bf16.msra.mxu0 0
        %922 = vmatprep.subr.bf16.mxu0 0
        %923 = vmatpush1.bf16.msra.mxu0 0
        %924 = vmatprep.subr.bf16.mxu0 0
        %925 = vmatpush1.bf16.msra.mxu0 0
        %926 = vmatprep.subr.bf16.mxu0 0
        %927 = vmatpush1.bf16.msra.mxu0 0
        %928 = vmatprep.subr.bf16.mxu0 0
        %929 = vmatpush1.bf16.msra.mxu0 %v912
        %930 = vmatprep.subr.bf16.mxu0 0
        %931 = vmatpush2.bf16.msra.mxu0 0
        %932 = vmatprep.subr.bf16.mxu0 0
        %933 = vmatpush2.bf16.msra.mxu0 0
        %934 = vmatprep.subr.bf16.mxu0 0
        %935 = vmatpush2.bf16.msra.mxu0 0
        %936 = vmatprep.subr.bf16.mxu0 0
        %937 = vmatpush2.bf16.msra.mxu0 0
        %938 = vmatprep.subr.bf16.mxu0 0
        %939 = vmatpush2.bf16.msra.mxu0 0
        %940 = vmatprep.subr.bf16.mxu0 0
        %941 = vmatpush2.bf16.msra.mxu0 0
        %942 = vmatprep.subr.bf16.mxu0 0
        %943 = vmatpush2.bf16.msra.mxu0 0
        %944 = vmatprep.subr.bf16.mxu0 0
        %945 = vmatpush2.bf16.msra.mxu0 0
        %946 = vmatprep.mubr.bf16.mxu0 0
        %947 = vmatmul.mubr.bf16.gmra.mxu0 %v908
        %v948 = vpop.f32.mrf.mxu0
        %v949 = vadd.f32 0.0, %v948
        %v950 = vpop.f32.mrf.mxu0
        %v951 = vpop.f32.mrf.mxu0
        %v952 = vpop.f32.mrf.mxu0
        %953 = vdwg.mxu0
        %v955 = vsel %vm858, %v904, 0
        %v958 = vsel %vm910, %v513, 0
        %960 = vmatprep.subr.bf16.mxu0 0
        %961 = vmatpush1.bf16.msra.mxu0 0
        %962 = vmatprep.subr.bf16.mxu0 0
        %963 = vmatpush1.bf16.msra.mxu0 0
        %964 = vmatprep.subr.bf16.mxu0 0
        %965 = vmatpush1.bf16.msra.mxu0 0
        %966 = vmatprep.subr.bf16.mxu0 0
        %967 = vmatpush1.bf16.msra.mxu0 0
        %968 = vmatprep.subr.bf16.mxu0 0
        %969 = vmatpush1.bf16.msra.mxu0 0
        %970 = vmatprep.subr.bf16.mxu0 0
        %971 = vmatpush1.bf16.msra.mxu0 0
        %972 = vmatprep.subr.bf16.mxu0 0
        %973 = vmatpush1.bf16.msra.mxu0 0
        %974 = vmatprep.subr.bf16.mxu0 0
        %975 = vmatpush1.bf16.msra.mxu0 %v958
        %976 = vmatprep.subr.bf16.mxu0 0
        %977 = vmatpush2.bf16.msra.mxu0 0
        %978 = vmatprep.subr.bf16.mxu0 0
        %979 = vmatpush2.bf16.msra.mxu0 0
        %980 = vmatprep.subr.bf16.mxu0 0
        %981 = vmatpush2.bf16.msra.mxu0 0
        %982 = vmatprep.subr.bf16.mxu0 0
        %983 = vmatpush2.bf16.msra.mxu0 0
        %984 = vmatprep.subr.bf16.mxu0 0
        %985 = vmatpush2.bf16.msra.mxu0 0
        %986 = vmatprep.subr.bf16.mxu0 0
        %987 = vmatpush2.bf16.msra.mxu0 0
        %988 = vmatprep.subr.bf16.mxu0 0
        %989 = vmatpush2.bf16.msra.mxu0 0
        %990 = vmatprep.subr.bf16.mxu0 0
        %991 = vmatpush2.bf16.msra.mxu0 0
        %992 = vmatprep.mubr.bf16.mxu0 0
        %993 = vmatmul.mubr.bf16.gmra.mxu0 %v955
        %v994 = vpop.f32.mrf.mxu0
        %v995 = vadd.f32 0.0, %v994
        %v996 = vpop.f32.mrf.mxu0
        %v997 = vpop.f32.mrf.mxu0
        %v998 = vpop.f32.mrf.mxu0
        %999 = vdwg.mxu0
        %v1001 = vsel %vm858, %v905, 0
        %v1004 = vsel %vm910, %v514, 0
        %1006 = vmatprep.subr.bf16.mxu0 0
        %1007 = vmatpush1.bf16.msra.mxu0 0
        %1008 = vmatprep.subr.bf16.mxu0 0
        %1009 = vmatpush1.bf16.msra.mxu0 0
        %1010 = vmatprep.subr.bf16.mxu0 0
        %1011 = vmatpush1.bf16.msra.mxu0 0
        %1012 = vmatprep.subr.bf16.mxu0 0
        %1013 = vmatpush1.bf16.msra.mxu0 0
        %1014 = vmatprep.subr.bf16.mxu0 0
        %1015 = vmatpush1.bf16.msra.mxu0 0
        %1016 = vmatprep.subr.bf16.mxu0 0
        %1017 = vmatpush1.bf16.msra.mxu0 0
        %1018 = vmatprep.subr.bf16.mxu0 0
        %1019 = vmatpush1.bf16.msra.mxu0 0
        %1020 = vmatprep.subr.bf16.mxu0 0
        %1021 = vmatpush1.bf16.msra.mxu0 %v1004
        %1022 = vmatprep.subr.bf16.mxu0 0
        %1023 = vmatpush2.bf16.msra.mxu0 0
        %1024 = vmatprep.subr.bf16.mxu0 0
        %1025 = vmatpush2.bf16.msra.mxu0 0
        %1026 = vmatprep.subr.bf16.mxu0 0
        %1027 = vmatpush2.bf16.msra.mxu0 0
        %1028 = vmatprep.subr.bf16.mxu0 0
        %1029 = vmatpush2.bf16.msra.mxu0 0
        %1030 = vmatprep.subr.bf16.mxu0 0
        %1031 = vmatpush2.bf16.msra.mxu0 0
        %1032 = vmatprep.subr.bf16.mxu0 0
        %1033 = vmatpush2.bf16.msra.mxu0 0
        %1034 = vmatprep.subr.bf16.mxu0 0
        %1035 = vmatpush2.bf16.msra.mxu0 0
        %1036 = vmatprep.subr.bf16.mxu0 0
        %1037 = vmatpush2.bf16.msra.mxu0 0
        %1038 = vmatprep.mubr.bf16.mxu0 0
        %1039 = vmatmul.mubr.bf16.gmra.mxu0 %v1001
        %v1040 = vpop.f32.mrf.mxu0
        %v1041 = vadd.f32 0.0, %v1040
        %v1042 = vpop.f32.mrf.mxu0
        %v1043 = vpop.f32.mrf.mxu0
        %v1044 = vpop.f32.mrf.mxu0
        %1045 = vdwg.mxu0
        %v1047 = vsel %vm858, %v906, 0
        %v1050 = vsel %vm910, %v515, 0
        %1052 = vmatprep.subr.bf16.mxu0 0
        %1053 = vmatpush1.bf16.msra.mxu0 0
        %1054 = vmatprep.subr.bf16.mxu0 0
        %1055 = vmatpush1.bf16.msra.mxu0 0
        %1056 = vmatprep.subr.bf16.mxu0 0
        %1057 = vmatpush1.bf16.msra.mxu0 0
        %1058 = vmatprep.subr.bf16.mxu0 0
        %1059 = vmatpush1.bf16.msra.mxu0 0
        %1060 = vmatprep.subr.bf16.mxu0 0
        %1061 = vmatpush1.bf16.msra.mxu0 0
        %1062 = vmatprep.subr.bf16.mxu0 0
        %1063 = vmatpush1.bf16.msra.mxu0 0
        %1064 = vmatprep.subr.bf16.mxu0 0
        %1065 = vmatpush1.bf16.msra.mxu0 0
        %1066 = vmatprep.subr.bf16.mxu0 0
        %1067 = vmatpush1.bf16.msra.mxu0 %v1050
        %1068 = vmatprep.subr.bf16.mxu0 0
        %1069 = vmatpush2.bf16.msra.mxu0 0
        %1070 = vmatprep.subr.bf16.mxu0 0
        %1071 = vmatpush2.bf16.msra.mxu0 0
        %1072 = vmatprep.subr.bf16.mxu0 0
        %1073 = vmatpush2.bf16.msra.mxu0 0
        %1074 = vmatprep.subr.bf16.mxu0 0
        %1075 = vmatpush2.bf16.msra.mxu0 0
        %1076 = vmatprep.subr.bf16.mxu0 0
        %1077 = vmatpush2.bf16.msra.mxu0 0
        %1078 = vmatprep.subr.bf16.mxu0 0
        %1079 = vmatpush2.bf16.msra.mxu0 0
        %1080 = vmatprep.subr.bf16.mxu0 0
        %1081 = vmatpush2.bf16.msra.mxu0 0
        %1082 = vmatprep.subr.bf16.mxu0 0
        %1083 = vmatpush2.bf16.msra.mxu0 0
        %1084 = vmatprep.mubr.bf16.mxu0 0
        %1085 = vmatmul.mubr.bf16.gmra.mxu0 %v1047
        %v1086 = vpop.f32.mrf.mxu0
        %v1087 = vadd.f32 0.0, %v1086
        %v1088 = vpop.f32.mrf.mxu0
        %v1089 = vpop.f32.mrf.mxu0
        %v1090 = vpop.f32.mrf.mxu0
        %1091 = vdwg.mxu0
        %v1092 = vcombine.low %v949, %v1041
        %v1093 = vcombine.high %v949, %v1041
        %v1095 = vunpack.c.l.s4 1983009808
        %v1096 = vunpack.c.0.s8 %v1095
        %v1097 = vlaneseq
        %v1098 = vshrl.u32 %v1097, 7
        %v1099 = vsub.s32 %v1096, %v1098
        %v1100 = vrot.slane %v1092, %v1099
        %v1102 = vunpack.c.l.s4 1983009808
        %v1103 = vunpack.c.0.s8 %v1102
        %v1104 = vlaneseq
        %v1105 = vshrl.u32 %v1104, 7
        %v1106 = vsub.s32 %v1103, %v1105
        %v1107 = vrot.slane %v1093, %v1106
        %v1108 = vcombine.low %v995, %v1087
        %v1109 = vcombine.high %v995, %v1087
        %v1111 = vunpack.c.l.s4 1983009808
        %v1112 = vunpack.c.0.s8 %v1111
        %v1113 = vlaneseq
        %v1114 = vshrl.u32 %v1113, 7
        %v1115 = vsub.s32 %v1112, %v1114
        %v1116 = vrot.slane %v1108, %v1115
        %v1118 = vunpack.c.l.s4 1983009808
        %v1119 = vunpack.c.0.s8 %v1118
        %v1120 = vlaneseq
        %v1121 = vshrl.u32 %v1120, 7
        %v1122 = vsub.s32 %v1119, %v1121
        %v1123 = vrot.slane %v1109, %v1122
        %v1124 = vcombine.low %v1100, %v1116
        %v1125 = vcombine.high %v1100, %v1116
        %v1127 = vunpack.c.l.s4 1934713408
        %v1128 = vunpack.c.0.s8 %v1127
        %v1129 = vlaneseq
        %v1130 = vshrl.u32 %v1129, 7
        %v1131 = vsub.s32 %v1128, %v1130
        %v1132 = vrot.slane %v1124, %v1131
        %v1134 = vunpack.c.l.s4 1934713408
        %v1135 = vunpack.c.0.s8 %v1134
        %v1136 = vlaneseq
        %v1137 = vshrl.u32 %v1136, 7
        %v1138 = vsub.s32 %v1135, %v1137
        %v1139 = vrot.slane %v1125, %v1138
        %v1140 = vcombine.low %v1107, %v1123
        %v1141 = vcombine.high %v1107, %v1123
        %v1143 = vunpack.c.l.s4 1934713408
        %v1144 = vunpack.c.0.s8 %v1143
        %v1145 = vlaneseq
        %v1146 = vshrl.u32 %v1145, 7
        %v1147 = vsub.s32 %v1144, %v1146
        %v1148 = vrot.slane %v1140, %v1147
        %v1150 = vunpack.c.l.s4 1934713408
        %v1151 = vunpack.c.0.s8 %v1150
        %v1152 = vlaneseq
        %v1153 = vshrl.u32 %v1152, 7
        %v1154 = vsub.s32 %v1151, %v1153
        %v1155 = vrot.slane %v1141, %v1154
        %v1156 = vcombine.high %v1132, 0.0
        %v1157 = vcombine.high %v1139, 0.0
        %v1158 = vcombine.high %v1148, 0.0
        %v1159 = vcombine.high %v1155, 0.0
        %v1160 = vcombine.low %v1132, %v1139
        %v1162 = vunpack.c.l.s4 1983009808
        %v1163 = vunpack.c.0.s8 %v1162
        %v1164 = vlaneseq
        %v1165 = vshrl.u32 %v1164, 7
        %v1166 = vsub.s32 %v1163, %v1165
        %v1167 = vrot.slane %v1160, %v1166
        %v1168 = vcombine.low %v1156, %v1157
        %v1170 = vunpack.c.l.s4 1983009808
        %v1171 = vunpack.c.0.s8 %v1170
        %v1172 = vlaneseq
        %v1173 = vshrl.u32 %v1172, 7
        %v1174 = vsub.s32 %v1171, %v1173
        %v1175 = vrot.slane %v1168, %v1174
        %v1176 = vcombine.low %v1148, %v1155
        %v1178 = vunpack.c.l.s4 1983009808
        %v1179 = vunpack.c.0.s8 %v1178
        %v1180 = vlaneseq
        %v1181 = vshrl.u32 %v1180, 7
        %v1182 = vsub.s32 %v1179, %v1181
        %v1183 = vrot.slane %v1176, %v1182
        %v1184 = vcombine.low %v1158, %v1159
        %v1186 = vunpack.c.l.s4 1983009808
        %v1187 = vunpack.c.0.s8 %v1186
        %v1188 = vlaneseq
        %v1189 = vshrl.u32 %v1188, 7
        %v1190 = vsub.s32 %v1187, %v1189
        %v1191 = vrot.slane %v1184, %v1190
        %v1192 = vcombine.low %v1167, %v1175
        %v1193 = vcombine.high %v1167, %v1175
        %v1195 = vunpack.c.l.s4 1934713408
        %v1196 = vunpack.c.0.s8 %v1195
        %v1197 = vlaneseq
        %v1198 = vshrl.u32 %v1197, 7
        %v1199 = vsub.s32 %v1196, %v1198
        %v1200 = vrot.slane %v1192, %v1199
        %v1202 = vunpack.c.l.s4 1934713408
        %v1203 = vunpack.c.0.s8 %v1202
        %v1204 = vlaneseq
        %v1205 = vshrl.u32 %v1204, 7
        %v1206 = vsub.s32 %v1203, %v1205
        %v1207 = vrot.slane %v1193, %v1206
        %v1208 = vcombine.low %v1183, %v1191
        %v1209 = vcombine.high %v1183, %v1191
        %v1211 = vunpack.c.l.s4 1934713408
        %v1212 = vunpack.c.0.s8 %v1211
        %v1213 = vlaneseq
        %v1214 = vshrl.u32 %v1213, 7
        %v1215 = vsub.s32 %v1212, %v1214
        %v1216 = vrot.slane %v1208, %v1215
        %v1218 = vunpack.c.l.s4 1934713408
        %v1219 = vunpack.c.0.s8 %v1218
        %v1220 = vlaneseq
        %v1221 = vshrl.u32 %v1220, 7
        %v1222 = vsub.s32 %v1219, %v1221
        %v1223 = vrot.slane %v1209, %v1222
        %v1224 = vcombine.low %v1200, %v1216
        %v1225 = vcombine.high %v1200, %v1216
        %v1226 = vcombine.low %v1207, %v1223
        %v1227 = vcombine.high %v1207, %v1223
        %1229 = vrot.lane.b32.xlu0 %v1225, 40
        %v1230 = vpop.permute.xlu0 %1229
        %1233 = vrot.lane.b32.xlu0 %v1226, 80
        %v1234 = vpop.permute.xlu0 %1233
        %1237 = vrot.lane.b32.xlu0 %v1227, 120
        %v1238 = vpop.permute.xlu0 %1237
        %vm1240 = vcmask 326656
        %v1241 = vsel %vm1240, %v1224, %v1230
        %vm1242 = vcmask 654336
        %v1243 = vsel %vm1242, %v1241, %v1234
        %vm1244 = vcmask 982016
        %v1245 = vsel %vm1244, %v1243, %v1238
        %1246 = vst [vmem:[%s437] sm:$0xff] %v1245
        %vm1247 = vcmask 261120
        %1248 = vst.msk [vmem:[%s437 + $0x8] sm:$0xff] %vm1247, %v1238
        %v1249 = vcombine.low %v899, %v901
        %v1250 = vcombine.high %v899, %v901
        %v1252 = vunpack.c.l.s4 1983009808
        %v1253 = vunpack.c.0.s8 %v1252
        %v1254 = vlaneseq
        %v1255 = vshrl.u32 %v1254, 7
        %v1256 = vsub.s32 %v1253, %v1255
        %v1257 = vrot.slane %v1249, %v1256
        %v1259 = vunpack.c.l.s4 1983009808
        %v1260 = vunpack.c.0.s8 %v1259
        %v1261 = vlaneseq
        %v1262 = vshrl.u32 %v1261, 7
        %v1263 = vsub.s32 %v1260, %v1262
        %v1264 = vrot.slane %v1250, %v1263
        %v1265 = vcombine.low %v900, %v902
        %v1266 = vcombine.high %v900, %v902
        %v1268 = vunpack.c.l.s4 1983009808
        %v1269 = vunpack.c.0.s8 %v1268
        %v1270 = vlaneseq
        %v1271 = vshrl.u32 %v1270, 7
        %v1272 = vsub.s32 %v1269, %v1271
        %v1273 = vrot.slane %v1265, %v1272
        %v1275 = vunpack.c.l.s4 1983009808
        %v1276 = vunpack.c.0.s8 %v1275
        %v1277 = vlaneseq
        %v1278 = vshrl.u32 %v1277, 7
        %v1279 = vsub.s32 %v1276, %v1278
        %v1280 = vrot.slane %v1266, %v1279
        %v1281 = vcombine.low %v1257, %v1273
        %v1282 = vcombine.high %v1257, %v1273
        %v1284 = vunpack.c.l.s4 1934713408
        %v1285 = vunpack.c.0.s8 %v1284
        %v1286 = vlaneseq
        %v1287 = vshrl.u32 %v1286, 7
        %v1288 = vsub.s32 %v1285, %v1287
        %v1289 = vrot.slane %v1281, %v1288
        %v1291 = vunpack.c.l.s4 1934713408
        %v1292 = vunpack.c.0.s8 %v1291
        %v1293 = vlaneseq
        %v1294 = vshrl.u32 %v1293, 7
        %v1295 = vsub.s32 %v1292, %v1294
        %v1296 = vrot.slane %v1282, %v1295
        %v1297 = vcombine.low %v1264, %v1280
        %v1298 = vcombine.high %v1264, %v1280
        %v1300 = vunpack.c.l.s4 1934713408
        %v1301 = vunpack.c.0.s8 %v1300
        %v1302 = vlaneseq
        %v1303 = vshrl.u32 %v1302, 7
        %v1304 = vsub.s32 %v1301, %v1303
        %v1305 = vrot.slane %v1297, %v1304
        %v1307 = vunpack.c.l.s4 1934713408
        %v1308 = vunpack.c.0.s8 %v1307
        %v1309 = vlaneseq
        %v1310 = vshrl.u32 %v1309, 7
        %v1311 = vsub.s32 %v1308, %v1310
        %v1312 = vrot.slane %v1298, %v1311
        %v1313 = vcombine.high %v1289, 0.0
        %v1314 = vcombine.high %v1296, 0.0
        %v1315 = vcombine.high %v1305, 0.0
        %v1316 = vcombine.high %v1312, 0.0
        %v1317 = vpack.c.bf16 %v1289, %v1289
        %v1318 = vpack.c.bf16 %v1313, %v1313
        %v1319 = vpack.c.bf16 %v1296, %v1296
        %v1320 = vpack.c.bf16 %v1314, %v1314
        %v1321 = vpack.c.bf16 %v1305, %v1305
        %v1322 = vpack.c.bf16 %v1315, %v1315
        %v1323 = vpack.c.bf16 %v1312, %v1312
        %v1324 = vpack.c.bf16 %v1316, %v1316
        %v1326 = vsel %vm858, %v1317, 0
        %v1329 = vsel %vm910, %v520, 0
        %1331 = vmatprep.subr.bf16.mxu0 0
        %1332 = vmatpush1.bf16.msra.mxu0 0
        %1333 = vmatprep.subr.bf16.mxu0 0
        %1334 = vmatpush1.bf16.msra.mxu0 0
        %1335 = vmatprep.subr.bf16.mxu0 0
        %1336 = vmatpush1.bf16.msra.mxu0 0
        %1337 = vmatprep.subr.bf16.mxu0 0
        %1338 = vmatpush1.bf16.msra.mxu0 0
        %1339 = vmatprep.subr.bf16.mxu0 0
        %1340 = vmatpush1.bf16.msra.mxu0 0
        %1341 = vmatprep.subr.bf16.mxu0 0
        %1342 = vmatpush1.bf16.msra.mxu0 0
        %1343 = vmatprep.subr.bf16.mxu0 0
        %1344 = vmatpush1.bf16.msra.mxu0 0
        %1345 = vmatprep.subr.bf16.mxu0 0
        %1346 = vmatpush1.bf16.msra.mxu0 %v1329
        %1347 = vmatprep.subr.bf16.mxu0 0
        %1348 = vmatpush2.bf16.msra.mxu0 0
        %1349 = vmatprep.subr.bf16.mxu0 0
        %1350 = vmatpush2.bf16.msra.mxu0 0
        %1351 = vmatprep.subr.bf16.mxu0 0
        %1352 = vmatpush2.bf16.msra.mxu0 0
        %1353 = vmatprep.subr.bf16.mxu0 0
        %1354 = vmatpush2.bf16.msra.mxu0 0
        %1355 = vmatprep.subr.bf16.mxu0 0
        %1356 = vmatpush2.bf16.msra.mxu0 0
        %1357 = vmatprep.subr.bf16.mxu0 0
        %1358 = vmatpush2.bf16.msra.mxu0 0
        %1359 = vmatprep.subr.bf16.mxu0 0
        %1360 = vmatpush2.bf16.msra.mxu0 0
        %1361 = vmatprep.subr.bf16.mxu0 0
        %1362 = vmatpush2.bf16.msra.mxu0 0
        %1363 = vmatprep.mubr.bf16.mxu0 0
        %1364 = vmatmul.mubr.bf16.gmra.mxu0 %v1326
        %v1365 = vpop.f32.mrf.mxu0
        %v1366 = vadd.f32 0.0, %v1365
        %v1367 = vpop.f32.mrf.mxu0
        %v1368 = vpop.f32.mrf.mxu0
        %v1369 = vpop.f32.mrf.mxu0
        %1370 = vdwg.mxu0
        %v1372 = vsel %vm858, %v1318, 0
        %v1375 = vsel %vm910, %v521, 0
        %1377 = vmatprep.subr.bf16.mxu0 0
        %1378 = vmatpush1.bf16.msra.mxu0 0
        %1379 = vmatprep.subr.bf16.mxu0 0
        %1380 = vmatpush1.bf16.msra.mxu0 0
        %1381 = vmatprep.subr.bf16.mxu0 0
        %1382 = vmatpush1.bf16.msra.mxu0 0
        %1383 = vmatprep.subr.bf16.mxu0 0
        %1384 = vmatpush1.bf16.msra.mxu0 0
        %1385 = vmatprep.subr.bf16.mxu0 0
        %1386 = vmatpush1.bf16.msra.mxu0 0
        %1387 = vmatprep.subr.bf16.mxu0 0
        %1388 = vmatpush1.bf16.msra.mxu0 0
        %1389 = vmatprep.subr.bf16.mxu0 0
        %1390 = vmatpush1.bf16.msra.mxu0 0
        %1391 = vmatprep.subr.bf16.mxu0 0
        %1392 = vmatpush1.bf16.msra.mxu0 %v1375
        %1393 = vmatprep.subr.bf16.mxu0 0
        %1394 = vmatpush2.bf16.msra.mxu0 0
        %1395 = vmatprep.subr.bf16.mxu0 0
        %1396 = vmatpush2.bf16.msra.mxu0 0
        %1397 = vmatprep.subr.bf16.mxu0 0
        %1398 = vmatpush2.bf16.msra.mxu0 0
        %1399 = vmatprep.subr.bf16.mxu0 0
        %1400 = vmatpush2.bf16.msra.mxu0 0
        %1401 = vmatprep.subr.bf16.mxu0 0
        %1402 = vmatpush2.bf16.msra.mxu0 0
        %1403 = vmatprep.subr.bf16.mxu0 0
        %1404 = vmatpush2.bf16.msra.mxu0 0
        %1405 = vmatprep.subr.bf16.mxu0 0
        %1406 = vmatpush2.bf16.msra.mxu0 0
        %1407 = vmatprep.subr.bf16.mxu0 0
        %1408 = vmatpush2.bf16.msra.mxu0 0
        %1409 = vmatprep.mubr.bf16.mxu0 0
        %1410 = vmatmul.mubr.bf16.gmra.mxu0 %v1372
        %v1411 = vpop.f32.mrf.mxu0
        %v1412 = vadd.f32 0.0, %v1411
        %v1413 = vpop.f32.mrf.mxu0
        %v1414 = vpop.f32.mrf.mxu0
        %v1415 = vpop.f32.mrf.mxu0
        %1416 = vdwg.mxu0
        %v1418 = vsel %vm858, %v1319, 0
        %v1421 = vsel %vm910, %v522, 0
        %1423 = vmatprep.subr.bf16.mxu0 0
        %1424 = vmatpush1.bf16.msra.mxu0 0
        %1425 = vmatprep.subr.bf16.mxu0 0
        %1426 = vmatpush1.bf16.msra.mxu0 0
        %1427 = vmatprep.subr.bf16.mxu0 0
        %1428 = vmatpush1.bf16.msra.mxu0 0
        %1429 = vmatprep.subr.bf16.mxu0 0
        %1430 = vmatpush1.bf16.msra.mxu0 0
        %1431 = vmatprep.subr.bf16.mxu0 0
        %1432 = vmatpush1.bf16.msra.mxu0 0
        %1433 = vmatprep.subr.bf16.mxu0 0
        %1434 = vmatpush1.bf16.msra.mxu0 0
        %1435 = vmatprep.subr.bf16.mxu0 0
        %1436 = vmatpush1.bf16.msra.mxu0 0
        %1437 = vmatprep.subr.bf16.mxu0 0
        %1438 = vmatpush1.bf16.msra.mxu0 %v1421
        %1439 = vmatprep.subr.bf16.mxu0 0
        %1440 = vmatpush2.bf16.msra.mxu0 0
        %1441 = vmatprep.subr.bf16.mxu0 0
        %1442 = vmatpush2.bf16.msra.mxu0 0
        %1443 = vmatprep.subr.bf16.mxu0 0
        %1444 = vmatpush2.bf16.msra.mxu0 0
        %1445 = vmatprep.subr.bf16.mxu0 0
        %1446 = vmatpush2.bf16.msra.mxu0 0
        %1447 = vmatprep.subr.bf16.mxu0 0
        %1448 = vmatpush2.bf16.msra.mxu0 0
        %1449 = vmatprep.subr.bf16.mxu0 0
        %1450 = vmatpush2.bf16.msra.mxu0 0
        %1451 = vmatprep.subr.bf16.mxu0 0
        %1452 = vmatpush2.bf16.msra.mxu0 0
        %1453 = vmatprep.subr.bf16.mxu0 0
        %1454 = vmatpush2.bf16.msra.mxu0 0
        %1455 = vmatprep.mubr.bf16.mxu0 0
        %1456 = vmatmul.mubr.bf16.gmra.mxu0 %v1418
        %v1457 = vpop.f32.mrf.mxu0
        %v1458 = vadd.f32 0.0, %v1457
        %v1459 = vpop.f32.mrf.mxu0
        %v1460 = vpop.f32.mrf.mxu0
        %v1461 = vpop.f32.mrf.mxu0
        %1462 = vdwg.mxu0
        %v1464 = vsel %vm858, %v1320, 0
        %v1467 = vsel %vm910, %v523, 0
        %1469 = vmatprep.subr.bf16.mxu0 0
        %1470 = vmatpush1.bf16.msra.mxu0 0
        %1471 = vmatprep.subr.bf16.mxu0 0
        %1472 = vmatpush1.bf16.msra.mxu0 0
        %1473 = vmatprep.subr.bf16.mxu0 0
        %1474 = vmatpush1.bf16.msra.mxu0 0
        %1475 = vmatprep.subr.bf16.mxu0 0
        %1476 = vmatpush1.bf16.msra.mxu0 0
        %1477 = vmatprep.subr.bf16.mxu0 0
        %1478 = vmatpush1.bf16.msra.mxu0 0
        %1479 = vmatprep.subr.bf16.mxu0 0
        %1480 = vmatpush1.bf16.msra.mxu0 0
        %1481 = vmatprep.subr.bf16.mxu0 0
        %1482 = vmatpush1.bf16.msra.mxu0 0
        %1483 = vmatprep.subr.bf16.mxu0 0
        %1484 = vmatpush1.bf16.msra.mxu0 %v1467
        %1485 = vmatprep.subr.bf16.mxu0 0
        %1486 = vmatpush2.bf16.msra.mxu0 0
        %1487 = vmatprep.subr.bf16.mxu0 0
        %1488 = vmatpush2.bf16.msra.mxu0 0
        %1489 = vmatprep.subr.bf16.mxu0 0
        %1490 = vmatpush2.bf16.msra.mxu0 0
        %1491 = vmatprep.subr.bf16.mxu0 0
        %1492 = vmatpush2.bf16.msra.mxu0 0
        %1493 = vmatprep.subr.bf16.mxu0 0
        %1494 = vmatpush2.bf16.msra.mxu0 0
        %1495 = vmatprep.subr.bf16.mxu0 0
        %1496 = vmatpush2.bf16.msra.mxu0 0
        %1497 = vmatprep.subr.bf16.mxu0 0
        %1498 = vmatpush2.bf16.msra.mxu0 0
        %1499 = vmatprep.subr.bf16.mxu0 0
        %1500 = vmatpush2.bf16.msra.mxu0 0
        %1501 = vmatprep.mubr.bf16.mxu0 0
        %1502 = vmatmul.mubr.bf16.gmra.mxu0 %v1464
        %v1503 = vpop.f32.mrf.mxu0
        %v1504 = vadd.f32 0.0, %v1503
        %v1505 = vpop.f32.mrf.mxu0
        %v1506 = vpop.f32.mrf.mxu0
        %v1507 = vpop.f32.mrf.mxu0
        %1508 = vdwg.mxu0
        %v1510 = vsel %vm858, %v1321, 0
        %v1513 = vsel %vm910, %v524, 0
        %1515 = vmatprep.subr.bf16.mxu0 0
        %1516 = vmatpush1.bf16.msra.mxu0 0
        %1517 = vmatprep.subr.bf16.mxu0 0
        %1518 = vmatpush1.bf16.msra.mxu0 0
        %1519 = vmatprep.subr.bf16.mxu0 0
        %1520 = vmatpush1.bf16.msra.mxu0 0
        %1521 = vmatprep.subr.bf16.mxu0 0
        %1522 = vmatpush1.bf16.msra.mxu0 0
        %1523 = vmatprep.subr.bf16.mxu0 0
        %1524 = vmatpush1.bf16.msra.mxu0 0
        %1525 = vmatprep.subr.bf16.mxu0 0
        %1526 = vmatpush1.bf16.msra.mxu0 0
        %1527 = vmatprep.subr.bf16.mxu0 0
        %1528 = vmatpush1.bf16.msra.mxu0 0
        %1529 = vmatprep.subr.bf16.mxu0 0
        %1530 = vmatpush1.bf16.msra.mxu0 %v1513
        %1531 = vmatprep.subr.bf16.mxu0 0
        %1532 = vmatpush2.bf16.msra.mxu0 0
        %1533 = vmatprep.subr.bf16.mxu0 0
        %1534 = vmatpush2.bf16.msra.mxu0 0
        %1535 = vmatprep.subr.bf16.mxu0 0
        %1536 = vmatpush2.bf16.msra.mxu0 0
        %1537 = vmatprep.subr.bf16.mxu0 0
        %1538 = vmatpush2.bf16.msra.mxu0 0
        %1539 = vmatprep.subr.bf16.mxu0 0
        %1540 = vmatpush2.bf16.msra.mxu0 0
        %1541 = vmatprep.subr.bf16.mxu0 0
        %1542 = vmatpush2.bf16.msra.mxu0 0
        %1543 = vmatprep.subr.bf16.mxu0 0
        %1544 = vmatpush2.bf16.msra.mxu0 0
        %1545 = vmatprep.subr.bf16.mxu0 0
        %1546 = vmatpush2.bf16.msra.mxu0 0
        %1547 = vmatprep.mubr.bf16.mxu0 0
        %1548 = vmatmul.mubr.bf16.gmra.mxu0 %v1510
        %v1549 = vpop.f32.mrf.mxu0
        %v1550 = vadd.f32 0.0, %v1549
        %v1551 = vpop.f32.mrf.mxu0
        %v1552 = vpop.f32.mrf.mxu0
        %v1553 = vpop.f32.mrf.mxu0
        %1554 = vdwg.mxu0
        %v1556 = vsel %vm858, %v1322, 0
        %v1559 = vsel %vm910, %v525, 0
        %1561 = vmatprep.subr.bf16.mxu0 0
        %1562 = vmatpush1.bf16.msra.mxu0 0
        %1563 = vmatprep.subr.bf16.mxu0 0
        %1564 = vmatpush1.bf16.msra.mxu0 0
        %1565 = vmatprep.subr.bf16.mxu0 0
        %1566 = vmatpush1.bf16.msra.mxu0 0
        %1567 = vmatprep.subr.bf16.mxu0 0
        %1568 = vmatpush1.bf16.msra.mxu0 0
        %1569 = vmatprep.subr.bf16.mxu0 0
        %1570 = vmatpush1.bf16.msra.mxu0 0
        %1571 = vmatprep.subr.bf16.mxu0 0
        %1572 = vmatpush1.bf16.msra.mxu0 0
        %1573 = vmatprep.subr.bf16.mxu0 0
        %1574 = vmatpush1.bf16.msra.mxu0 0
        %1575 = vmatprep.subr.bf16.mxu0 0
        %1576 = vmatpush1.bf16.msra.mxu0 %v1559
        %1577 = vmatprep.subr.bf16.mxu0 0
        %1578 = vmatpush2.bf16.msra.mxu0 0
        %1579 = vmatprep.subr.bf16.mxu0 0
        %1580 = vmatpush2.bf16.msra.mxu0 0
        %1581 = vmatprep.subr.bf16.mxu0 0
        %1582 = vmatpush2.bf16.msra.mxu0 0
        %1583 = vmatprep.subr.bf16.mxu0 0
        %1584 = vmatpush2.bf16.msra.mxu0 0
        %1585 = vmatprep.subr.bf16.mxu0 0
        %1586 = vmatpush2.bf16.msra.mxu0 0
        %1587 = vmatprep.subr.bf16.mxu0 0
        %1588 = vmatpush2.bf16.msra.mxu0 0
        %1589 = vmatprep.subr.bf16.mxu0 0
        %1590 = vmatpush2.bf16.msra.mxu0 0
        %1591 = vmatprep.subr.bf16.mxu0 0
        %1592 = vmatpush2.bf16.msra.mxu0 0
        %1593 = vmatprep.mubr.bf16.mxu0 0
        %1594 = vmatmul.mubr.bf16.gmra.mxu0 %v1556
        %v1595 = vpop.f32.mrf.mxu0
        %v1596 = vadd.f32 0.0, %v1595
        %v1597 = vpop.f32.mrf.mxu0
        %v1598 = vpop.f32.mrf.mxu0
        %v1599 = vpop.f32.mrf.mxu0
        %1600 = vdwg.mxu0
        %v1602 = vsel %vm858, %v1323, 0
        %v1605 = vsel %vm910, %v526, 0
        %1607 = vmatprep.subr.bf16.mxu0 0
        %1608 = vmatpush1.bf16.msra.mxu0 0
        %1609 = vmatprep.subr.bf16.mxu0 0
        %1610 = vmatpush1.bf16.msra.mxu0 0
        %1611 = vmatprep.subr.bf16.mxu0 0
        %1612 = vmatpush1.bf16.msra.mxu0 0
        %1613 = vmatprep.subr.bf16.mxu0 0
        %1614 = vmatpush1.bf16.msra.mxu0 0
        %1615 = vmatprep.subr.bf16.mxu0 0
        %1616 = vmatpush1.bf16.msra.mxu0 0
        %1617 = vmatprep.subr.bf16.mxu0 0
        %1618 = vmatpush1.bf16.msra.mxu0 0
        %1619 = vmatprep.subr.bf16.mxu0 0
        %1620 = vmatpush1.bf16.msra.mxu0 0
        %1621 = vmatprep.subr.bf16.mxu0 0
        %1622 = vmatpush1.bf16.msra.mxu0 %v1605
        %1623 = vmatprep.subr.bf16.mxu0 0
        %1624 = vmatpush2.bf16.msra.mxu0 0
        %1625 = vmatprep.subr.bf16.mxu0 0
        %1626 = vmatpush2.bf16.msra.mxu0 0
        %1627 = vmatprep.subr.bf16.mxu0 0
        %1628 = vmatpush2.bf16.msra.mxu0 0
        %1629 = vmatprep.subr.bf16.mxu0 0
        %1630 = vmatpush2.bf16.msra.mxu0 0
        %1631 = vmatprep.subr.bf16.mxu0 0
        %1632 = vmatpush2.bf16.msra.mxu0 0
        %1633 = vmatprep.subr.bf16.mxu0 0
        %1634 = vmatpush2.bf16.msra.mxu0 0
        %1635 = vmatprep.subr.bf16.mxu0 0
        %1636 = vmatpush2.bf16.msra.mxu0 0
        %1637 = vmatprep.subr.bf16.mxu0 0
        %1638 = vmatpush2.bf16.msra.mxu0 0
        %1639 = vmatprep.mubr.bf16.mxu0 0
        %1640 = vmatmul.mubr.bf16.gmra.mxu0 %v1602
        %v1641 = vpop.f32.mrf.mxu0
        %v1642 = vadd.f32 0.0, %v1641
        %v1643 = vpop.f32.mrf.mxu0
        %v1644 = vpop.f32.mrf.mxu0
        %v1645 = vpop.f32.mrf.mxu0
        %1646 = vdwg.mxu0
        %v1648 = vsel %vm858, %v1324, 0
        %v1651 = vsel %vm910, %v527, 0
        %1653 = vmatprep.subr.bf16.mxu0 0
        %1654 = vmatpush1.bf16.msra.mxu0 0
        %1655 = vmatprep.subr.bf16.mxu0 0
        %1656 = vmatpush1.bf16.msra.mxu0 0
        %1657 = vmatprep.subr.bf16.mxu0 0
        %1658 = vmatpush1.bf16.msra.mxu0 0
        %1659 = vmatprep.subr.bf16.mxu0 0
        %1660 = vmatpush1.bf16.msra.mxu0 0
        %1661 = vmatprep.subr.bf16.mxu0 0
        %1662 = vmatpush1.bf16.msra.mxu0 0
        %1663 = vmatprep.subr.bf16.mxu0 0
        %1664 = vmatpush1.bf16.msra.mxu0 0
        %1665 = vmatprep.subr.bf16.mxu0 0
        %1666 = vmatpush1.bf16.msra.mxu0 0
        %1667 = vmatprep.subr.bf16.mxu0 0
        %1668 = vmatpush1.bf16.msra.mxu0 %v1651
        %1669 = vmatprep.subr.bf16.mxu0 0
        %1670 = vmatpush2.bf16.msra.mxu0 0
        %1671 = vmatprep.subr.bf16.mxu0 0
        %1672 = vmatpush2.bf16.msra.mxu0 0
        %1673 = vmatprep.subr.bf16.mxu0 0
        %1674 = vmatpush2.bf16.msra.mxu0 0
        %1675 = vmatprep.subr.bf16.mxu0 0
        %1676 = vmatpush2.bf16.msra.mxu0 0
        %1677 = vmatprep.subr.bf16.mxu0 0
        %1678 = vmatpush2.bf16.msra.mxu0 0
        %1679 = vmatprep.subr.bf16.mxu0 0
        %1680 = vmatpush2.bf16.msra.mxu0 0
        %1681 = vmatprep.subr.bf16.mxu0 0
        %1682 = vmatpush2.bf16.msra.mxu0 0
        %1683 = vmatprep.subr.bf16.mxu0 0
        %1684 = vmatpush2.bf16.msra.mxu0 0
        %1685 = vmatprep.mubr.bf16.mxu0 0
        %1686 = vmatmul.mubr.bf16.gmra.mxu0 %v1648
        %v1687 = vpop.f32.mrf.mxu0
        %v1688 = vadd.f32 0.0, %v1687
        %v1689 = vpop.f32.mrf.mxu0
        %v1690 = vpop.f32.mrf.mxu0
        %v1691 = vpop.f32.mrf.mxu0
        %1692 = vdwg.mxu0
        %v1693 = vcombine.low %v1366, %v1458
        %v1695 = vunpack.c.l.s4 1983009808
        %v1696 = vunpack.c.0.s8 %v1695
        %v1697 = vlaneseq
        %v1698 = vshrl.u32 %v1697, 7
        %v1699 = vsub.s32 %v1696, %v1698
        %v1700 = vrot.slane %v1693, %v1699
        %v1701 = vcombine.low %v1412, %v1504
        %v1703 = vunpack.c.l.s4 1983009808
        %v1704 = vunpack.c.0.s8 %v1703
        %v1705 = vlaneseq
        %v1706 = vshrl.u32 %v1705, 7
        %v1707 = vsub.s32 %v1704, %v1706
        %v1708 = vrot.slane %v1701, %v1707
        %v1709 = vcombine.low %v1550, %v1642
        %v1711 = vunpack.c.l.s4 1983009808
        %v1712 = vunpack.c.0.s8 %v1711
        %v1713 = vlaneseq
        %v1714 = vshrl.u32 %v1713, 7
        %v1715 = vsub.s32 %v1712, %v1714
        %v1716 = vrot.slane %v1709, %v1715
        %v1717 = vcombine.low %v1596, %v1688
        %v1719 = vunpack.c.l.s4 1983009808
        %v1720 = vunpack.c.0.s8 %v1719
        %v1721 = vlaneseq
        %v1722 = vshrl.u32 %v1721, 7
        %v1723 = vsub.s32 %v1720, %v1722
        %v1724 = vrot.slane %v1717, %v1723
        %v1725 = vcombine.low %v1700, %v1708
        %v1726 = vcombine.high %v1700, %v1708
        %v1728 = vunpack.c.l.s4 1934713408
        %v1729 = vunpack.c.0.s8 %v1728
        %v1730 = vlaneseq
        %v1731 = vshrl.u32 %v1730, 7
        %v1732 = vsub.s32 %v1729, %v1731
        %v1733 = vrot.slane %v1725, %v1732
        %v1735 = vunpack.c.l.s4 1934713408
        %v1736 = vunpack.c.0.s8 %v1735
        %v1737 = vlaneseq
        %v1738 = vshrl.u32 %v1737, 7
        %v1739 = vsub.s32 %v1736, %v1738
        %v1740 = vrot.slane %v1726, %v1739
        %v1741 = vcombine.low %v1716, %v1724
        %v1742 = vcombine.high %v1716, %v1724
        %v1744 = vunpack.c.l.s4 1934713408
        %v1745 = vunpack.c.0.s8 %v1744
        %v1746 = vlaneseq
        %v1747 = vshrl.u32 %v1746, 7
        %v1748 = vsub.s32 %v1745, %v1747
        %v1749 = vrot.slane %v1741, %v1748
        %v1751 = vunpack.c.l.s4 1934713408
        %v1752 = vunpack.c.0.s8 %v1751
        %v1753 = vlaneseq
        %v1754 = vshrl.u32 %v1753, 7
        %v1755 = vsub.s32 %v1752, %v1754
        %v1756 = vrot.slane %v1742, %v1755
        %v1757 = vcombine.low %v1733, %v1749
        %v1758 = vcombine.high %v1733, %v1749
        %v1759 = vcombine.low %v1740, %v1756
        %v1760 = vcombine.high %v1740, %v1756
        %1762 = vrot.lane.b32.xlu0 %v1758, 8
        %v1763 = vpop.permute.xlu0 %1762
        %1766 = vrot.lane.b32.xlu0 %v1759, 16
        %v1767 = vpop.permute.xlu0 %1766
        %1770 = vrot.lane.b32.xlu0 %v1760, 24
        %v1771 = vpop.permute.xlu0 %1770
        %v1773 = vsel %vm858, %v1757, %v1763
        %vm1774 = vcmask 130048
        %v1775 = vsel %vm1774, %v1773, %v1767
        %vm1776 = vcmask 195584
        %v1777 = vsel %vm1776, %v1775, %v1771
        %v1778 = vpack.c.bf16 %v1777, %v1777
        %vm1779 = vcmask 257024
        %1780 = vst.msk [vmem:[%s444] sm:$0xf] %vm1779, %v1778
        %s1781 = sand.u32 %s238, 1
        %s1782 = scalar_lea.sflag [#allocation3], %s1781
        %s1783 = sand.u32 %s238, 1
        %s1784 = smul.addr %s1783, 16
        %s1785 = scalar_lea.vmem [#allocation2], %s1784
        %s1786 = sand.u32 %s266, 1
        %s1787 = scalar_lea.sflag [#allocation5], %s1786
        %s1788 = sand.u32 %s266, 1
        %s1789 = smul.addr %s1788, 4
        %s1790 = scalar_lea.vmem [#allocation4], %s1789
        // Predicated region
        $region49: #{tpu_custom_call.1} parent=47 // pred_check
          %p1791 = pneg %p248
        $region50: #{tpu_custom_call.1} parent=47 // pred_check_branch
          %1793 = sbr.rel (%p1791) target = $region52
        $region51: #{tpu_custom_call.1} parent=47 // pred_region
          %s1795 = ssub.s32 256, 256
          %1796 = vsyncadd %s1782, %s1795
          %s1797 = smul.addr %s31, 2
          %s1798 = smul.addr %s30, 2
          %s1799 = sadd.s32 %s1797, %s1798
          %s1800 = smul.addr %s1799, 128
          %s1801 = scalar_lea.hbm %s7, %s1800
          %s1803 = sshll.u32 %s1785, 4
          %s1804 = int_to_ptr.vmem [resolvable:$true] %s1803
          %1806 = dma.vmem_to_hbm [thread:$0]  %s1804, 256, %s1801, %s1782
        $region52: #{tpu_custom_call.1} parent=47 // pred_fallthru
          _
        // Predicated region
        $region53: #{tpu_custom_call.1} parent=47 // pred_check
          %p1807 = pneg %p276
        $region54: #{tpu_custom_call.1} parent=47 // pred_check_branch
          %1809 = sbr.rel (%p1807) target = $region56
        $region55: #{tpu_custom_call.1} parent=47 // pred_region
          %s1811 = ssub.s32 64, 64
          %1812 = vsyncadd %s1787, %s1811
          %s1813 = sadd.s32 %s31, %s30
          %s1814 = smul.addr %s1813, 64
          %s1815 = scalar_lea.hbm %s8, %s1814
          %s1817 = sshll.u32 %s1790, 4
          %s1818 = int_to_ptr.vmem [resolvable:$true] %s1817
          %1820 = dma.vmem_to_hbm [thread:$0]  %s1818, 64, %s1815, %s1787
        $region56: #{tpu_custom_call.1} parent=47 // pred_fallthru
          _
      $region48: #{tpu_custom_call.1} parent=5 // pred_fallthru
        _
      %p1821 = scmp.le.s32.totalorder 2, %s21
      // Predicated region
      $region57: #{tpu_custom_call.1} parent=5 // pred_check
        %p1822 = pneg %p1821
      $region58: #{tpu_custom_call.1} parent=5 // pred_check_branch
        %1824 = sbr.rel (%p1822) target = $region60
      $region59: #{tpu_custom_call.1} parent=5 // pred_region
        %s1825 = ssub.s32 %s21, 2
        // Predicated region
        $region61: #{tpu_custom_call.1} parent=59 // pred_check
          %p1826 = pneg %p254
        $region62: #{tpu_custom_call.1} parent=59 // pred_check_branch
          %1828 = sbr.rel (%p1826) target = $region64
        $region63: #{tpu_custom_call.1} parent=59 // pred_region
          %s1829 = sand.u32 %s239, 1
          %s1830 = scalar_lea.sflag [#allocation3], %s1829
          %s1831 = sand.u32 %s239, 1
          %s1832 = smul.addr %s1831, 16
          %s1833 = scalar_lea.vmem [#allocation2], %s1832
          %1834 = dma.done %s1830, 256
        $region64: #{tpu_custom_call.1} parent=59 // pred_fallthru
          _
        // Predicated region
        $region65: #{tpu_custom_call.1} parent=59 // pred_check
          %p1835 = pneg %p282
        $region66: #{tpu_custom_call.1} parent=59 // pred_check_branch
          %1837 = sbr.rel (%p1835) target = $region68
        $region67: #{tpu_custom_call.1} parent=59 // pred_region
          %s1838 = sand.u32 %s267, 1
          %s1839 = scalar_lea.sflag [#allocation5], %s1838
          %s1840 = sand.u32 %s267, 1
          %s1841 = smul.addr %s1840, 4
          %s1842 = scalar_lea.vmem [#allocation4], %s1841
          %1843 = dma.done %s1839, 64
        $region68: #{tpu_custom_call.1} parent=59 // pred_fallthru
          _
      $region60: #{tpu_custom_call.1} parent=5 // pred_fallthru
        _
    $region6: #{tpu_custom_call.1} parent=1 // loop_footer
      %s25 = sadd.s32 1, %s21
    $region7: #{tpu_custom_call.1} parent=1 // loop_footer_branch
      %20 = sbr.rel target = $region3
    $region8: #{tpu_custom_call.1} parent=1 // loop_exit
      _
    %1844 = vsyncpa [#allocation3], 1
    %s1845 = scalar_lea.sflag [#allocation3], 1
    %1846 = vsyncpa %s1845, 1
    %1847 = vsyncpa [#allocation5], 1
    %s1848 = scalar_lea.sflag [#allocation5], 1
    %1849 = vsyncpa %s1848, 1

</llo_original>
